<compile_context>
chip_gen: v7x
topology: tpu7x:2x2x1
jax: 0.10.0
libtpu: 0.0.40
codegen_flags: <defaults>
</compile_context>

<pallas_src>
import jax
import jax.numpy as jnp
from jax.experimental import pallas as pl
from jax.experimental.pallas import tpu as pltpu


def _round_up(x, m):
    return -(-x // m) * m


# ----------------------------------------------------------------------------
# Kernel 1: link1 + cv1(3x3) + bilinear x2 upsample, one batch element / step.
# Output layout: (B, S, 4*c1) with lane axis = (row parity p, col parity q, c),
# i.e. out[b, h*Wh + w, (p*2 + q)*c1 + c] = upsampled[b, c, 2h + p, 2w + q].
# ----------------------------------------------------------------------------
def _make_fused_high_kernel(Hh, Wh, c1):
    S = Hh * Wh
    C2 = 2 * c1

    def kernel(x_ref, w1_ref, b1_ref, w2_ref, b2_ref, wc1_ref, bc1_ref, out_ref):
        # ---- link1: 1x1 Conv+BN+SiLU -> 1x1 Conv+BN -> Sigmoid --------------
        x = x_ref[0]                                              # (S, C2) bf16
        h = jnp.dot(x, w1_ref[...], preferred_element_type=jnp.float32)
        h = h + b1_ref[...]
        h = h * jax.nn.sigmoid(h)                                 # SiLU
        g = jnp.dot(h.astype(jnp.bfloat16), w2_ref[...],
                    preferred_element_type=jnp.float32)
        g = jax.nn.sigmoid(g + b2_ref[...])                       # (S, C2) f32

        # Border masks on the flattened (h, w) row index.
        rows = jax.lax.broadcasted_iota(jnp.int32, (S, 1), 0)
        wcol = rows % Wh
        w_first = wcol == 0                 # w == 0     (no w-1 neighbour)
        w_last = wcol == Wh - 1             # w == Wh-1  (no w+1 neighbour)
        h_first = rows < Wh                 # h == 0     (no h-1 neighbour)
        h_last = rows >= S - Wh             # h == Hh-1  (no h+1 neighbour)

        # ---- cv1: 3x3 conv (pad=1) + BN + SiLU ------------------------------
        # 3 row-shifted slabs (h-1, h, h+1) via sublane rolls + border masks;
        # the +-1 column taps are rolls of those slabs.  The wrap-around rows
        # are exactly the rows the masks zero, so no padded scratch is needed.
        g_up = jnp.where(h_first, 0.0, pltpu.roll(g, Wh, axis=0))       # g[m-Wh]
        g_dn = jnp.where(h_last, 0.0, pltpu.roll(g, S - Wh, axis=0))    # g[m+Wh]

        acc = jnp.zeros((S, c1), jnp.float32)
        for kh, slab in enumerate((g_up, g, g_dn)):
            left = jnp.where(w_first, 0.0, pltpu.roll(slab, 1, axis=0))      # [m-1]
            right = jnp.where(w_last, 0.0, pltpu.roll(slab, S - 1, axis=0))  # [m+1]
            acc = acc + jnp.dot(left.astype(jnp.bfloat16), wc1_ref[3 * kh + 0],
                                preferred_element_type=jnp.float32)
            acc = acc + jnp.dot(slab.astype(jnp.bfloat16), wc1_ref[3 * kh + 1],
                                preferred_element_type=jnp.float32)
            acc = acc + jnp.dot(right.astype(jnp.bfloat16), wc1_ref[3 * kh + 2],
                                preferred_element_type=jnp.float32)
        y = acc + bc1_ref[...]
        y = y * jax.nn.sigmoid(y)                                  # (S, c1) f32

        # ---- bilinear x2 upsample (align_corners=False) ---------------------
        # out col 2w   = 0.75*y[w] + 0.25*y[w-1]  (clamped at w == 0)
        # out col 2w+1 = 0.75*y[w] + 0.25*y[w+1]  (clamped at w == Wh-1)
        y_m1 = pltpu.roll(y, 1, axis=0)                            # y[m-1]
        y_p1 = pltpu.roll(y, S - 1, axis=0)                        # y[m+1]
        yw_e = 0.75 * y + 0.25 * jnp.where(w_first, y, y_m1)       # q = 0
        yw_o = 0.75 * y + 0.25 * jnp.where(w_last, y, y_p1)        # q = 1

        # Row direction: same 0.75/0.25 lerp with clamped h-1 / h+1 rows.
        e_hm = jnp.where(h_first, yw_e, pltpu.roll(yw_e, Wh, axis=0))
        o_hm = jnp.where(h_first, yw_o, pltpu.roll(yw_o, Wh, axis=0))
        e_hp = jnp.where(h_last, yw_e, pltpu.roll(yw_e, S - Wh, axis=0))
        o_hp = jnp.where(h_last, yw_o, pltpu.roll(yw_o, S - Wh, axis=0))

        dt = out_ref.dtype
        out_ref[0, :, 0 * c1:1 * c1] = (0.75 * yw_e + 0.25 * e_hm).astype(dt)  # p0,q0
        out_ref[0, :, 1 * c1:2 * c1] = (0.75 * yw_o + 0.25 * o_hm).astype(dt)  # p0,q1
        out_ref[0, :, 2 * c1:3 * c1] = (0.75 * yw_e + 0.25 * e_hp).astype(dt)  # p1,q0
        out_ref[0, :, 3 * c1:4 * c1] = (0.75 * yw_o + 0.25 * o_hp).astype(dt)  # p1,q1

    return kernel


def link1_cv1_up(high_rows, params, Hh, Wh, c1):
    """high_rows: (B, Hh*Wh, 2*c1) bf16 -> (B, Hh*Wh, 4*c1) bf16 (lane = p,q,c)."""
    B, S, C2 = high_rows.shape
    Ch = params["w1"].shape[1]
    kernel = _make_fused_high_kernel(Hh, Wh, c1)

    flops = int(B * S * (4 * C2 * Ch + 18 * C2 * c1))
    transc = int(B * S * (Ch + C2 + c1))
    bytes_acc = int(B * S * C2 * 2 + B * S * 4 * c1 * 2 +
                    (2 * C2 * Ch + 9 * C2 * c1) * 2 + (Ch + 2 * C2 + c1) * 4)

    return pl.pallas_call(
        kernel,
        out_shape=jax.ShapeDtypeStruct((B, S, 4 * c1), jnp.bfloat16),
        grid=(B,),
        in_specs=[
            pl.BlockSpec((1, S, C2), lambda b: (b, 0, 0)),
            pl.BlockSpec((C2, Ch), lambda b: (0, 0)),
            pl.BlockSpec((1, Ch), lambda b: (0, 0)),
            pl.BlockSpec((Ch, C2), lambda b: (0, 0)),
            pl.BlockSpec((1, C2), lambda b: (0, 0)),
            pl.BlockSpec((9, C2, c1), lambda b: (0, 0, 0)),
            pl.BlockSpec((1, c1), lambda b: (0, 0)),
        ],
        out_specs=pl.BlockSpec((1, S, 4 * c1), lambda b: (b, 0, 0)),
        compiler_params=pltpu.CompilerParams(
            dimension_semantics=("parallel",),
            vmem_limit_bytes=32 * 1024 * 1024,   # safe on v7x (<= ~48 MiB)
        ),
        cost_estimate=pl.CostEstimate(flops=flops, transcendentals=transc,
                                      bytes_accessed=bytes_acc),
    )(high_rows, params["w1"], params["b1"], params["w2"], params["b2"],
      params["wc1"], params["bc1"])


# ----------------------------------------------------------------------------
# Kernel 2: cv2 (1x1 Conv+BN+SiLU) on concat([low, up]) without the concat.
# ----------------------------------------------------------------------------
def _cv2_kernel(low_ref, up_ref, wlo_ref, wup_ref, b_ref, o_ref):
    acc = jnp.dot(low_ref[...], wlo_ref[...], preferred_element_type=jnp.float32)
    acc = acc + jnp.dot(up_ref[...], wup_ref[...], preferred_element_type=jnp.float32)
    y = acc + b_ref[...]
    o_ref[...] = (y * jax.nn.sigmoid(y)).astype(o_ref.dtype)


def cv2_call(low_rows, up_rows, params):
    """low_rows/up_rows: (M, c1) bf16 (same row ordering) -> (M, c1) f32."""
    M, c1 = low_rows.shape
    # Bandwidth-bound: use the biggest row tile that makes sense; let Pallas
    # handle the ragged last block (garbage rows flow through SiLU but are
    # masked on writeback) — no XLA-side pad / slice round trips.
    TM = min(1024, _round_up(M, 8))
    grid = (pl.cdiv(M, TM),)

    flops = int(4 * M * c1 * c1)
    bytes_acc = int(2 * M * c1 * 2 + M * c1 * 4 + 2 * c1 * c1 * 2 + c1 * 4)

    return pl.pallas_call(
        _cv2_kernel,
        out_shape=jax.ShapeDtypeStruct((M, c1), jnp.float32),
        grid=grid,
        in_specs=[
            pl.BlockSpec((TM, c1), lambda i: (i, 0)),
            pl.BlockSpec((TM, c1), lambda i: (i, 0)),
            pl.BlockSpec((c1, c1), lambda i: (0, 0)),
            pl.BlockSpec((c1, c1), lambda i: (0, 0)),
            pl.BlockSpec((1, c1), lambda i: (0, 0)),
        ],
        out_specs=pl.BlockSpec((TM, c1), lambda i: (i, 0)),
        compiler_params=pltpu.CompilerParams(
            dimension_semantics=("parallel",),
            vmem_limit_bytes=32 * 1024 * 1024,
        ),
        cost_estimate=pl.CostEstimate(flops=flops, transcendentals=int(M * c1),
                                      bytes_accessed=bytes_acc),
    )(low_rows, up_rows, params["w_low"], params["w_up"], params["bcv2"])


# ----------------------------------------------------------------------------
# Parameter prep: synthetic Conv2d(bias=False)+BatchNorm2d(eps=1e-3), BN folded
# into the weight (scale) + bias; weights stored bf16, biases f32.
# ----------------------------------------------------------------------------
def _conv_bn_params(key, cin, cout, k):
    ks = jax.random.split(key, 5)
    w = 0.1 * jax.random.normal(ks[0], (cout, cin, k, k), jnp.float32)  # torch layout
    gamma = 1.0 + 0.1 * jax.random.normal(ks[1], (cout,), jnp.float32)
    beta = 0.05 * jax.random.normal(ks[2], (cout,), jnp.float32)
    mean = 0.02 * jax.random.normal(ks[3], (cout,), jnp.float32)
    var = 0.5 + jnp.abs(jax.random.normal(ks[4], (cout,), jnp.float32))
    s = gamma / jnp.sqrt(var + 1e-3)
    b = beta - mean * s
    w_fold = w * s[:, None, None, None]                      # fold BN scale
    if k == 1:
        w_mat = w_fold[:, :, 0, 0].T                         # (cin, cout)
    else:
        w_mat = jnp.transpose(w_fold, (2, 3, 1, 0)).reshape(k * k, cin, cout)
    return w_mat.astype(jnp.bfloat16), b.reshape(1, cout).astype(jnp.float32)


def make_rfb_params(key, c1):
    k1, k2, k3, k4 = jax.random.split(key, 4)
    C2 = 2 * c1
    w1, b1 = _conv_bn_params(k1, C2, c1 // 2, 1)     # Conv(2c1, c1/2), SiLU
    w2, b2 = _conv_bn_params(k2, c1 // 2, C2, 1)     # Conv(c1/2, 2c1), act=False
    wc1, bc1 = _conv_bn_params(k3, C2, c1, 3)        # Conv(2c1, c1, 3, p=1), SiLU
    wcv2, bcv2 = _conv_bn_params(k4, C2, c1, 1)      # Conv(2c1, c1), SiLU
    return {"w1": w1, "b1": b1, "w2": w2, "b2": b2,
            "wc1": wc1, "bc1": bc1,
            "w_low": wcv2[:c1], "w_up": wcv2[c1:], "bcv2": bcv2}


# ----------------------------------------------------------------------------
# rfb forward
# ----------------------------------------------------------------------------
def rfb_forward(low_nchw, high_nchw, params):
    B, C2, Hh, Wh = high_nchw.shape
    c1 = C2 // 2
    Hl, Wl = 2 * Hh, 2 * Wh
    S = Hh * Wh

    # high: NCHW -> (B, Hh*Wh, 2*c1) rows, channels on lanes, bf16.
    high_rows = jnp.transpose(high_nchw, (0, 2, 3, 1)).reshape(B, S, C2)
    high_rows = high_rows.astype(jnp.bfloat16)

    # Kernel 1: link1 + cv1 + bilinear x2 upsample -> (B, S, 4*c1), lane=(p,q,c).
    up = link1_cv1_up(high_rows, params, Hh, Wh, c1)
    up_rows = up.reshape(B * S * 4, c1)              # rows ordered (b, h, w, p, q)

    # low: NCHW -> matching (b, h, w, p, q) row order, channels on lanes, bf16.
    low_rows = jnp.transpose(low_nchw.reshape(B, c1, Hh, 2, Wh, 2),
                             (0, 2, 4, 3, 5, 1)).reshape(B * S * 4, c1)
    low_rows = low_rows.astype(jnp.bfloat16)

    # Kernel 2: cv2 on [low, up] channel concat via split weights.
    y = cv2_call(low_rows, up_rows, params)          # (B*S*4, c1) f32

    # (b, h, w, p, q, c) rows -> NCHW.
    y = y.reshape(B, Hh, Wh, 2, 2, c1)
    y = jnp.transpose(y, (0, 5, 1, 3, 2, 4)).reshape(B, c1, Hl, Wl)
    return y


# ----------------------------------------------------------------------------
if __name__ == "__main__":
    c1 = 4
    B = 2
    Hh = Wh = 8                                      # "high" spatial; "low" is 2x
    key = jax.random.PRNGKey(0)
    k_low, k_high, k_par = jax.random.split(key, 3)

    low = jax.random.normal(k_low, (B, c1, 2 * Hh, 2 * Wh), jnp.float32)
    high = jax.random.normal(k_high, (B, 2 * c1, Hh, Wh), jnp.float32)
    params = make_rfb_params(k_par, c1)

    fwd = jax.jit(rfb_forward)
    out = fwd(low, high, params)
    out = jax.block_until_ready(out)
    assert out.shape == (B, c1, 2 * Hh, 2 * Wh), out.shape
    assert bool(jnp.all(jnp.isfinite(out)))
    print("KERNEL_OK")
</pallas_src>

<mosaic_0001>
module attributes {stable_mosaic.version = 11 : i64} {
  func.func @kernel(%arg0: i32, %arg1: memref<1x64x8xbf16, #tpu.memory_space<vmem>>, %arg2: memref<8x2xbf16, #tpu.memory_space<vmem>>, %arg3: memref<1x2xf32, #tpu.memory_space<vmem>>, %arg4: memref<2x8xbf16, #tpu.memory_space<vmem>>, %arg5: memref<1x8xf32, #tpu.memory_space<vmem>>, %arg6: memref<9x8x4xbf16, #tpu.memory_space<vmem>>, %arg7: memref<1x4xf32, #tpu.memory_space<vmem>>, %arg8: memref<1x64x16xbf16, #tpu.memory_space<vmem>>) attributes {dimension_semantics = [#tpu.dimension_semantics<parallel>], iteration_bounds = array<i64: 2>, scalar_prefetch = 0 : i64, scratch_operands = 0 : i64, tpu.core_type = #tpu.core_type<tc>, window_params = [{transform_indices = @transform_0, window_bounds = array<i64: 1, 64, 8>}, {pipeline_mode = #tpu.pipeline_mode<synchronous>, transform_indices = @transform_1, window_bounds = array<i64: 8, 2>}, {pipeline_mode = #tpu.pipeline_mode<synchronous>, transform_indices = @transform_2, window_bounds = array<i64: 1, 2>}, {pipeline_mode = #tpu.pipeline_mode<synchronous>, transform_indices = @transform_3, window_bounds = array<i64: 2, 8>}, {pipeline_mode = #tpu.pipeline_mode<synchronous>, transform_indices = @transform_4, window_bounds = array<i64: 1, 8>}, {pipeline_mode = #tpu.pipeline_mode<synchronous>, transform_indices = @transform_5, window_bounds = array<i64: 9, 8, 4>}, {pipeline_mode = #tpu.pipeline_mode<synchronous>, transform_indices = @transform_6, window_bounds = array<i64: 1, 4>}, {transform_indices = @transform_7, window_bounds = array<i64: 1, 64, 16>}]} {
    %c0 = arith.constant 0 : index
    %c0_0 = arith.constant 0 : index
    %c0_1 = arith.constant 0 : index
    %0 = vector.load %arg1[%c0, %c0_0, %c0_1] : memref<1x64x8xbf16, #tpu.memory_space<vmem>>, vector<1x64x8xbf16>
    %1 = vector.shape_cast %0 : vector<1x64x8xbf16> to vector<64x8xbf16>
    %c0_2 = arith.constant 0 : index
    %c0_3 = arith.constant 0 : index
    %2 = vector.load %arg2[%c0_2, %c0_3] : memref<8x2xbf16, #tpu.memory_space<vmem>>, vector<8x2xbf16>
    %cst = arith.constant dense<0.000000e+00> : vector<64x2xf32>
    %3 = tpu.matmul %1, %2, %cst {dimension_numbers = #tpu.dot_dimension_numbers<[1], [0], [0], [1], [0, 0, 1, 1], [], []>} : vector<64x8xbf16>, vector<8x2xbf16>, vector<64x2xf32> -> vector<64x2xf32>
    %c0_4 = arith.constant 0 : index
    %c0_5 = arith.constant 0 : index
    %4 = vector.load %arg3[%c0_4, %c0_5] : memref<1x2xf32, #tpu.memory_space<vmem>>, vector<1x2xf32>
    %5 = vector.broadcast %4 : vector<1x2xf32> to vector<64x2xf32>
    %6 = arith.addf %3, %5 : vector<64x2xf32>
    %7 = arith.negf %6 : vector<64x2xf32>
    %8 = math.exp %7 : vector<64x2xf32>
    %cst_6 = arith.constant 1.000000e+00 : f32
    %9 = vector.broadcast %cst_6 : f32 to vector<64x2xf32>
    %10 = arith.addf %9, %8 : vector<64x2xf32>
    %11 = arith.divf %9, %10 : vector<64x2xf32>
    %12 = arith.mulf %6, %11 : vector<64x2xf32>
    %13 = arith.truncf %12 : vector<64x2xf32> to vector<64x2xbf16>
    %c0_7 = arith.constant 0 : index
    %c0_8 = arith.constant 0 : index
    %14 = vector.load %arg4[%c0_7, %c0_8] : memref<2x8xbf16, #tpu.memory_space<vmem>>, vector<2x8xbf16>
    %cst_9 = arith.constant dense<0.000000e+00> : vector<64x8xf32>
    %15 = tpu.matmul %13, %14, %cst_9 {dimension_numbers = #tpu.dot_dimension_numbers<[1], [0], [0], [1], [0, 0, 1, 1], [], []>} : vector<64x2xbf16>, vector<2x8xbf16>, vector<64x8xf32> -> vector<64x8xf32>
    %c0_10 = arith.constant 0 : index
    %c0_11 = arith.constant 0 : index
    %16 = vector.load %arg5[%c0_10, %c0_11] : memref<1x8xf32, #tpu.memory_space<vmem>>, vector<1x8xf32>
    %17 = vector.broadcast %16 : vector<1x8xf32> to vector<64x8xf32>
    %18 = arith.addf %15, %17 : vector<64x8xf32>
    %19 = arith.negf %18 : vector<64x8xf32>
    %20 = math.exp %19 : vector<64x8xf32>
    %cst_12 = arith.constant 1.000000e+00 : f32
    %21 = vector.broadcast %cst_12 : f32 to vector<64x8xf32>
    %22 = arith.addf %21, %20 : vector<64x8xf32>
    %23 = arith.divf %21, %22 : vector<64x8xf32>
    %24 = tpu.iota {dimensions = array<i32: 0>} : vector<64x1xi32>
    %c8_i32 = arith.constant 8 : i32
    %c0_i32 = arith.constant 0 : i32
    %25 = arith.cmpi eq, %c8_i32, %c0_i32 : i32
    %c1_i32 = arith.constant 1 : i32
    %26 = arith.select %25, %c1_i32, %c8_i32 : i32
    %27 = vector.broadcast %26 : i32 to vector<64x1xi32>
    %28 = arith.remsi %24, %27 : vector<64x1xi32>
    %c0_i32_13 = arith.constant 0 : i32
    %29 = vector.broadcast %c0_i32_13 : i32 to vector<64x1xi32>
    %30 = arith.cmpi ne, %28, %29 : vector<64x1xi32>
    %c0_i32_14 = arith.constant 0 : i32
    %31 = vector.broadcast %c0_i32_14 : i32 to vector<64x1xi32>
    %32 = arith.cmpi slt, %28, %31 : vector<64x1xi32>
    %c0_i32_15 = arith.constant 0 : i32
    %33 = arith.cmpi slt, %26, %c0_i32_15 : i32
    %34 = vector.broadcast %33 : i1 to vector<64x1xi1>
    %35 = vector.broadcast %34 : vector<64x1xi1> to vector<64x1xi1>
    %36 = arith.xori %32, %35 : vector<64x1xi1>
    %37 = arith.andi %36, %30 : vector<64x1xi1>
    %38 = vector.broadcast %26 : i32 to vector<64x1xi32>
    %39 = arith.addi %28, %38 : vector<64x1xi32>
    %40 = arith.select %37, %39, %28 : vector<64x1xi1>, vector<64x1xi32>
    %c0_i32_16 = arith.constant 0 : i32
    %41 = vector.broadcast %c0_i32_16 : i32 to vector<64x1xi32>
    %42 = arith.cmpi eq, %40, %41 : vector<64x1xi32>
    %c7_i32 = arith.constant 7 : i32
    %43 = vector.broadcast %c7_i32 : i32 to vector<64x1xi32>
    %44 = arith.cmpi eq, %40, %43 : vector<64x1xi32>
    %c8_i32_17 = arith.constant 8 : i32
    %45 = vector.broadcast %c8_i32_17 : i32 to vector<64x1xi32>
    %46 = arith.cmpi slt, %24, %45 : vector<64x1xi32>
    %c56_i32 = arith.constant 56 : i32
    %47 = vector.broadcast %c56_i32 : i32 to vector<64x1xi32>
    %48 = arith.cmpi sge, %24, %47 : vector<64x1xi32>
    %c8_i32_18 = arith.constant 8 : i32
    %49 = tpu.dynamic_rotate %23 by %c8_i32_18 dim 0 : vector<64x8xf32>, i32 -> vector<64x8xf32>
    %cst_19 = arith.constant 0.000000e+00 : f32
    %50 = vector.shape_cast %46 : vector<64x1xi1> to vector<64x1xi1>
    %51 = vector.broadcast %50 : vector<64x1xi1> to vector<64x8xi1>
    %52 = vector.broadcast %cst_19 : f32 to vector<64x8xf32>
    %53 = arith.select %51, %52, %49 : vector<64x8xi1>, vector<64x8xf32>
    %c56_i32_20 = arith.constant 56 : i32
    %54 = tpu.dynamic_rotate %23 by %c56_i32_20 dim 0 : vector<64x8xf32>, i32 -> vector<64x8xf32>
    %cst_21 = arith.constant 0.000000e+00 : f32
    %55 = vector.shape_cast %48 : vector<64x1xi1> to vector<64x1xi1>
    %56 = vector.broadcast %55 : vector<64x1xi1> to vector<64x8xi1>
    %57 = vector.broadcast %cst_21 : f32 to vector<64x8xf32>
    %58 = arith.select %56, %57, %54 : vector<64x8xi1>, vector<64x8xf32>
    %cst_22 = arith.constant 0.000000e+00 : f32
    %59 = vector.broadcast %cst_22 : f32 to vector<64x4xf32>
    %c1_i32_23 = arith.constant 1 : i32
    %60 = tpu.dynamic_rotate %53 by %c1_i32_23 dim 0 : vector<64x8xf32>, i32 -> vector<64x8xf32>
    %cst_24 = arith.constant 0.000000e+00 : f32
    %61 = vector.shape_cast %42 : vector<64x1xi1> to vector<64x1xi1>
    %62 = vector.broadcast %61 : vector<64x1xi1> to vector<64x8xi1>
    %63 = vector.broadcast %cst_24 : f32 to vector<64x8xf32>
    %64 = arith.select %62, %63, %60 : vector<64x8xi1>, vector<64x8xf32>
    %c63_i32 = arith.constant 63 : i32
    %65 = tpu.dynamic_rotate %53 by %c63_i32 dim 0 : vector<64x8xf32>, i32 -> vector<64x8xf32>
    %cst_25 = arith.constant 0.000000e+00 : f32
    %66 = vector.shape_cast %44 : vector<64x1xi1> to vector<64x1xi1>
    %67 = vector.broadcast %66 : vector<64x1xi1> to vector<64x8xi1>
    %68 = vector.broadcast %cst_25 : f32 to vector<64x8xf32>
    %69 = arith.select %67, %68, %65 : vector<64x8xi1>, vector<64x8xf32>
    %70 = arith.truncf %64 : vector<64x8xf32> to vector<64x8xbf16>
    %c0_26 = arith.constant 0 : index
    %c0_27 = arith.constant 0 : index
    %c0_28 = arith.constant 0 : index
    %71 = vector.load %arg6[%c0_26, %c0_27, %c0_28] : memref<9x8x4xbf16, #tpu.memory_space<vmem>>, vector<1x8x4xbf16>
    %72 = vector.shape_cast %71 : vector<1x8x4xbf16> to vector<8x4xbf16>
    %cst_29 = arith.constant dense<0.000000e+00> : vector<64x4xf32>
    %73 = tpu.matmul %70, %72, %cst_29 {dimension_numbers = #tpu.dot_dimension_numbers<[1], [0], [0], [1], [0, 0, 1, 1], [], []>} : vector<64x8xbf16>, vector<8x4xbf16>, vector<64x4xf32> -> vector<64x4xf32>
    %74 = arith.addf %59, %73 : vector<64x4xf32>
    %75 = arith.truncf %53 : vector<64x8xf32> to vector<64x8xbf16>
    %c1 = arith.constant 1 : index
    %c0_30 = arith.constant 0 : index
    %c0_31 = arith.constant 0 : index
    %76 = vector.load %arg6[%c1, %c0_30, %c0_31] : memref<9x8x4xbf16, #tpu.memory_space<vmem>>, vector<1x8x4xbf16>
    %77 = vector.shape_cast %76 : vector<1x8x4xbf16> to vector<8x4xbf16>
    %cst_32 = arith.constant dense<0.000000e+00> : vector<64x4xf32>
    %78 = tpu.matmul %75, %77, %cst_32 {dimension_numbers = #tpu.dot_dimension_numbers<[1], [0], [0], [1], [0, 0, 1, 1], [], []>} : vector<64x8xbf16>, vector<8x4xbf16>, vector<64x4xf32> -> vector<64x4xf32>
    %79 = arith.addf %74, %78 : vector<64x4xf32>
    %80 = arith.truncf %69 : vector<64x8xf32> to vector<64x8xbf16>
    %c2 = arith.constant 2 : index
    %c0_33 = arith.constant 0 : index
    %c0_34 = arith.constant 0 : index
    %81 = vector.load %arg6[%c2, %c0_33, %c0_34] : memref<9x8x4xbf16, #tpu.memory_space<vmem>>, vector<1x8x4xbf16>
    %82 = vector.shape_cast %81 : vector<1x8x4xbf16> to vector<8x4xbf16>
    %cst_35 = arith.constant dense<0.000000e+00> : vector<64x4xf32>
    %83 = tpu.matmul %80, %82, %cst_35 {dimension_numbers = #tpu.dot_dimension_numbers<[1], [0], [0], [1], [0, 0, 1, 1], [], []>} : vector<64x8xbf16>, vector<8x4xbf16>, vector<64x4xf32> -> vector<64x4xf32>
    %84 = arith.addf %79, %83 : vector<64x4xf32>
    %c1_i32_36 = arith.constant 1 : i32
    %85 = tpu.dynamic_rotate %23 by %c1_i32_36 dim 0 : vector<64x8xf32>, i32 -> vector<64x8xf32>
    %cst_37 = arith.constant 0.000000e+00 : f32
    %86 = vector.shape_cast %42 : vector<64x1xi1> to vector<64x1xi1>
    %87 = vector.broadcast %86 : vector<64x1xi1> to vector<64x8xi1>
    %88 = vector.broadcast %cst_37 : f32 to vector<64x8xf32>
    %89 = arith.select %87, %88, %85 : vector<64x8xi1>, vector<64x8xf32>
    %c63_i32_38 = arith.constant 63 : i32
    %90 = tpu.dynamic_rotate %23 by %c63_i32_38 dim 0 : vector<64x8xf32>, i32 -> vector<64x8xf32>
    %cst_39 = arith.constant 0.000000e+00 : f32
    %91 = vector.shape_cast %44 : vector<64x1xi1> to vector<64x1xi1>
    %92 = vector.broadcast %91 : vector<64x1xi1> to vector<64x8xi1>
    %93 = vector.broadcast %cst_39 : f32 to vector<64x8xf32>
    %94 = arith.select %92, %93, %90 : vector<64x8xi1>, vector<64x8xf32>
    %95 = arith.truncf %89 : vector<64x8xf32> to vector<64x8xbf16>
    %c3 = arith.constant 3 : index
    %c0_40 = arith.constant 0 : index
    %c0_41 = arith.constant 0 : index
    %96 = vector.load %arg6[%c3, %c0_40, %c0_41] : memref<9x8x4xbf16, #tpu.memory_space<vmem>>, vector<1x8x4xbf16>
    %97 = vector.shape_cast %96 : vector<1x8x4xbf16> to vector<8x4xbf16>
    %cst_42 = arith.constant dense<0.000000e+00> : vector<64x4xf32>
    %98 = tpu.matmul %95, %97, %cst_42 {dimension_numbers = #tpu.dot_dimension_numbers<[1], [0], [0], [1], [0, 0, 1, 1], [], []>} : vector<64x8xbf16>, vector<8x4xbf16>, vector<64x4xf32> -> vector<64x4xf32>
    %99 = arith.addf %84, %98 : vector<64x4xf32>
    %100 = arith.truncf %23 : vector<64x8xf32> to vector<64x8xbf16>
    %c4 = arith.constant 4 : index
    %c0_43 = arith.constant 0 : index
    %c0_44 = arith.constant 0 : index
    %101 = vector.load %arg6[%c4, %c0_43, %c0_44] : memref<9x8x4xbf16, #tpu.memory_space<vmem>>, vector<1x8x4xbf16>
    %102 = vector.shape_cast %101 : vector<1x8x4xbf16> to vector<8x4xbf16>
    %cst_45 = arith.constant dense<0.000000e+00> : vector<64x4xf32>
    %103 = tpu.matmul %100, %102, %cst_45 {dimension_numbers = #tpu.dot_dimension_numbers<[1], [0], [0], [1], [0, 0, 1, 1], [], []>} : vector<64x8xbf16>, vector<8x4xbf16>, vector<64x4xf32> -> vector<64x4xf32>
    %104 = arith.addf %99, %103 : vector<64x4xf32>
    %105 = arith.truncf %94 : vector<64x8xf32> to vector<64x8xbf16>
    %c5 = arith.constant 5 : index
    %c0_46 = arith.constant 0 : index
    %c0_47 = arith.constant 0 : index
    %106 = vector.load %arg6[%c5, %c0_46, %c0_47] : memref<9x8x4xbf16, #tpu.memory_space<vmem>>, vector<1x8x4xbf16>
    %107 = vector.shape_cast %106 : vector<1x8x4xbf16> to vector<8x4xbf16>
    %cst_48 = arith.constant dense<0.000000e+00> : vector<64x4xf32>
    %108 = tpu.matmul %105, %107, %cst_48 {dimension_numbers = #tpu.dot_dimension_numbers<[1], [0], [0], [1], [0, 0, 1, 1], [], []>} : vector<64x8xbf16>, vector<8x4xbf16>, vector<64x4xf32> -> vector<64x4xf32>
    %109 = arith.addf %104, %108 : vector<64x4xf32>
    %c1_i32_49 = arith.constant 1 : i32
    %110 = tpu.dynamic_rotate %58 by %c1_i32_49 dim 0 : vector<64x8xf32>, i32 -> vector<64x8xf32>
    %cst_50 = arith.constant 0.000000e+00 : f32
    %111 = vector.shape_cast %42 : vector<64x1xi1> to vector<64x1xi1>
    %112 = vector.broadcast %111 : vector<64x1xi1> to vector<64x8xi1>
    %113 = vector.broadcast %cst_50 : f32 to vector<64x8xf32>
    %114 = arith.select %112, %113, %110 : vector<64x8xi1>, vector<64x8xf32>
    %c63_i32_51 = arith.constant 63 : i32
    %115 = tpu.dynamic_rotate %58 by %c63_i32_51 dim 0 : vector<64x8xf32>, i32 -> vector<64x8xf32>
    %cst_52 = arith.constant 0.000000e+00 : f32
    %116 = vector.shape_cast %44 : vector<64x1xi1> to vector<64x1xi1>
    %117 = vector.broadcast %116 : vector<64x1xi1> to vector<64x8xi1>
    %118 = vector.broadcast %cst_52 : f32 to vector<64x8xf32>
    %119 = arith.select %117, %118, %115 : vector<64x8xi1>, vector<64x8xf32>
    %120 = arith.truncf %114 : vector<64x8xf32> to vector<64x8xbf16>
    %c6 = arith.constant 6 : index
    %c0_53 = arith.constant 0 : index
    %c0_54 = arith.constant 0 : index
    %121 = vector.load %arg6[%c6, %c0_53, %c0_54] : memref<9x8x4xbf16, #tpu.memory_space<vmem>>, vector<1x8x4xbf16>
    %122 = vector.shape_cast %121 : vector<1x8x4xbf16> to vector<8x4xbf16>
    %cst_55 = arith.constant dense<0.000000e+00> : vector<64x4xf32>
    %123 = tpu.matmul %120, %122, %cst_55 {dimension_numbers = #tpu.dot_dimension_numbers<[1], [0], [0], [1], [0, 0, 1, 1], [], []>} : vector<64x8xbf16>, vector<8x4xbf16>, vector<64x4xf32> -> vector<64x4xf32>
    %124 = arith.addf %109, %123 : vector<64x4xf32>
    %125 = arith.truncf %58 : vector<64x8xf32> to vector<64x8xbf16>
    %c7 = arith.constant 7 : index
    %c0_56 = arith.constant 0 : index
    %c0_57 = arith.constant 0 : index
    %126 = vector.load %arg6[%c7, %c0_56, %c0_57] : memref<9x8x4xbf16, #tpu.memory_space<vmem>>, vector<1x8x4xbf16>
    %127 = vector.shape_cast %126 : vector<1x8x4xbf16> to vector<8x4xbf16>
    %cst_58 = arith.constant dense<0.000000e+00> : vector<64x4xf32>
    %128 = tpu.matmul %125, %127, %cst_58 {dimension_numbers = #tpu.dot_dimension_numbers<[1], [0], [0], [1], [0, 0, 1, 1], [], []>} : vector<64x8xbf16>, vector<8x4xbf16>, vector<64x4xf32> -> vector<64x4xf32>
    %129 = arith.addf %124, %128 : vector<64x4xf32>
    %130 = arith.truncf %119 : vector<64x8xf32> to vector<64x8xbf16>
    %c8 = arith.constant 8 : index
    %c0_59 = arith.constant 0 : index
    %c0_60 = arith.constant 0 : index
    %131 = vector.load %arg6[%c8, %c0_59, %c0_60] : memref<9x8x4xbf16, #tpu.memory_space<vmem>>, vector<1x8x4xbf16>
    %132 = vector.shape_cast %131 : vector<1x8x4xbf16> to vector<8x4xbf16>
    %cst_61 = arith.constant dense<0.000000e+00> : vector<64x4xf32>
    %133 = tpu.matmul %130, %132, %cst_61 {dimension_numbers = #tpu.dot_dimension_numbers<[1], [0], [0], [1], [0, 0, 1, 1], [], []>} : vector<64x8xbf16>, vector<8x4xbf16>, vector<64x4xf32> -> vector<64x4xf32>
    %134 = arith.addf %129, %133 : vector<64x4xf32>
    %c0_62 = arith.constant 0 : index
    %c0_63 = arith.constant 0 : index
    %135 = vector.load %arg7[%c0_62, %c0_63] : memref<1x4xf32, #tpu.memory_space<vmem>>, vector<1x4xf32>
    %136 = vector.broadcast %135 : vector<1x4xf32> to vector<64x4xf32>
    %137 = arith.addf %134, %136 : vector<64x4xf32>
    %138 = arith.negf %137 : vector<64x4xf32>
    %139 = math.exp %138 : vector<64x4xf32>
    %cst_64 = arith.constant 1.000000e+00 : f32
    %140 = vector.broadcast %cst_64 : f32 to vector<64x4xf32>
    %141 = arith.addf %140, %139 : vector<64x4xf32>
    %142 = arith.divf %140, %141 : vector<64x4xf32>
    %143 = arith.mulf %137, %142 : vector<64x4xf32>
    %c1_i32_65 = arith.constant 1 : i32
    %144 = tpu.dynamic_rotate %143 by %c1_i32_65 dim 0 : vector<64x4xf32>, i32 -> vector<64x4xf32>
    %c63_i32_66 = arith.constant 63 : i32
    %145 = tpu.dynamic_rotate %143 by %c63_i32_66 dim 0 : vector<64x4xf32>, i32 -> vector<64x4xf32>
    %cst_67 = arith.constant 7.500000e-01 : f32
    %146 = vector.broadcast %cst_67 : f32 to vector<64x4xf32>
    %147 = arith.mulf %146, %143 : vector<64x4xf32>
    %148 = vector.shape_cast %42 : vector<64x1xi1> to vector<64x1xi1>
    %149 = vector.broadcast %148 : vector<64x1xi1> to vector<64x4xi1>
    %150 = arith.select %149, %143, %144 : vector<64x4xi1>, vector<64x4xf32>
    %cst_68 = arith.constant 2.500000e-01 : f32
    %151 = vector.broadcast %cst_68 : f32 to vector<64x4xf32>
    %152 = arith.mulf %151, %150 : vector<64x4xf32>
    %153 = arith.addf %147, %152 : vector<64x4xf32>
    %cst_69 = arith.constant 7.500000e-01 : f32
    %154 = vector.broadcast %cst_69 : f32 to vector<64x4xf32>
    %155 = arith.mulf %154, %143 : vector<64x4xf32>
    %156 = vector.shape_cast %44 : vector<64x1xi1> to vector<64x1xi1>
    %157 = vector.broadcast %156 : vector<64x1xi1> to vector<64x4xi1>
    %158 = arith.select %157, %143, %145 : vector<64x4xi1>, vector<64x4xf32>
    %cst_70 = arith.constant 2.500000e-01 : f32
    %159 = vector.broadcast %cst_70 : f32 to vector<64x4xf32>
    %160 = arith.mulf %159, %158 : vector<64x4xf32>
    %161 = arith.addf %155, %160 : vector<64x4xf32>
    %c8_i32_71 = arith.constant 8 : i32
    %162 = tpu.dynamic_rotate %153 by %c8_i32_71 dim 0 : vector<64x4xf32>, i32 -> vector<64x4xf32>
    %163 = vector.shape_cast %46 : vector<64x1xi1> to vector<64x1xi1>
    %164 = vector.broadcast %163 : vector<64x1xi1> to vector<64x4xi1>
    %165 = arith.select %164, %153, %162 : vector<64x4xi1>, vector<64x4xf32>
    %c8_i32_72 = arith.constant 8 : i32
    %166 = tpu.dynamic_rotate %161 by %c8_i32_72 dim 0 : vector<64x4xf32>, i32 -> vector<64x4xf32>
    %167 = vector.shape_cast %46 : vector<64x1xi1> to vector<64x1xi1>
    %168 = vector.broadcast %167 : vector<64x1xi1> to vector<64x4xi1>
    %169 = arith.select %168, %161, %166 : vector<64x4xi1>, vector<64x4xf32>
    %c56_i32_73 = arith.constant 56 : i32
    %170 = tpu.dynamic_rotate %153 by %c56_i32_73 dim 0 : vector<64x4xf32>, i32 -> vector<64x4xf32>
    %171 = vector.shape_cast %48 : vector<64x1xi1> to vector<64x1xi1>
    %172 = vector.broadcast %171 : vector<64x1xi1> to vector<64x4xi1>
    %173 = arith.select %172, %153, %170 : vector<64x4xi1>, vector<64x4xf32>
    %c56_i32_74 = arith.constant 56 : i32
    %174 = tpu.dynamic_rotate %161 by %c56_i32_74 dim 0 : vector<64x4xf32>, i32 -> vector<64x4xf32>
    %175 = vector.shape_cast %48 : vector<64x1xi1> to vector<64x1xi1>
    %176 = vector.broadcast %175 : vector<64x1xi1> to vector<64x4xi1>
    %177 = arith.select %176, %161, %174 : vector<64x4xi1>, vector<64x4xf32>
    %cst_75 = arith.constant 7.500000e-01 : f32
    %178 = vector.broadcast %cst_75 : f32 to vector<64x4xf32>
    %179 = arith.mulf %178, %153 : vector<64x4xf32>
    %cst_76 = arith.constant 2.500000e-01 : f32
    %180 = vector.broadcast %cst_76 : f32 to vector<64x4xf32>
    %181 = arith.mulf %180, %165 : vector<64x4xf32>
    %182 = arith.addf %179, %181 : vector<64x4xf32>
    %183 = arith.truncf %182 : vector<64x4xf32> to vector<64x4xbf16>
    %c0_77 = arith.constant 0 : index
    %c0_78 = arith.constant 0 : index
    %c0_79 = arith.constant 0 : index
    %184 = vector.load %arg8[%c0_77, %c0_78, %c0_79] : memref<1x64x16xbf16, #tpu.memory_space<vmem>>, vector<1x64x4xbf16>
    %185 = vector.shape_cast %184 : vector<1x64x4xbf16> to vector<64x4xbf16>
    %186 = vector.shape_cast %183 : vector<64x4xbf16> to vector<1x64x4xbf16>
    tpu.vector_store %arg8[%c0_77, %c0_78, %c0_79], %186 {strides = array<i32>} : memref<1x64x16xbf16, #tpu.memory_space<vmem>>, vector<1x64x4xbf16>,
    %cst_80 = arith.constant 7.500000e-01 : f32
    %187 = vector.broadcast %cst_80 : f32 to vector<64x4xf32>
    %188 = arith.mulf %187, %161 : vector<64x4xf32>
    %cst_81 = arith.constant 2.500000e-01 : f32
    %189 = vector.broadcast %cst_81 : f32 to vector<64x4xf32>
    %190 = arith.mulf %189, %169 : vector<64x4xf32>
    %191 = arith.addf %188, %190 : vector<64x4xf32>
    %192 = arith.truncf %191 : vector<64x4xf32> to vector<64x4xbf16>
    %c0_82 = arith.constant 0 : index
    %c0_83 = arith.constant 0 : index
    %c4_84 = arith.constant 4 : index
    %193 = vector.load %arg8[%c0_82, %c0_83, %c4_84] : memref<1x64x16xbf16, #tpu.memory_space<vmem>>, vector<1x64x4xbf16>
    %194 = vector.shape_cast %193 : vector<1x64x4xbf16> to vector<64x4xbf16>
    %195 = vector.shape_cast %192 : vector<64x4xbf16> to vector<1x64x4xbf16>
    tpu.vector_store %arg8[%c0_82, %c0_83, %c4_84], %195 {strides = array<i32>} : memref<1x64x16xbf16, #tpu.memory_space<vmem>>, vector<1x64x4xbf16>,
    %cst_85 = arith.constant 7.500000e-01 : f32
    %196 = vector.broadcast %cst_85 : f32 to vector<64x4xf32>
    %197 = arith.mulf %196, %153 : vector<64x4xf32>
    %cst_86 = arith.constant 2.500000e-01 : f32
    %198 = vector.broadcast %cst_86 : f32 to vector<64x4xf32>
    %199 = arith.mulf %198, %173 : vector<64x4xf32>
    %200 = arith.addf %197, %199 : vector<64x4xf32>
    %201 = arith.truncf %200 : vector<64x4xf32> to vector<64x4xbf16>
    %c0_87 = arith.constant 0 : index
    %c0_88 = arith.constant 0 : index
    %c8_89 = arith.constant 8 : index
    %202 = vector.load %arg8[%c0_87, %c0_88, %c8_89] : memref<1x64x16xbf16, #tpu.memory_space<vmem>>, vector<1x64x4xbf16>
    %203 = vector.shape_cast %202 : vector<1x64x4xbf16> to vector<64x4xbf16>
    %204 = vector.shape_cast %201 : vector<64x4xbf16> to vector<1x64x4xbf16>
    tpu.vector_store %arg8[%c0_87, %c0_88, %c8_89], %204 {strides = array<i32>} : memref<1x64x16xbf16, #tpu.memory_space<vmem>>, vector<1x64x4xbf16>,
    %cst_90 = arith.constant 7.500000e-01 : f32
    %205 = vector.broadcast %cst_90 : f32 to vector<64x4xf32>
    %206 = arith.mulf %205, %161 : vector<64x4xf32>
    %cst_91 = arith.constant 2.500000e-01 : f32
    %207 = vector.broadcast %cst_91 : f32 to vector<64x4xf32>
    %208 = arith.mulf %207, %177 : vector<64x4xf32>
    %209 = arith.addf %206, %208 : vector<64x4xf32>
    %210 = arith.truncf %209 : vector<64x4xf32> to vector<64x4xbf16>
    %c0_92 = arith.constant 0 : index
    %c0_93 = arith.constant 0 : index
    %c12 = arith.constant 12 : index
    %211 = vector.load %arg8[%c0_92, %c0_93, %c12] : memref<1x64x16xbf16, #tpu.memory_space<vmem>>, vector<1x64x4xbf16>
    %212 = vector.shape_cast %211 : vector<1x64x4xbf16> to vector<64x4xbf16>
    %213 = vector.shape_cast %210 : vector<64x4xbf16> to vector<1x64x4xbf16>
    tpu.vector_store %arg8[%c0_92, %c0_93, %c12], %213 {strides = array<i32>} : memref<1x64x16xbf16, #tpu.memory_space<vmem>>, vector<1x64x4xbf16>,
    return
  }
  func.func @transform_0(%arg0: i32) -> (i32, i32, i32) {
    %c0_i32 = arith.constant 0 : i32
    %c0_i32_0 = arith.constant 0 : i32
    %c0_i32_1 = arith.constant 0 : i32
    return %arg0, %c0_i32, %c0_i32_0 : i32, i32, i32
  }
  func.func @transform_1(%arg0: i32) -> (i32, i32) {
    %c0_i32 = arith.constant 0 : i32
    %c0_i32_0 = arith.constant 0 : i32
    %c0_i32_1 = arith.constant 0 : i32
    return %c0_i32, %c0_i32_0 : i32, i32
  }
  func.func @transform_2(%arg0: i32) -> (i32, i32) {
    %c0_i32 = arith.constant 0 : i32
    %c0_i32_0 = arith.constant 0 : i32
    %c0_i32_1 = arith.constant 0 : i32
    return %c0_i32, %c0_i32_0 : i32, i32
  }
  func.func @transform_3(%arg0: i32) -> (i32, i32) {
    %c0_i32 = arith.constant 0 : i32
    %c0_i32_0 = arith.constant 0 : i32
    %c0_i32_1 = arith.constant 0 : i32
    return %c0_i32, %c0_i32_0 : i32, i32
  }
  func.func @transform_4(%arg0: i32) -> (i32, i32) {
    %c0_i32 = arith.constant 0 : i32
    %c0_i32_0 = arith.constant 0 : i32
    %c0_i32_1 = arith.constant 0 : i32
    return %c0_i32, %c0_i32_0 : i32, i32
  }
  func.func @transform_5(%arg0: i32) -> (i32, i32, i32) {
    %c0_i32 = arith.constant 0 : i32
    %c0_i32_0 = arith.constant 0 : i32
    %c0_i32_1 = arith.constant 0 : i32
    %c0_i32_2 = arith.constant 0 : i32
    return %c0_i32, %c0_i32_0, %c0_i32_1 : i32, i32, i32
  }
  func.func @transform_6(%arg0: i32) -> (i32, i32) {
    %c0_i32 = arith.constant 0 : i32
    %c0_i32_0 = arith.constant 0 : i32
    %c0_i32_1 = arith.constant 0 : i32
    return %c0_i32, %c0_i32_0 : i32, i32
  }
  func.func @transform_7(%arg0: i32) -> (i32, i32, i32) {
    %c0_i32 = arith.constant 0 : i32
    %c0_i32_0 = arith.constant 0 : i32
    %c0_i32_1 = arith.constant 0 : i32
    return %arg0, %c0_i32, %c0_i32_0 : i32, i32, i32
  }
}

module attributes {stable_mosaic.version = 11 : i64} {
  func.func @_cv2_kernel(%arg0: i32, %arg1: memref<512x4xbf16, #tpu.memory_space<vmem>>, %arg2: memref<512x4xbf16, #tpu.memory_space<vmem>>, %arg3: memref<4x4xbf16, #tpu.memory_space<vmem>>, %arg4: memref<4x4xbf16, #tpu.memory_space<vmem>>, %arg5: memref<1x4xf32, #tpu.memory_space<vmem>>, %arg6: memref<512x4xf32, #tpu.memory_space<vmem>>) attributes {dimension_semantics = [#tpu.dimension_semantics<parallel>], iteration_bounds = array<i64: 1>, scalar_prefetch = 0 : i64, scratch_operands = 0 : i64, tpu.core_type = #tpu.core_type<tc>, window_params = [{transform_indices = @transform_0, window_bounds = array<i64: 512, 4>}, {transform_indices = @transform_1, window_bounds = array<i64: 512, 4>}, {pipeline_mode = #tpu.pipeline_mode<synchronous>, transform_indices = @transform_2, window_bounds = array<i64: 4, 4>}, {pipeline_mode = #tpu.pipeline_mode<synchronous>, transform_indices = @transform_3, window_bounds = array<i64: 4, 4>}, {pipeline_mode = #tpu.pipeline_mode<synchronous>, transform_indices = @transform_4, window_bounds = array<i64: 1, 4>}, {transform_indices = @transform_5, window_bounds = array<i64: 512, 4>}]} {
    %c0 = arith.constant 0 : index
    %c0_0 = arith.constant 0 : index
    %0 = vector.load %arg1[%c0, %c0_0] : memref<512x4xbf16, #tpu.memory_space<vmem>>, vector<512x4xbf16>
    %c0_1 = arith.constant 0 : index
    %c0_2 = arith.constant 0 : index
    %1 = vector.load %arg3[%c0_1, %c0_2] : memref<4x4xbf16, #tpu.memory_space<vmem>>, vector<4x4xbf16>
    %cst = arith.constant dense<0.000000e+00> : vector<512x4xf32>
    %2 = tpu.matmul %0, %1, %cst {dimension_numbers = #tpu.dot_dimension_numbers<[1], [0], [0], [1], [0, 0, 1, 1], [], []>} : vector<512x4xbf16>, vector<4x4xbf16>, vector<512x4xf32> -> vector<512x4xf32>
    %c0_3 = arith.constant 0 : index
    %c0_4 = arith.constant 0 : index
    %3 = vector.load %arg2[%c0_3, %c0_4] : memref<512x4xbf16, #tpu.memory_space<vmem>>, vector<512x4xbf16>
    %c0_5 = arith.constant 0 : index
    %c0_6 = arith.constant 0 : index
    %4 = vector.load %arg4[%c0_5, %c0_6] : memref<4x4xbf16, #tpu.memory_space<vmem>>, vector<4x4xbf16>
    %cst_7 = arith.constant dense<0.000000e+00> : vector<512x4xf32>
    %5 = tpu.matmul %3, %4, %cst_7 {dimension_numbers = #tpu.dot_dimension_numbers<[1], [0], [0], [1], [0, 0, 1, 1], [], []>} : vector<512x4xbf16>, vector<4x4xbf16>, vector<512x4xf32> -> vector<512x4xf32>
    %6 = arith.addf %2, %5 : vector<512x4xf32>
    %c0_8 = arith.constant 0 : index
    %c0_9 = arith.constant 0 : index
    %7 = vector.load %arg5[%c0_8, %c0_9] : memref<1x4xf32, #tpu.memory_space<vmem>>, vector<1x4xf32>
    %8 = vector.broadcast %7 : vector<1x4xf32> to vector<512x4xf32>
    %9 = arith.addf %6, %8 : vector<512x4xf32>
    %10 = arith.negf %9 : vector<512x4xf32>
    %11 = math.exp %10 : vector<512x4xf32>
    %cst_10 = arith.constant 1.000000e+00 : f32
    %12 = vector.broadcast %cst_10 : f32 to vector<512x4xf32>
    %13 = arith.addf %12, %11 : vector<512x4xf32>
    %14 = arith.divf %12, %13 : vector<512x4xf32>
    %15 = arith.mulf %9, %14 : vector<512x4xf32>
    %c0_11 = arith.constant 0 : index
    %c0_12 = arith.constant 0 : index
    %16 = vector.load %arg6[%c0_11, %c0_12] : memref<512x4xf32, #tpu.memory_space<vmem>>, vector<512x4xf32>
    tpu.vector_store %arg6[%c0_11, %c0_12], %15 {strides = array<i32>} : memref<512x4xf32, #tpu.memory_space<vmem>>, vector<512x4xf32>,
    return
  }
  func.func @transform_0(%arg0: i32) -> (i32, i32) {
    %c0_i32 = arith.constant 0 : i32
    %c0_i32_0 = arith.constant 0 : i32
    return %arg0, %c0_i32 : i32, i32
  }
  func.func @transform_1(%arg0: i32) -> (i32, i32) {
    %c0_i32 = arith.constant 0 : i32
    %c0_i32_0 = arith.constant 0 : i32
    return %arg0, %c0_i32 : i32, i32
  }
  func.func @transform_2(%arg0: i32) -> (i32, i32) {
    %c0_i32 = arith.constant 0 : i32
    %c0_i32_0 = arith.constant 0 : i32
    %c0_i32_1 = arith.constant 0 : i32
    return %c0_i32, %c0_i32_0 : i32, i32
  }
  func.func @transform_3(%arg0: i32) -> (i32, i32) {
    %c0_i32 = arith.constant 0 : i32
    %c0_i32_0 = arith.constant 0 : i32
    %c0_i32_1 = arith.constant 0 : i32
    return %c0_i32, %c0_i32_0 : i32, i32
  }
  func.func @transform_4(%arg0: i32) -> (i32, i32) {
    %c0_i32 = arith.constant 0 : i32
    %c0_i32_0 = arith.constant 0 : i32
    %c0_i32_1 = arith.constant 0 : i32
    return %c0_i32, %c0_i32_0 : i32, i32
  }
  func.func @transform_5(%arg0: i32) -> (i32, i32) {
    %c0_i32 = arith.constant 0 : i32
    %c0_i32_0 = arith.constant 0 : i32
    return %arg0, %c0_i32 : i32, i32
  }
}

</mosaic_0001>

<llo_original>
// kernel: rfb_forward.2
$region0: #{rfb_forward.2}
  #allocation0 [shape = 'u32[]', space=smem, size = 0x4, offset = 0x4, fixed_abs, tag = 'smem constant byte address 0x4 - core index']
  #allocation1 [shape = 'u32[144,128]{1,0:T(1,128)}', space=vmem, size = 0x12000, scoped, tag = 'internal scratch']
  %s0 = inlined_call_operand.vmem [shape: bf16[2,64,8], index: 0, kind: input, shape index: {}]
  %s1 = inlined_call_operand.vmem [shape: bf16[8,2], index: 1, kind: input, shape index: {}]
  %s2 = inlined_call_operand.vmem [shape: f32[1,2], index: 2, kind: input, shape index: {}]
  %s3 = inlined_call_operand.vmem [shape: bf16[2,8], index: 3, kind: input, shape index: {}]
  %s4 = inlined_call_operand.vmem [shape: f32[1,8], index: 4, kind: input, shape index: {}]
  %s5 = inlined_call_operand.vmem [shape: bf16[9,8,4], index: 5, kind: input, shape index: {}]
  %s6 = inlined_call_operand.vmem [shape: f32[1,4], index: 6, kind: input, shape index: {}]
  %s7 = inlined_call_operand.vmem [shape: bf16[2,64,16], index: 7, kind: output, shape index: {}]
  %s8 = sld [smem:[#allocation0]]
  $region61: #{rfb_forward.2} parent=0
    _
  %s10 = ssub.s32 1, %s8
  %s11 = scalar_select 0, %s10, %s8
  loop: start=0, step=1, limit=4
  $region2: #{rfb_forward.2} parent=0 // loop_pre_header
    _
  $region3: #{rfb_forward.2} parent=0 // loop_header
    %s13 = sphi 0, %s17
    %p14 = scmp.ge.s32.totalorder %s13, 4
    %s23 = sphi 0, %s25
    %s26 = sphi 0, %s23
    %s27 = sphi 0, %s26
    %s43 = sphi 0, %s27
    %s47 = sphi 0, %s47
    %s49 = sphi 0, %s47
    %s50 = sphi 0, %s49
    %s64 = sphi 0, %s50
    %s68 = sphi 0, %s68
    %s70 = sphi 0, %s68
    %s71 = sphi 0, %s70
    %s85 = sphi 0, %s71
    %s89 = sphi 0, %s89
    %s91 = sphi 0, %s89
    %s92 = sphi 0, %s91
    %s106 = sphi 0, %s92
    %s110 = sphi 0, %s110
    %s112 = sphi 0, %s110
    %s113 = sphi 0, %s112
    %s127 = sphi 0, %s113
    %s131 = sphi 0, %s131
    %s133 = sphi 0, %s131
    %s134 = sphi 0, %s133
    %s148 = sphi 0, %s134
    %s152 = sphi 0, %s152
    %s154 = sphi 0, %s152
    %s155 = sphi 0, %s154
    %s169 = sphi 0, %s155
    %s175 = sphi 0, %s177
    %s178 = sphi 0, %s175
    %s179 = sphi 0, %s178
    %s195 = sphi 0, %s179
  $region4: #{rfb_forward.2} parent=0 // loop_header_branch
    %16 = sbr.rel (%p14) target = $region8
  $region5: #{rfb_forward.2} parent=0 // loop_body
    %s18 = ssub.s32 %s13, 1
    %s19 = ssub.s32 %s13, 2
    %s20 = sadd.s32 %s13, 1
    %s21 = ssub.s32 %s13, %s20
    %p22 = scmp.eq.s32.totalorder %s21, 0
    %s24 = sadd.s32 %s23, 1
    %s25 = scalar_select %p22, %s23, %s24
    %p28 = pneg %p22
    %p29 = scmp.eq.s32.totalorder %s13, 1
    %p30 = por %p28, %p29
    %p31 = scmp.ne.s32.totalorder %s23, %s26
    %p32 = scmp.eq.s32.totalorder %s13, 0
    %p33 = por %p31, %p32
    %p34 = scmp.ne.s32.totalorder %s23, %s26
    %p35 = scmp.eq.s32.totalorder %s18, 1
    %p36 = por %p34, %p35
    %p37 = scmp.ne.s32.totalorder %s26, %s27
    %p38 = scmp.eq.s32.totalorder %s18, 0
    %p39 = por %p37, %p38
    %p40 = scmp.ne.s32.totalorder %s26, %s27
    %p41 = scmp.eq.s32.totalorder %s19, 1
    %p42 = por %p40, %p41
    %p44 = scmp.ne.s32.totalorder %s27, %s43
    %p45 = scmp.eq.s32.totalorder %s19, 0
    %p46 = por %p44, %p45
    %s48 = sadd.s32 %s47, 1
    %p51 = scmp.eq.s32.totalorder %s13, 1
    %p52 = scmp.ne.s32.totalorder %s47, %s49
    %p53 = scmp.eq.s32.totalorder %s13, 0
    %p54 = por %p52, %p53
    %p55 = scmp.ne.s32.totalorder %s47, %s49
    %p56 = scmp.eq.s32.totalorder %s18, 1
    %p57 = por %p55, %p56
    %p58 = scmp.ne.s32.totalorder %s49, %s50
    %p59 = scmp.eq.s32.totalorder %s18, 0
    %p60 = por %p58, %p59
    %p61 = scmp.ne.s32.totalorder %s49, %s50
    %p62 = scmp.eq.s32.totalorder %s19, 1
    %p63 = por %p61, %p62
    %p65 = scmp.ne.s32.totalorder %s50, %s64
    %p66 = scmp.eq.s32.totalorder %s19, 0
    %p67 = por %p65, %p66
    %s69 = sadd.s32 %s68, 1
    %p72 = scmp.eq.s32.totalorder %s13, 1
    %p73 = scmp.ne.s32.totalorder %s68, %s70
    %p74 = scmp.eq.s32.totalorder %s13, 0
    %p75 = por %p73, %p74
    %p76 = scmp.ne.s32.totalorder %s68, %s70
    %p77 = scmp.eq.s32.totalorder %s18, 1
    %p78 = por %p76, %p77
    %p79 = scmp.ne.s32.totalorder %s70, %s71
    %p80 = scmp.eq.s32.totalorder %s18, 0
    %p81 = por %p79, %p80
    %p82 = scmp.ne.s32.totalorder %s70, %s71
    %p83 = scmp.eq.s32.totalorder %s19, 1
    %p84 = por %p82, %p83
    %p86 = scmp.ne.s32.totalorder %s71, %s85
    %p87 = scmp.eq.s32.totalorder %s19, 0
    %p88 = por %p86, %p87
    %s90 = sadd.s32 %s89, 1
    %p93 = scmp.eq.s32.totalorder %s13, 1
    %p94 = scmp.ne.s32.totalorder %s89, %s91
    %p95 = scmp.eq.s32.totalorder %s13, 0
    %p96 = por %p94, %p95
    %p97 = scmp.ne.s32.totalorder %s89, %s91
    %p98 = scmp.eq.s32.totalorder %s18, 1
    %p99 = por %p97, %p98
    %p100 = scmp.ne.s32.totalorder %s91, %s92
    %p101 = scmp.eq.s32.totalorder %s18, 0
    %p102 = por %p100, %p101
    %p103 = scmp.ne.s32.totalorder %s91, %s92
    %p104 = scmp.eq.s32.totalorder %s19, 1
    %p105 = por %p103, %p104
    %p107 = scmp.ne.s32.totalorder %s92, %s106
    %p108 = scmp.eq.s32.totalorder %s19, 0
    %p109 = por %p107, %p108
    %s111 = sadd.s32 %s110, 1
    %p114 = scmp.eq.s32.totalorder %s13, 1
    %p115 = scmp.ne.s32.totalorder %s110, %s112
    %p116 = scmp.eq.s32.totalorder %s13, 0
    %p117 = por %p115, %p116
    %p118 = scmp.ne.s32.totalorder %s110, %s112
    %p119 = scmp.eq.s32.totalorder %s18, 1
    %p120 = por %p118, %p119
    %p121 = scmp.ne.s32.totalorder %s112, %s113
    %p122 = scmp.eq.s32.totalorder %s18, 0
    %p123 = por %p121, %p122
    %p124 = scmp.ne.s32.totalorder %s112, %s113
    %p125 = scmp.eq.s32.totalorder %s19, 1
    %p126 = por %p124, %p125
    %p128 = scmp.ne.s32.totalorder %s113, %s127
    %p129 = scmp.eq.s32.totalorder %s19, 0
    %p130 = por %p128, %p129
    %s132 = sadd.s32 %s131, 1
    %p135 = scmp.eq.s32.totalorder %s13, 1
    %p136 = scmp.ne.s32.totalorder %s131, %s133
    %p137 = scmp.eq.s32.totalorder %s13, 0
    %p138 = por %p136, %p137
    %p139 = scmp.ne.s32.totalorder %s131, %s133
    %p140 = scmp.eq.s32.totalorder %s18, 1
    %p141 = por %p139, %p140
    %p142 = scmp.ne.s32.totalorder %s133, %s134
    %p143 = scmp.eq.s32.totalorder %s18, 0
    %p144 = por %p142, %p143
    %p145 = scmp.ne.s32.totalorder %s133, %s134
    %p146 = scmp.eq.s32.totalorder %s19, 1
    %p147 = por %p145, %p146
    %p149 = scmp.ne.s32.totalorder %s134, %s148
    %p150 = scmp.eq.s32.totalorder %s19, 0
    %p151 = por %p149, %p150
    %s153 = sadd.s32 %s152, 1
    %p156 = scmp.eq.s32.totalorder %s13, 1
    %p157 = scmp.ne.s32.totalorder %s152, %s154
    %p158 = scmp.eq.s32.totalorder %s13, 0
    %p159 = por %p157, %p158
    %p160 = scmp.ne.s32.totalorder %s152, %s154
    %p161 = scmp.eq.s32.totalorder %s18, 1
    %p162 = por %p160, %p161
    %p163 = scmp.ne.s32.totalorder %s154, %s155
    %p164 = scmp.eq.s32.totalorder %s18, 0
    %p165 = por %p163, %p164
    %p166 = scmp.ne.s32.totalorder %s154, %s155
    %p167 = scmp.eq.s32.totalorder %s19, 1
    %p168 = por %p166, %p167
    %p170 = scmp.ne.s32.totalorder %s155, %s169
    %p171 = scmp.eq.s32.totalorder %s19, 0
    %p172 = por %p170, %p171
    %s173 = ssub.s32 %s13, %s20
    %p174 = scmp.eq.s32.totalorder %s173, 0
    %s176 = sadd.s32 %s175, 1
    %s177 = scalar_select %p174, %s175, %s176
    %p180 = pneg %p174
    %p181 = scmp.eq.s32.totalorder %s13, 1
    %p182 = por %p180, %p181
    %p183 = scmp.ne.s32.totalorder %s175, %s178
    %p184 = scmp.eq.s32.totalorder %s13, 0
    %p185 = por %p183, %p184
    %p186 = scmp.ne.s32.totalorder %s175, %s178
    %p187 = scmp.eq.s32.totalorder %s18, 1
    %p188 = por %p186, %p187
    %p189 = scmp.ne.s32.totalorder %s178, %s179
    %p190 = scmp.eq.s32.totalorder %s18, 0
    %p191 = por %p189, %p190
    %p192 = scmp.ne.s32.totalorder %s178, %s179
    %p193 = scmp.eq.s32.totalorder %s19, 1
    %p194 = por %p192, %p193
    %p196 = scmp.ne.s32.totalorder %s179, %s195
    %p197 = scmp.eq.s32.totalorder %s19, 0
    %p198 = por %p196, %p197
    %p199 = scmp.le.s32.totalorder 1, %s13
    %p200 = scmp.lt.s32.totalorder %s13, 3
    %p201 = pnand %p199, %p200
    %p202 = pneg %p201
    // Predicated region
    $region9: #{rfb_forward.2} parent=5 // pred_check
      _
    $region10: #{rfb_forward.2} parent=5 // pred_check_branch
      %204 = sbr.rel (%p201) target = $region12
    $region11: #{rfb_forward.2} parent=5 // pred_region
      %s205 = ssub.s32 %s13, 1
      // Predicated region
      $region13: #{rfb_forward.2} parent=11 // pred_check
        %p206 = pneg %p60
      $region14: #{rfb_forward.2} parent=11 // pred_check_branch
        %208 = sbr.rel (%p206) target = $region16
      $region15: #{rfb_forward.2} parent=11 // pred_region
        _
      $region16: #{rfb_forward.2} parent=11 // pred_fallthru
        _
      // Predicated region
      $region17: #{rfb_forward.2} parent=11 // pred_check
        %p209 = pneg %p81
      $region18: #{rfb_forward.2} parent=11 // pred_check_branch
        %211 = sbr.rel (%p209) target = $region20
      $region19: #{rfb_forward.2} parent=11 // pred_region
        _
      $region20: #{rfb_forward.2} parent=11 // pred_fallthru
        _
      // Predicated region
      $region21: #{rfb_forward.2} parent=11 // pred_check
        %p212 = pneg %p102
      $region22: #{rfb_forward.2} parent=11 // pred_check_branch
        %214 = sbr.rel (%p212) target = $region24
      $region23: #{rfb_forward.2} parent=11 // pred_region
        _
      $region24: #{rfb_forward.2} parent=11 // pred_fallthru
        _
      // Predicated region
      $region25: #{rfb_forward.2} parent=11 // pred_check
        %p215 = pneg %p123
      $region26: #{rfb_forward.2} parent=11 // pred_check_branch
        %217 = sbr.rel (%p215) target = $region28
      $region27: #{rfb_forward.2} parent=11 // pred_region
        _
      $region28: #{rfb_forward.2} parent=11 // pred_fallthru
        _
      // Predicated region
      $region29: #{rfb_forward.2} parent=11 // pred_check
        %p218 = pneg %p144
      $region30: #{rfb_forward.2} parent=11 // pred_check_branch
        %220 = sbr.rel (%p218) target = $region32
      $region31: #{rfb_forward.2} parent=11 // pred_region
        _
      $region32: #{rfb_forward.2} parent=11 // pred_fallthru
        _
      // Predicated region
      $region33: #{rfb_forward.2} parent=11 // pred_check
        %p221 = pneg %p165
      $region34: #{rfb_forward.2} parent=11 // pred_check_branch
        %223 = sbr.rel (%p221) target = $region36
      $region35: #{rfb_forward.2} parent=11 // pred_region
        _
      $region36: #{rfb_forward.2} parent=11 // pred_fallthru
        _
    $region12: #{rfb_forward.2} parent=5 // pred_fallthru
      _
    %p224 = scmp.lt.s32.totalorder %s13, 2
    // Predicated region
    $region37: #{rfb_forward.2} parent=5 // pred_check
      %p225 = pneg %p224
    $region38: #{rfb_forward.2} parent=5 // pred_check_branch
      %227 = sbr.rel (%p225) target = $region40
    $region39: #{rfb_forward.2} parent=5 // pred_region
      // Predicated region
      $region41: #{rfb_forward.2} parent=39 // pred_check
        %p228 = pneg %p33
      $region42: #{rfb_forward.2} parent=39 // pred_check_branch
        %230 = sbr.rel (%p228) target = $region44
      $region43: #{rfb_forward.2} parent=39 // pred_region
        %p231 = scmp.lt.s32.totalorder %s13, 1
        %s232 = scalar_select %p231, %s13, 1
        %s233 = smul.addr %s232, 8
        %s234 = smul.addr %s233, 4
        %s235 = scalar_lea.vmem %s0, %s234
      $region44: #{rfb_forward.2} parent=39 // pred_fallthru
        _
    $region40: #{rfb_forward.2} parent=5 // pred_fallthru
      _
    %p236 = scmp.le.s32.totalorder 1, %s13
    %p237 = scmp.lt.s32.totalorder %s13, 3
    %p238 = pnand %p236, %p237
    %p239 = pneg %p238
    // Predicated region
    $region45: #{rfb_forward.2} parent=5 // pred_check
      _
    $region46: #{rfb_forward.2} parent=5 // pred_check_branch
      %241 = sbr.rel (%p238) target = $region48
    $region47: #{rfb_forward.2} parent=5 // pred_region
      %s242 = ssub.s32 %s13, 1
      %p243 = scmp.lt.s32.totalorder %s18, 1
      %s244 = scalar_select %p243, %s18, 1
      %s245 = smul.addr %s244, 8
      %s246 = smul.addr %s245, 4
      %s247 = scalar_lea.vmem %s0, %s246
      %p248 = pneg %p39
      %p249 = pneg %p36
      %p250 = pneg %p60
      %p251 = pneg %p57
      %p252 = pneg %p81
      %p253 = pneg %p78
      %p254 = pneg %p102
      %p255 = pneg %p99
      %p256 = pneg %p123
      %p257 = pneg %p120
      %p258 = pneg %p144
      %p259 = pneg %p141
      %p260 = pneg %p165
      %p261 = pneg %p162
      %p262 = pneg %p191
      %p263 = pneg %p188
      %p264 = scmp.lt.s32.totalorder %s18, 1
      %s265 = scalar_select %p264, %s18, 1
      %s266 = smul.addr %s265, 8
      %s267 = smul.addr %s266, 4
      %s268 = scalar_lea.vmem %s7, %s267
      %p269 = scmp.lt.s32.totalorder %s18, 1
      %s270 = scalar_select %p269, %s18, 1
      %s271 = smul.addr %s270, 8
      %s272 = smul.addr %s271, 4
      %s273 = scalar_lea.vmem %s0, %s272
      %p274 = scmp.lt.s32.totalorder %s18, 1
      %s275 = scalar_select %p274, %s18, 1
      %s276 = smul.addr %s275, 8
      %s277 = smul.addr %s276, 4
      %s278 = scalar_lea.vmem %s7, %s277
      %v280 = vld [vmem:[%s273] sm:$0xf]
      %v281 = vld [vmem:[%s273 + $0x4] sm:$0xf]
      %v282 = vld [vmem:[%s273 + $0x8] sm:$0xf]
      %v283 = vld [vmem:[%s273 + $0xc] sm:$0xf]
      %v284 = vld [vmem:[%s273 + $0x10] sm:$0xf]
      %v285 = vld [vmem:[%s273 + $0x14] sm:$0xf]
      %v286 = vld [vmem:[%s273 + $0x18] sm:$0xf]
      %v287 = vld [vmem:[%s273 + $0x1c] sm:$0xf]
      %v288 = vld [vmem:[%s1] sm:$0xf]
      %v289 = vld [vmem:[%s2] sm:$0x1]
      %v291 = vlaneseq
      %v292 = vshrl.u32 %v291, 7
      %v293 = vsub.s32 0, %v292
      %v294 = vrot.slane %v289, %v293
      %v304 = vunpack.c.l.b16 %v280
      %v305 = vunpack.c.l.b16 %v281
      %v306 = vunpack.c.l.b16 %v282
      %v307 = vunpack.c.l.b16 %v283
      %v308 = vunpack.c.l.b16 %v284
      %v309 = vunpack.c.l.b16 %v285
      %v310 = vunpack.c.l.b16 %v286
      %v311 = vunpack.c.l.b16 %v287
      %v312 = vpack.c.b16 %v305, %v304
      %v313 = vpack.c.b16 %v307, %v306
      %v314 = vpack.c.b16 %v309, %v308
      %v315 = vpack.c.b16 %v311, %v310
      %vm316 = vcmask 64512
      %v318 = vsel %vm316, %v312, 0
      %v321 = vsel %vm316, %v313, 0
      %v324 = vsel %vm316, %v314, 0
      %v327 = vsel %vm316, %v315, 0
      %vm329 = vcmask 1043456
      %v331 = vsel %vm329, %v288, 0
      %333 = vmatprep.subr.bf16.mxu0 0
      %334 = vmatpush1.bf16.msra.mxu0 %v331
      %335 = vmatprep.subr.bf16.mxu0 0
      %336 = vmatpush1.bf16.msra.mxu0 0
      %337 = vmatprep.subr.bf16.mxu0 0
      %338 = vmatpush1.bf16.msra.mxu0 0
      %339 = vmatprep.subr.bf16.mxu0 0
      %340 = vmatpush1.bf16.msra.mxu0 0
      %341 = vmatprep.subr.bf16.mxu0 0
      %342 = vmatpush1.bf16.msra.mxu0 0
      %343 = vmatprep.subr.bf16.mxu0 0
      %344 = vmatpush1.bf16.msra.mxu0 0
      %345 = vmatprep.subr.bf16.mxu0 0
      %346 = vmatpush1.bf16.msra.mxu0 0
      %347 = vmatprep.subr.bf16.mxu0 0
      %348 = vmatpush1.bf16.msra.mxu0 0
      %349 = vmatprep.subr.bf16.mxu0 0
      %350 = vmatpush1.bf16.msra.mxu0 0
      %351 = vmatprep.subr.bf16.mxu0 0
      %352 = vmatpush1.bf16.msra.mxu0 0
      %353 = vmatprep.subr.bf16.mxu0 0
      %354 = vmatpush1.bf16.msra.mxu0 0
      %355 = vmatprep.subr.bf16.mxu0 0
      %356 = vmatpush1.bf16.msra.mxu0 0
      %357 = vmatprep.subr.bf16.mxu0 0
      %358 = vmatpush1.bf16.msra.mxu0 0
      %359 = vmatprep.subr.bf16.mxu0 0
      %360 = vmatpush1.bf16.msra.mxu0 0
      %361 = vmatprep.subr.bf16.mxu0 0
      %362 = vmatpush1.bf16.msra.mxu0 0
      %363 = vmatprep.subr.bf16.mxu0 0
      %364 = vmatpush1.bf16.msra.mxu0 0
      %365 = vmatprep.mubr.bf16.mxu0 0
      %366 = vmatmul.mubr.bf16.gmra.mrb[0].mxu0 %v318
      %v367 = vpop.f32.mrb[0].mxu0
      %v368 = vadd.f32 %v294, %v367
      %v369 = vpop.f32.mrb[0].mxu0
      %v370 = vpop.f32.mrb[0].mxu0
      %v371 = vadd.f32 %v294, %v370
      %v372 = vpop.f32.mrb[0].mxu0
      %373 = vmatprep.mubr.bf16.mxu0 0
      %374 = vmatmul.mubr.bf16.gmra.mrb[0].mxu0 %v321
      %v375 = vpop.f32.mrb[0].mxu0
      %v376 = vadd.f32 %v294, %v375
      %v377 = vpop.f32.mrb[0].mxu0
      %v378 = vpop.f32.mrb[0].mxu0
      %v379 = vadd.f32 %v294, %v378
      %v380 = vpop.f32.mrb[0].mxu0
      %381 = vmatprep.mubr.bf16.mxu0 0
      %382 = vmatmul.mubr.bf16.gmra.mrb[0].mxu0 %v324
      %v383 = vpop.f32.mrb[0].mxu0
      %v384 = vadd.f32 %v294, %v383
      %v385 = vpop.f32.mrb[0].mxu0
      %v386 = vpop.f32.mrb[0].mxu0
      %v387 = vadd.f32 %v294, %v386
      %v388 = vpop.f32.mrb[0].mxu0
      %389 = vmatprep.mubr.bf16.mxu0 0
      %390 = vmatmul.mubr.bf16.gmra.mrb[0].mxu0 %v327
      %v391 = vpop.f32.mrb[0].mxu0
      %v392 = vadd.f32 %v294, %v391
      %v393 = vpop.f32.mrb[0].mxu0
      %v394 = vpop.f32.mrb[0].mxu0
      %v395 = vadd.f32 %v294, %v394
      %v396 = vpop.f32.mrb[0].mxu0
      %397 = vdwg.mxu0
      %v398 = vxor.u32 %v368, 2147483648
      %v399 = vxor.u32 %v371, 2147483648
      %v400 = vxor.u32 %v376, 2147483648
      %v401 = vxor.u32 %v379, 2147483648
      %v402 = vxor.u32 %v384, 2147483648
      %v403 = vxor.u32 %v387, 2147483648
      %v404 = vxor.u32 %v392, 2147483648
      %v405 = vxor.u32 %v395, 2147483648
      %v406 = vmul.f32 %v398, 1.442695
      %v407 = vpow.pop %v406
      %v408 = vmul.f32 %v399, 1.442695
      %v409 = vpow.pop %v408
      %v410 = vmul.f32 %v400, 1.442695
      %v411 = vpow.pop %v410
      %v412 = vmul.f32 %v401, 1.442695
      %v413 = vpow.pop %v412
      %v414 = vmul.f32 %v402, 1.442695
      %v415 = vpow.pop %v414
      %v416 = vmul.f32 %v403, 1.442695
      %v417 = vpow.pop %v416
      %v418 = vmul.f32 %v404, 1.442695
      %v419 = vpow.pop %v418
      %v420 = vmul.f32 %v405, 1.442695
      %v421 = vpow.pop %v420
      %v422 = vadd.f32 %v407, 1.0
      %v423 = vadd.f32 %v409, 1.0
      %v424 = vadd.f32 %v411, 1.0
      %v425 = vadd.f32 %v413, 1.0
      %v426 = vadd.f32 %v415, 1.0
      %v427 = vadd.f32 %v417, 1.0
      %v428 = vadd.f32 %v419, 1.0
      %v429 = vadd.f32 %v421, 1.0
      %v430 = vrcp.pop %v422
      %v431 = vmul.f32 1.0, %v430
      %v432 = vrcp.pop %v423
      %v433 = vmul.f32 1.0, %v432
      %v434 = vrcp.pop %v424
      %v435 = vmul.f32 1.0, %v434
      %v436 = vrcp.pop %v425
      %v437 = vmul.f32 1.0, %v436
      %v438 = vrcp.pop %v426
      %v439 = vmul.f32 1.0, %v438
      %v440 = vrcp.pop %v427
      %v441 = vmul.f32 1.0, %v440
      %v442 = vrcp.pop %v428
      %v443 = vmul.f32 1.0, %v442
      %v444 = vrcp.pop %v429
      %v445 = vmul.f32 1.0, %v444
      %v446 = vmul.f32 %v368, %v431
      %v447 = vmul.f32 %v371, %v433
      %v448 = vmul.f32 %v376, %v435
      %v449 = vmul.f32 %v379, %v437
      %v450 = vmul.f32 %v384, %v439
      %v451 = vmul.f32 %v387, %v441
      %v452 = vmul.f32 %v392, %v443
      %v453 = vmul.f32 %v395, %v445
      %v454 = vpack.c.bf16 %v447, %v446
      %v455 = vpack.c.bf16 %v449, %v448
      %v456 = vpack.c.bf16 %v451, %v450
      %v457 = vpack.c.bf16 %v453, %v452
      %v458 = vld [vmem:[%s3] sm:$0x1]
      %v459 = vld [vmem:[%s4] sm:$0x1]
      %v461 = vlaneseq
      %v462 = vshrl.u32 %v461, 7
      %v463 = vsub.s32 0, %v462
      %v464 = vrot.slane %v459, %v463
      %vm466 = vcmask 15360
      %v468 = vsel %vm466, %v454, 0
      %v471 = vsel %vm466, %v455, 0
      %v474 = vsel %vm466, %v456, 0
      %v477 = vsel %vm466, %v457, 0
      %vm479 = vcmask 1040384
      %v481 = vsel %vm479, %v458, 0
      %483 = vmatprep.subr.bf16.mxu0 0
      %484 = vmatpush1.bf16.msra.mxu0 %v481
      %485 = vmatprep.subr.bf16.mxu0 0
      %486 = vmatpush1.bf16.msra.mxu0 0
      %487 = vmatprep.subr.bf16.mxu0 0
      %488 = vmatpush1.bf16.msra.mxu0 0
      %489 = vmatprep.subr.bf16.mxu0 0
      %490 = vmatpush1.bf16.msra.mxu0 0
      %491 = vmatprep.subr.bf16.mxu0 0
      %492 = vmatpush1.bf16.msra.mxu0 0
      %493 = vmatprep.subr.bf16.mxu0 0
      %494 = vmatpush1.bf16.msra.mxu0 0
      %495 = vmatprep.subr.bf16.mxu0 0
      %496 = vmatpush1.bf16.msra.mxu0 0
      %497 = vmatprep.subr.bf16.mxu0 0
      %498 = vmatpush1.bf16.msra.mxu0 0
      %499 = vmatprep.subr.bf16.mxu0 0
      %500 = vmatpush1.bf16.msra.mxu0 0
      %501 = vmatprep.subr.bf16.mxu0 0
      %502 = vmatpush1.bf16.msra.mxu0 0
      %503 = vmatprep.subr.bf16.mxu0 0
      %504 = vmatpush1.bf16.msra.mxu0 0
      %505 = vmatprep.subr.bf16.mxu0 0
      %506 = vmatpush1.bf16.msra.mxu0 0
      %507 = vmatprep.subr.bf16.mxu0 0
      %508 = vmatpush1.bf16.msra.mxu0 0
      %509 = vmatprep.subr.bf16.mxu0 0
      %510 = vmatpush1.bf16.msra.mxu0 0
      %511 = vmatprep.subr.bf16.mxu0 0
      %512 = vmatpush1.bf16.msra.mxu0 0
      %513 = vmatprep.subr.bf16.mxu0 0
      %514 = vmatpush1.bf16.msra.mxu0 0
      %515 = vmatprep.mubr.bf16.mxu0 0
      %516 = vmatmul.mubr.bf16.gmra.mrb[0].mxu0 %v468
      %v517 = vpop.f32.mrb[0].mxu0
      %v518 = vadd.f32 %v464, %v517
      %v519 = vpop.f32.mrb[0].mxu0
      %v520 = vpop.f32.mrb[0].mxu0
      %v521 = vadd.f32 %v464, %v520
      %v522 = vpop.f32.mrb[0].mxu0
      %523 = vmatprep.mubr.bf16.mxu0 0
      %524 = vmatmul.mubr.bf16.gmra.mrb[0].mxu0 %v471
      %v525 = vpop.f32.mrb[0].mxu0
      %v526 = vadd.f32 %v464, %v525
      %v527 = vpop.f32.mrb[0].mxu0
      %v528 = vpop.f32.mrb[0].mxu0
      %v529 = vadd.f32 %v464, %v528
      %v530 = vpop.f32.mrb[0].mxu0
      %531 = vmatprep.mubr.bf16.mxu0 0
      %532 = vmatmul.mubr.bf16.gmra.mrb[0].mxu0 %v474
      %v533 = vpop.f32.mrb[0].mxu0
      %v534 = vadd.f32 %v464, %v533
      %v535 = vpop.f32.mrb[0].mxu0
      %v536 = vpop.f32.mrb[0].mxu0
      %v537 = vadd.f32 %v464, %v536
      %v538 = vpop.f32.mrb[0].mxu0
      %539 = vmatprep.mubr.bf16.mxu0 0
      %540 = vmatmul.mubr.bf16.gmra.mrb[0].mxu0 %v477
      %v541 = vpop.f32.mrb[0].mxu0
      %v542 = vadd.f32 %v464, %v541
      %v543 = vpop.f32.mrb[0].mxu0
      %v544 = vpop.f32.mrb[0].mxu0
      %v545 = vadd.f32 %v464, %v544
      %v546 = vpop.f32.mrb[0].mxu0
      %547 = vdwg.mxu0
      %v548 = vxor.u32 %v518, 2147483648
      %v549 = vxor.u32 %v521, 2147483648
      %v550 = vxor.u32 %v526, 2147483648
      %v551 = vxor.u32 %v529, 2147483648
      %v552 = vxor.u32 %v534, 2147483648
      %v553 = vxor.u32 %v537, 2147483648
      %v554 = vxor.u32 %v542, 2147483648
      %v555 = vxor.u32 %v545, 2147483648
      %v556 = vmul.f32 %v548, 1.442695
      %v557 = vpow.pop %v556
      %v558 = vmul.f32 %v549, 1.442695
      %v559 = vpow.pop %v558
      %v560 = vmul.f32 %v550, 1.442695
      %v561 = vpow.pop %v560
      %v562 = vmul.f32 %v551, 1.442695
      %v563 = vpow.pop %v562
      %v564 = vmul.f32 %v552, 1.442695
      %v565 = vpow.pop %v564
      %v566 = vmul.f32 %v553, 1.442695
      %v567 = vpow.pop %v566
      %v568 = vmul.f32 %v554, 1.442695
      %v569 = vpow.pop %v568
      %v570 = vmul.f32 %v555, 1.442695
      %v571 = vpow.pop %v570
      %v572 = vadd.f32 %v557, 1.0
      %v573 = vadd.f32 %v559, 1.0
      %v574 = vadd.f32 %v561, 1.0
      %v575 = vadd.f32 %v563, 1.0
      %v576 = vadd.f32 %v565, 1.0
      %v577 = vadd.f32 %v567, 1.0
      %v578 = vadd.f32 %v569, 1.0
      %v579 = vadd.f32 %v571, 1.0
      %v580 = vrcp.pop %v572
      %v581 = vmul.f32 1.0, %v580
      %v582 = vrcp.pop %v573
      %v583 = vmul.f32 1.0, %v582
      %v584 = vrcp.pop %v574
      %v585 = vmul.f32 1.0, %v584
      %v586 = vrcp.pop %v575
      %v587 = vmul.f32 1.0, %v586
      %v588 = vrcp.pop %v576
      %v589 = vmul.f32 1.0, %v588
      %v590 = vrcp.pop %v577
      %v591 = vmul.f32 1.0, %v590
      %v592 = vrcp.pop %v578
      %v593 = vmul.f32 1.0, %v592
      %v594 = vrcp.pop %v579
      %v595 = vmul.f32 1.0, %v594
      %v596 = vlaneseq
      %v597 = vshrl.u32 %v596, 7
      %v598 = vadd.s32 %v597, 8
      %v599 = vadd.s32 %v597, 16
      %v600 = vadd.s32 %v597, 24
      %v601 = vadd.s32 %v597, 32
      %v602 = vadd.s32 %v597, 40
      %v603 = vadd.s32 %v597, 48
      %v604 = vadd.s32 %v597, 56
      %vm605 = vcmp.lt.s32.totalorder %v597, 0
      %v606 = vsub.s32 0, %v597
      %v607 = vsel %vm605, %v606, %v597
      %v608 = vshrl.u32 %v607, 3
      %v609 = vand.u32 %v607, 7
      %v610 = vsub.s32 0, %v609
      %v611 = vsel %vm605, %v610, %v609
      %vm612 = vcmp.lt.s32.totalorder %v598, 0
      %v613 = vsub.s32 0, %v598
      %v614 = vsel %vm612, %v613, %v598
      %v615 = vshrl.u32 %v614, 3
      %v616 = vand.u32 %v614, 7
      %v617 = vsub.s32 0, %v616
      %v618 = vsel %vm612, %v617, %v616
      %vm619 = vcmp.lt.s32.totalorder %v599, 0
      %v620 = vsub.s32 0, %v599
      %v621 = vsel %vm619, %v620, %v599
      %v622 = vshrl.u32 %v621, 3
      %v623 = vand.u32 %v621, 7
      %v624 = vsub.s32 0, %v623
      %v625 = vsel %vm619, %v624, %v623
      %vm626 = vcmp.lt.s32.totalorder %v600, 0
      %v627 = vsub.s32 0, %v600
      %v628 = vsel %vm626, %v627, %v600
      %v629 = vshrl.u32 %v628, 3
      %v630 = vand.u32 %v628, 7
      %v631 = vsub.s32 0, %v630
      %v632 = vsel %vm626, %v631, %v630
      %vm633 = vcmp.lt.s32.totalorder %v601, 0
      %v634 = vsub.s32 0, %v601
      %v635 = vsel %vm633, %v634, %v601
      %v636 = vshrl.u32 %v635, 3
      %v637 = vand.u32 %v635, 7
      %v638 = vsub.s32 0, %v637
      %v639 = vsel %vm633, %v638, %v637
      %vm640 = vcmp.lt.s32.totalorder %v602, 0
      %v641 = vsub.s32 0, %v602
      %v642 = vsel %vm640, %v641, %v602
      %v643 = vshrl.u32 %v642, 3
      %v644 = vand.u32 %v642, 7
      %v645 = vsub.s32 0, %v644
      %v646 = vsel %vm640, %v645, %v644
      %vm647 = vcmp.lt.s32.totalorder %v603, 0
      %v648 = vsub.s32 0, %v603
      %v649 = vsel %vm647, %v648, %v603
      %v650 = vshrl.u32 %v649, 3
      %v651 = vand.u32 %v649, 7
      %v652 = vsub.s32 0, %v651
      %v653 = vsel %vm647, %v652, %v651
      %vm654 = vcmp.lt.s32.totalorder %v604, 0
      %v655 = vsub.s32 0, %v604
      %v656 = vsel %vm654, %v655, %v604
      %v657 = vshrl.u32 %v656, 3
      %v658 = vand.u32 %v656, 7
      %v659 = vsub.s32 0, %v658
      %v660 = vsel %vm654, %v659, %v658
      %vm661 = vcmp.ne.s32.totalorder %v611, 0
      %vm662 = vcmp.ne.s32.totalorder %v618, 0
      %vm663 = vcmp.ne.s32.totalorder %v625, 0
      %vm664 = vcmp.ne.s32.totalorder %v632, 0
      %vm665 = vcmp.ne.s32.totalorder %v639, 0
      %vm666 = vcmp.ne.s32.totalorder %v646, 0
      %vm667 = vcmp.ne.s32.totalorder %v653, 0
      %vm668 = vcmp.ne.s32.totalorder %v660, 0
      %vm669 = vcmp.lt.s32.totalorder %v611, 0
      %vm670 = vcmp.lt.s32.totalorder %v618, 0
      %vm671 = vcmp.lt.s32.totalorder %v625, 0
      %vm672 = vcmp.lt.s32.totalorder %v632, 0
      %vm673 = vcmp.lt.s32.totalorder %v639, 0
      %vm674 = vcmp.lt.s32.totalorder %v646, 0
      %vm675 = vcmp.lt.s32.totalorder %v653, 0
      %vm676 = vcmp.lt.s32.totalorder %v660, 0
      %vm677 = vmand %vm669, %vm661
      %vm678 = vmand %vm670, %vm662
      %vm679 = vmand %vm671, %vm663
      %vm680 = vmand %vm672, %vm664
      %vm681 = vmand %vm673, %vm665
      %vm682 = vmand %vm674, %vm666
      %vm683 = vmand %vm675, %vm667
      %vm684 = vmand %vm676, %vm668
      %v685 = vadd.s32 %v611, 8
      %v686 = vadd.s32 %v618, 8
      %v687 = vadd.s32 %v625, 8
      %v688 = vadd.s32 %v632, 8
      %v689 = vadd.s32 %v639, 8
      %v690 = vadd.s32 %v646, 8
      %v691 = vadd.s32 %v653, 8
      %v692 = vadd.s32 %v660, 8
      %v693 = vsel %vm677, %v685, %v611
      %v694 = vsel %vm678, %v686, %v618
      %v695 = vsel %vm679, %v687, %v625
      %v696 = vsel %vm680, %v688, %v632
      %v697 = vsel %vm681, %v689, %v639
      %v698 = vsel %vm682, %v690, %v646
      %v699 = vsel %vm683, %v691, %v653
      %v700 = vsel %vm684, %v692, %v660
      %vm701 = vcmp.eq.s32.totalorder %v693, 0
      %vm702 = vcmp.eq.s32.totalorder %v694, 0
      %vm703 = vcmp.eq.s32.totalorder %v695, 0
      %vm704 = vcmp.eq.s32.totalorder %v696, 0
      %vm705 = vcmp.eq.s32.totalorder %v697, 0
      %vm706 = vcmp.eq.s32.totalorder %v698, 0
      %vm707 = vcmp.eq.s32.totalorder %v699, 0
      %vm708 = vcmp.eq.s32.totalorder %v700, 0
      %vm709 = vcmp.eq.s32.totalorder %v693, 7
      %vm710 = vcmp.eq.s32.totalorder %v694, 7
      %vm711 = vcmp.eq.s32.totalorder %v695, 7
      %vm712 = vcmp.eq.s32.totalorder %v696, 7
      %vm713 = vcmp.eq.s32.totalorder %v697, 7
      %vm714 = vcmp.eq.s32.totalorder %v698, 7
      %vm715 = vcmp.eq.s32.totalorder %v699, 7
      %vm716 = vcmp.eq.s32.totalorder %v700, 7
      %vm717 = vcmp.lt.s32.totalorder %v597, 8
      %vm718 = vcmp.lt.s32.totalorder %v598, 8
      %vm719 = vcmp.lt.s32.totalorder %v599, 8
      %vm720 = vcmp.lt.s32.totalorder %v600, 8
      %vm721 = vcmp.lt.s32.totalorder %v601, 8
      %vm722 = vcmp.lt.s32.totalorder %v602, 8
      %vm723 = vcmp.lt.s32.totalorder %v603, 8
      %vm724 = vcmp.lt.s32.totalorder %v604, 8
      %vm725 = vcmp.ge.s32.totalorder %v597, 56
      %vm726 = vcmp.ge.s32.totalorder %v598, 56
      %vm727 = vcmp.ge.s32.totalorder %v599, 56
      %vm728 = vcmp.ge.s32.totalorder %v600, 56
      %vm729 = vcmp.ge.s32.totalorder %v601, 56
      %vm730 = vcmp.ge.s32.totalorder %v602, 56
      %vm731 = vcmp.ge.s32.totalorder %v603, 56
      %vm732 = vcmp.ge.s32.totalorder %v604, 56
      %v733 = vsel %vm717, 1, 0
      %v734 = vsel %vm718, 1, 0
      %v735 = vsel %vm719, 1, 0
      %v736 = vsel %vm720, 1, 0
      %v737 = vsel %vm721, 1, 0
      %v738 = vsel %vm722, 1, 0
      %v739 = vsel %vm723, 1, 0
      %v740 = vsel %vm724, 1, 0
      %vm741 = vcmp.eq.s32.totalorder %v733, 1
      %vm742 = vcmp.eq.s32.totalorder %v734, 1
      %vm743 = vcmp.eq.s32.totalorder %v735, 1
      %vm744 = vcmp.eq.s32.totalorder %v736, 1
      %vm745 = vcmp.eq.s32.totalorder %v737, 1
      %vm746 = vcmp.eq.s32.totalorder %v738, 1
      %vm747 = vcmp.eq.s32.totalorder %v739, 1
      %vm748 = vcmp.eq.s32.totalorder %v740, 1
      %v749 = vsel %vm741, 0.0, %v595
      %v750 = vsel %vm742, 0.0, %v581
      %v751 = vsel %vm743, 0.0, %v583
      %v752 = vsel %vm744, 0.0, %v585
      %v753 = vsel %vm745, 0.0, %v587
      %v754 = vsel %vm746, 0.0, %v589
      %v755 = vsel %vm747, 0.0, %v591
      %v756 = vsel %vm748, 0.0, %v593
      %v757 = vsel %vm725, 1, 0
      %v758 = vsel %vm726, 1, 0
      %v759 = vsel %vm727, 1, 0
      %v760 = vsel %vm728, 1, 0
      %v761 = vsel %vm729, 1, 0
      %v762 = vsel %vm730, 1, 0
      %v763 = vsel %vm731, 1, 0
      %v764 = vsel %vm732, 1, 0
      %vm765 = vcmp.eq.s32.totalorder %v757, 1
      %vm766 = vcmp.eq.s32.totalorder %v758, 1
      %vm767 = vcmp.eq.s32.totalorder %v759, 1
      %vm768 = vcmp.eq.s32.totalorder %v760, 1
      %vm769 = vcmp.eq.s32.totalorder %v761, 1
      %vm770 = vcmp.eq.s32.totalorder %v762, 1
      %vm771 = vcmp.eq.s32.totalorder %v763, 1
      %vm772 = vcmp.eq.s32.totalorder %v764, 1
      %v773 = vsel %vm765, 0.0, %v583
      %v774 = vsel %vm766, 0.0, %v585
      %v775 = vsel %vm767, 0.0, %v587
      %v776 = vsel %vm768, 0.0, %v589
      %v777 = vsel %vm769, 0.0, %v591
      %v778 = vsel %vm770, 0.0, %v593
      %v779 = vsel %vm771, 0.0, %v595
      %v780 = vsel %vm772, 0.0, %v581
      %v781 = vrot.slane %v749, 7
      %v782 = vrot.slane %v750, 7
      %v783 = vrot.slane %v751, 7
      %v784 = vrot.slane %v752, 7
      %v785 = vrot.slane %v753, 7
      %v786 = vrot.slane %v754, 7
      %v787 = vrot.slane %v755, 7
      %v788 = vrot.slane %v756, 7
      %vm789 = vcmp.lt.s32.totalorder %v597, 1
      %v790 = vsel %vm789, %v787, %v788
      %v791 = vsel %vm789, %v786, %v787
      %v792 = vsel %vm789, %v785, %v786
      %v793 = vsel %vm789, %v784, %v785
      %v794 = vsel %vm789, %v783, %v784
      %v795 = vsel %vm789, %v782, %v783
      %v796 = vsel %vm789, %v781, %v782
      %v797 = vsel %vm789, %v788, %v781
      %v798 = vsel %vm701, 1, 0
      %v799 = vsel %vm702, 1, 0
      %v800 = vsel %vm703, 1, 0
      %v801 = vsel %vm704, 1, 0
      %v802 = vsel %vm705, 1, 0
      %v803 = vsel %vm706, 1, 0
      %v804 = vsel %vm707, 1, 0
      %v805 = vsel %vm708, 1, 0
      %vm806 = vcmp.eq.s32.totalorder %v798, 1
      %vm807 = vcmp.eq.s32.totalorder %v799, 1
      %vm808 = vcmp.eq.s32.totalorder %v800, 1
      %vm809 = vcmp.eq.s32.totalorder %v801, 1
      %vm810 = vcmp.eq.s32.totalorder %v802, 1
      %vm811 = vcmp.eq.s32.totalorder %v803, 1
      %vm812 = vcmp.eq.s32.totalorder %v804, 1
      %vm813 = vcmp.eq.s32.totalorder %v805, 1
      %v814 = vsel %vm806, 0.0, %v797
      %v815 = vsel %vm807, 0.0, %v796
      %v816 = vsel %vm808, 0.0, %v795
      %v817 = vsel %vm809, 0.0, %v794
      %v818 = vsel %vm810, 0.0, %v793
      %v819 = vsel %vm811, 0.0, %v792
      %v820 = vsel %vm812, 0.0, %v791
      %v821 = vsel %vm813, 0.0, %v790
      %v822 = vrot.slane %v749, 1
      %v823 = vrot.slane %v750, 1
      %v824 = vrot.slane %v751, 1
      %v825 = vrot.slane %v752, 1
      %v826 = vrot.slane %v753, 1
      %v827 = vrot.slane %v754, 1
      %v828 = vrot.slane %v755, 1
      %v829 = vrot.slane %v756, 1
      %vm830 = vcmp.lt.s32.totalorder %v597, 7
      %v831 = vsel %vm830, %v828, %v829
      %v832 = vsel %vm830, %v827, %v828
      %v833 = vsel %vm830, %v826, %v827
      %v834 = vsel %vm830, %v825, %v826
      %v835 = vsel %vm830, %v824, %v825
      %v836 = vsel %vm830, %v823, %v824
      %v837 = vsel %vm830, %v822, %v823
      %v838 = vsel %vm830, %v829, %v822
      %v839 = vsel %vm709, 1, 0
      %v840 = vsel %vm710, 1, 0
      %v841 = vsel %vm711, 1, 0
      %v842 = vsel %vm712, 1, 0
      %v843 = vsel %vm713, 1, 0
      %v844 = vsel %vm714, 1, 0
      %v845 = vsel %vm715, 1, 0
      %v846 = vsel %vm716, 1, 0
      %vm847 = vcmp.eq.s32.totalorder %v839, 1
      %vm848 = vcmp.eq.s32.totalorder %v840, 1
      %vm849 = vcmp.eq.s32.totalorder %v841, 1
      %vm850 = vcmp.eq.s32.totalorder %v842, 1
      %vm851 = vcmp.eq.s32.totalorder %v843, 1
      %vm852 = vcmp.eq.s32.totalorder %v844, 1
      %vm853 = vcmp.eq.s32.totalorder %v845, 1
      %vm854 = vcmp.eq.s32.totalorder %v846, 1
      %v855 = vsel %vm847, 0.0, %v837
      %v856 = vsel %vm848, 0.0, %v836
      %v857 = vsel %vm849, 0.0, %v835
      %v858 = vsel %vm850, 0.0, %v834
      %v859 = vsel %vm851, 0.0, %v833
      %v860 = vsel %vm852, 0.0, %v832
      %v861 = vsel %vm853, 0.0, %v831
      %v862 = vsel %vm854, 0.0, %v838
      %v863 = vpack.c.bf16 %v815, %v814
      %v864 = vpack.c.bf16 %v817, %v816
      %v865 = vpack.c.bf16 %v819, %v818
      %v866 = vpack.c.bf16 %v821, %v820
      %v867 = vld [vmem:[%s5] sm:$0xf]
      %v868 = vpack.c.bf16 %v750, %v749
      %v869 = vpack.c.bf16 %v752, %v751
      %v870 = vpack.c.bf16 %v754, %v753
      %v871 = vpack.c.bf16 %v756, %v755
      %s872 = scalar_lea.vmem %s5, 4
      %v873 = vld [vmem:[%s872] sm:$0xf]
      %v875 = vsel %vm316, %v868, 0
      %v878 = vsel %vm316, %v869, 0
      %v881 = vsel %vm316, %v870, 0
      %v884 = vsel %vm316, %v871, 0
      %v887 = vsel %vm329, %v873, 0
      %889 = vmatprep.subr.bf16.mxu0 0
      %890 = vmatpush1.bf16.msra.mxu0 %v887
      %891 = vmatprep.subr.bf16.mxu0 0
      %892 = vmatpush1.bf16.msra.mxu0 0
      %893 = vmatprep.subr.bf16.mxu0 0
      %894 = vmatpush1.bf16.msra.mxu0 0
      %895 = vmatprep.subr.bf16.mxu0 0
      %896 = vmatpush1.bf16.msra.mxu0 0
      %897 = vmatprep.subr.bf16.mxu0 0
      %898 = vmatpush1.bf16.msra.mxu0 0
      %899 = vmatprep.subr.bf16.mxu0 0
      %900 = vmatpush1.bf16.msra.mxu0 0
      %901 = vmatprep.subr.bf16.mxu0 0
      %902 = vmatpush1.bf16.msra.mxu0 0
      %903 = vmatprep.subr.bf16.mxu0 0
      %904 = vmatpush1.bf16.msra.mxu0 0
      %905 = vmatprep.subr.bf16.mxu0 0
      %906 = vmatpush1.bf16.msra.mxu0 0
      %907 = vmatprep.subr.bf16.mxu0 0
      %908 = vmatpush1.bf16.msra.mxu0 0
      %909 = vmatprep.subr.bf16.mxu0 0
      %910 = vmatpush1.bf16.msra.mxu0 0
      %911 = vmatprep.subr.bf16.mxu0 0
      %912 = vmatpush1.bf16.msra.mxu0 0
      %913 = vmatprep.subr.bf16.mxu0 0
      %914 = vmatpush1.bf16.msra.mxu0 0
      %915 = vmatprep.subr.bf16.mxu0 0
      %916 = vmatpush1.bf16.msra.mxu0 0
      %917 = vmatprep.subr.bf16.mxu0 0
      %918 = vmatpush1.bf16.msra.mxu0 0
      %919 = vmatprep.subr.bf16.mxu0 0
      %920 = vmatpush1.bf16.msra.mxu0 0
      %921 = vmatprep.mubr.bf16.mxu0 0
      %922 = vmatmul.mubr.bf16.gmra.mrb[0].mxu0 %v875
      %v923 = vpop.f32.mrb[0].mxu0
      %v924 = vadd.f32 0.0, %v923
      %v925 = vpop.f32.mrb[0].mxu0
      %v926 = vpop.f32.mrb[0].mxu0
      %v927 = vadd.f32 0.0, %v926
      %v928 = vpop.f32.mrb[0].mxu0
      %929 = vmatprep.mubr.bf16.mxu0 0
      %930 = vmatmul.mubr.bf16.gmra.mrb[0].mxu0 %v878
      %v931 = vpop.f32.mrb[0].mxu0
      %v932 = vadd.f32 0.0, %v931
      %v933 = vpop.f32.mrb[0].mxu0
      %v934 = vpop.f32.mrb[0].mxu0
      %v935 = vadd.f32 0.0, %v934
      %v936 = vpop.f32.mrb[0].mxu0
      %937 = vmatprep.mubr.bf16.mxu0 0
      %938 = vmatmul.mubr.bf16.gmra.mrb[0].mxu0 %v881
      %v939 = vpop.f32.mrb[0].mxu0
      %v940 = vadd.f32 0.0, %v939
      %v941 = vpop.f32.mrb[0].mxu0
      %v942 = vpop.f32.mrb[0].mxu0
      %v943 = vadd.f32 0.0, %v942
      %v944 = vpop.f32.mrb[0].mxu0
      %945 = vmatprep.mubr.bf16.mxu0 0
      %946 = vmatmul.mubr.bf16.gmra.mrb[0].mxu0 %v884
      %v947 = vpop.f32.mrb[0].mxu0
      %v948 = vadd.f32 0.0, %v947
      %v949 = vpop.f32.mrb[0].mxu0
      %v950 = vpop.f32.mrb[0].mxu0
      %v951 = vadd.f32 0.0, %v950
      %v952 = vpop.f32.mrb[0].mxu0
      %953 = vdwg.mxu0
      %v955 = vsel %vm316, %v863, 0
      %v958 = vsel %vm316, %v864, 0
      %v961 = vsel %vm316, %v865, 0
      %v964 = vsel %vm316, %v866, 0
      %v967 = vsel %vm329, %v867, 0
      %969 = vmatprep.subr.bf16.mxu0 0
      %970 = vmatpush1.bf16.msra.mxu0 %v967
      %971 = vmatprep.subr.bf16.mxu0 0
      %972 = vmatpush1.bf16.msra.mxu0 0
      %973 = vmatprep.subr.bf16.mxu0 0
      %974 = vmatpush1.bf16.msra.mxu0 0
      %975 = vmatprep.subr.bf16.mxu0 0
      %976 = vmatpush1.bf16.msra.mxu0 0
      %977 = vmatprep.subr.bf16.mxu0 0
      %978 = vmatpush1.bf16.msra.mxu0 0
      %979 = vmatprep.subr.bf16.mxu0 0
      %980 = vmatpush1.bf16.msra.mxu0 0
      %981 = vmatprep.subr.bf16.mxu0 0
      %982 = vmatpush1.bf16.msra.mxu0 0
      %983 = vmatprep.subr.bf16.mxu0 0
      %984 = vmatpush1.bf16.msra.mxu0 0
      %985 = vmatprep.subr.bf16.mxu0 0
      %986 = vmatpush1.bf16.msra.mxu0 0
      %987 = vmatprep.subr.bf16.mxu0 0
      %988 = vmatpush1.bf16.msra.mxu0 0
      %989 = vmatprep.subr.bf16.mxu0 0
      %990 = vmatpush1.bf16.msra.mxu0 0
      %991 = vmatprep.subr.bf16.mxu0 0
      %992 = vmatpush1.bf16.msra.mxu0 0
      %993 = vmatprep.subr.bf16.mxu0 0
      %994 = vmatpush1.bf16.msra.mxu0 0
      %995 = vmatprep.subr.bf16.mxu0 0
      %996 = vmatpush1.bf16.msra.mxu0 0
      %997 = vmatprep.subr.bf16.mxu0 0
      %998 = vmatpush1.bf16.msra.mxu0 0
      %999 = vmatprep.subr.bf16.mxu0 0
      %1000 = vmatpush1.bf16.msra.mxu0 0
      %1001 = vmatprep.mubr.bf16.mxu0 0
      %1002 = vmatmul.mubr.bf16.gmra.mrb[0].mxu0 %v955
      %v1003 = vpop.f32.mrb[0].mxu0
      %v1004 = vadd.f32 %v924, %v1003
      %v1005 = vpop.f32.mrb[0].mxu0
      %v1006 = vpop.f32.mrb[0].mxu0
      %v1007 = vadd.f32 %v927, %v1006
      %v1008 = vpop.f32.mrb[0].mxu0
      %1009 = vmatprep.mubr.bf16.mxu0 0
      %1010 = vmatmul.mubr.bf16.gmra.mrb[0].mxu0 %v958
      %v1011 = vpop.f32.mrb[0].mxu0
      %v1012 = vadd.f32 %v932, %v1011
      %v1013 = vpop.f32.mrb[0].mxu0
      %v1014 = vpop.f32.mrb[0].mxu0
      %v1015 = vadd.f32 %v935, %v1014
      %v1016 = vpop.f32.mrb[0].mxu0
      %1017 = vmatprep.mubr.bf16.mxu0 0
      %1018 = vmatmul.mubr.bf16.gmra.mrb[0].mxu0 %v961
      %v1019 = vpop.f32.mrb[0].mxu0
      %v1020 = vadd.f32 %v940, %v1019
      %v1021 = vpop.f32.mrb[0].mxu0
      %v1022 = vpop.f32.mrb[0].mxu0
      %v1023 = vadd.f32 %v943, %v1022
      %v1024 = vpop.f32.mrb[0].mxu0
      %1025 = vmatprep.mubr.bf16.mxu0 0
      %1026 = vmatmul.mubr.bf16.gmra.mrb[0].mxu0 %v964
      %v1027 = vpop.f32.mrb[0].mxu0
      %v1028 = vadd.f32 %v948, %v1027
      %v1029 = vpop.f32.mrb[0].mxu0
      %v1030 = vpop.f32.mrb[0].mxu0
      %v1031 = vadd.f32 %v951, %v1030
      %v1032 = vpop.f32.mrb[0].mxu0
      %1033 = vdwg.mxu0
      %v1034 = vpack.c.bf16 %v856, %v855
      %v1035 = vpack.c.bf16 %v858, %v857
      %v1036 = vpack.c.bf16 %v860, %v859
      %v1037 = vpack.c.bf16 %v862, %v861
      %s1038 = scalar_lea.vmem %s5, 8
      %v1039 = vld [vmem:[%s1038] sm:$0xf]
      %v1041 = vsel %vm316, %v1034, 0
      %v1044 = vsel %vm316, %v1035, 0
      %v1047 = vsel %vm316, %v1036, 0
      %v1050 = vsel %vm316, %v1037, 0
      %v1053 = vsel %vm329, %v1039, 0
      %1055 = vmatprep.subr.bf16.mxu0 0
      %1056 = vmatpush1.bf16.msra.mxu0 %v1053
      %1057 = vmatprep.subr.bf16.mxu0 0
      %1058 = vmatpush1.bf16.msra.mxu0 0
      %1059 = vmatprep.subr.bf16.mxu0 0
      %1060 = vmatpush1.bf16.msra.mxu0 0
      %1061 = vmatprep.subr.bf16.mxu0 0
      %1062 = vmatpush1.bf16.msra.mxu0 0
      %1063 = vmatprep.subr.bf16.mxu0 0
      %1064 = vmatpush1.bf16.msra.mxu0 0
      %1065 = vmatprep.subr.bf16.mxu0 0
      %1066 = vmatpush1.bf16.msra.mxu0 0
      %1067 = vmatprep.subr.bf16.mxu0 0
      %1068 = vmatpush1.bf16.msra.mxu0 0
      %1069 = vmatprep.subr.bf16.mxu0 0
      %1070 = vmatpush1.bf16.msra.mxu0 0
      %1071 = vmatprep.subr.bf16.mxu0 0
      %1072 = vmatpush1.bf16.msra.mxu0 0
      %1073 = vmatprep.subr.bf16.mxu0 0
      %1074 = vmatpush1.bf16.msra.mxu0 0
      %1075 = vmatprep.subr.bf16.mxu0 0
      %1076 = vmatpush1.bf16.msra.mxu0 0
      %1077 = vmatprep.subr.bf16.mxu0 0
      %1078 = vmatpush1.bf16.msra.mxu0 0
      %1079 = vmatprep.subr.bf16.mxu0 0
      %1080 = vmatpush1.bf16.msra.mxu0 0
      %1081 = vmatprep.subr.bf16.mxu0 0
      %1082 = vmatpush1.bf16.msra.mxu0 0
      %1083 = vmatprep.subr.bf16.mxu0 0
      %1084 = vmatpush1.bf16.msra.mxu0 0
      %1085 = vmatprep.subr.bf16.mxu0 0
      %1086 = vmatpush1.bf16.msra.mxu0 0
      %1087 = vmatprep.mubr.bf16.mxu0 0
      %1088 = vmatmul.mubr.bf16.gmra.mrb[0].mxu0 %v1041
      %v1089 = vpop.f32.mrb[0].mxu0
      %v1090 = vadd.f32 0.0, %v1089
      %v1091 = vpop.f32.mrb[0].mxu0
      %v1092 = vpop.f32.mrb[0].mxu0
      %v1093 = vadd.f32 0.0, %v1092
      %v1094 = vpop.f32.mrb[0].mxu0
      %1095 = vmatprep.mubr.bf16.mxu0 0
      %1096 = vmatmul.mubr.bf16.gmra.mrb[0].mxu0 %v1044
      %v1097 = vpop.f32.mrb[0].mxu0
      %v1098 = vadd.f32 0.0, %v1097
      %v1099 = vpop.f32.mrb[0].mxu0
      %v1100 = vpop.f32.mrb[0].mxu0
      %v1101 = vadd.f32 0.0, %v1100
      %v1102 = vpop.f32.mrb[0].mxu0
      %1103 = vmatprep.mubr.bf16.mxu0 0
      %1104 = vmatmul.mubr.bf16.gmra.mrb[0].mxu0 %v1047
      %v1105 = vpop.f32.mrb[0].mxu0
      %v1106 = vadd.f32 0.0, %v1105
      %v1107 = vpop.f32.mrb[0].mxu0
      %v1108 = vpop.f32.mrb[0].mxu0
      %v1109 = vadd.f32 0.0, %v1108
      %v1110 = vpop.f32.mrb[0].mxu0
      %1111 = vmatprep.mubr.bf16.mxu0 0
      %1112 = vmatmul.mubr.bf16.gmra.mrb[0].mxu0 %v1050
      %v1113 = vpop.f32.mrb[0].mxu0
      %v1114 = vadd.f32 0.0, %v1113
      %v1115 = vpop.f32.mrb[0].mxu0
      %v1116 = vpop.f32.mrb[0].mxu0
      %v1117 = vadd.f32 0.0, %v1116
      %v1118 = vpop.f32.mrb[0].mxu0
      %1119 = vdwg.mxu0
      %v1120 = vadd.f32 %v1004, %v1090
      %v1121 = vadd.f32 %v1007, %v1093
      %v1122 = vadd.f32 %v1012, %v1098
      %v1123 = vadd.f32 %v1015, %v1101
      %v1124 = vadd.f32 %v1020, %v1106
      %v1125 = vadd.f32 %v1023, %v1109
      %v1126 = vadd.f32 %v1028, %v1114
      %v1127 = vadd.f32 %v1031, %v1117
      %v1128 = vrot.slane %v581, 7
      %v1129 = vrot.slane %v583, 7
      %v1130 = vrot.slane %v585, 7
      %v1131 = vrot.slane %v587, 7
      %v1132 = vrot.slane %v589, 7
      %v1133 = vrot.slane %v591, 7
      %v1134 = vrot.slane %v593, 7
      %v1135 = vrot.slane %v595, 7
      %v1136 = vsel %vm789, %v1134, %v1135
      %v1137 = vsel %vm789, %v1133, %v1134
      %v1138 = vsel %vm789, %v1132, %v1133
      %v1139 = vsel %vm789, %v1131, %v1132
      %v1140 = vsel %vm789, %v1130, %v1131
      %v1141 = vsel %vm789, %v1129, %v1130
      %v1142 = vsel %vm789, %v1128, %v1129
      %v1143 = vsel %vm789, %v1135, %v1128
      %v1144 = vsel %vm806, 0.0, %v1143
      %v1145 = vsel %vm807, 0.0, %v1142
      %v1146 = vsel %vm808, 0.0, %v1141
      %v1147 = vsel %vm809, 0.0, %v1140
      %v1148 = vsel %vm810, 0.0, %v1139
      %v1149 = vsel %vm811, 0.0, %v1138
      %v1150 = vsel %vm812, 0.0, %v1137
      %v1151 = vsel %vm813, 0.0, %v1136
      %v1152 = vrot.slane %v581, 1
      %v1153 = vrot.slane %v583, 1
      %v1154 = vrot.slane %v585, 1
      %v1155 = vrot.slane %v587, 1
      %v1156 = vrot.slane %v589, 1
      %v1157 = vrot.slane %v591, 1
      %v1158 = vrot.slane %v593, 1
      %v1159 = vrot.slane %v595, 1
      %v1160 = vsel %vm830, %v1158, %v1159
      %v1161 = vsel %vm830, %v1157, %v1158
      %v1162 = vsel %vm830, %v1156, %v1157
      %v1163 = vsel %vm830, %v1155, %v1156
      %v1164 = vsel %vm830, %v1154, %v1155
      %v1165 = vsel %vm830, %v1153, %v1154
      %v1166 = vsel %vm830, %v1152, %v1153
      %v1167 = vsel %vm830, %v1159, %v1152
      %v1168 = vsel %vm847, 0.0, %v1166
      %v1169 = vsel %vm848, 0.0, %v1165
      %v1170 = vsel %vm849, 0.0, %v1164
      %v1171 = vsel %vm850, 0.0, %v1163
      %v1172 = vsel %vm851, 0.0, %v1162
      %v1173 = vsel %vm852, 0.0, %v1161
      %v1174 = vsel %vm853, 0.0, %v1160
      %v1175 = vsel %vm854, 0.0, %v1167
      %v1176 = vpack.c.bf16 %v1145, %v1144
      %v1177 = vpack.c.bf16 %v1147, %v1146
      %v1178 = vpack.c.bf16 %v1149, %v1148
      %v1179 = vpack.c.bf16 %v1151, %v1150
      %s1180 = scalar_lea.vmem %s5, 12
      %v1181 = vld [vmem:[%s1180] sm:$0xf]
      %v1183 = vsel %vm316, %v1176, 0
      %v1186 = vsel %vm316, %v1177, 0
      %v1189 = vsel %vm316, %v1178, 0
      %v1192 = vsel %vm316, %v1179, 0
      %v1195 = vsel %vm329, %v1181, 0
      %1197 = vmatprep.subr.bf16.mxu0 0
      %1198 = vmatpush1.bf16.msra.mxu0 %v1195
      %1199 = vmatprep.subr.bf16.mxu0 0
      %1200 = vmatpush1.bf16.msra.mxu0 0
      %1201 = vmatprep.subr.bf16.mxu0 0
      %1202 = vmatpush1.bf16.msra.mxu0 0
      %1203 = vmatprep.subr.bf16.mxu0 0
      %1204 = vmatpush1.bf16.msra.mxu0 0
      %1205 = vmatprep.subr.bf16.mxu0 0
      %1206 = vmatpush1.bf16.msra.mxu0 0
      %1207 = vmatprep.subr.bf16.mxu0 0
      %1208 = vmatpush1.bf16.msra.mxu0 0
      %1209 = vmatprep.subr.bf16.mxu0 0
      %1210 = vmatpush1.bf16.msra.mxu0 0
      %1211 = vmatprep.subr.bf16.mxu0 0
      %1212 = vmatpush1.bf16.msra.mxu0 0
      %1213 = vmatprep.subr.bf16.mxu0 0
      %1214 = vmatpush1.bf16.msra.mxu0 0
      %1215 = vmatprep.subr.bf16.mxu0 0
      %1216 = vmatpush1.bf16.msra.mxu0 0
      %1217 = vmatprep.subr.bf16.mxu0 0
      %1218 = vmatpush1.bf16.msra.mxu0 0
      %1219 = vmatprep.subr.bf16.mxu0 0
      %1220 = vmatpush1.bf16.msra.mxu0 0
      %1221 = vmatprep.subr.bf16.mxu0 0
      %1222 = vmatpush1.bf16.msra.mxu0 0
      %1223 = vmatprep.subr.bf16.mxu0 0
      %1224 = vmatpush1.bf16.msra.mxu0 0
      %1225 = vmatprep.subr.bf16.mxu0 0
      %1226 = vmatpush1.bf16.msra.mxu0 0
      %1227 = vmatprep.subr.bf16.mxu0 0
      %1228 = vmatpush1.bf16.msra.mxu0 0
      %1229 = vmatprep.mubr.bf16.mxu0 0
      %1230 = vmatmul.mubr.bf16.gmra.mrb[0].mxu0 %v1183
      %v1231 = vpop.f32.mrb[0].mxu0
      %v1232 = vadd.f32 0.0, %v1231
      %v1233 = vpop.f32.mrb[0].mxu0
      %v1234 = vpop.f32.mrb[0].mxu0
      %v1235 = vadd.f32 0.0, %v1234
      %v1236 = vpop.f32.mrb[0].mxu0
      %1237 = vmatprep.mubr.bf16.mxu0 0
      %1238 = vmatmul.mubr.bf16.gmra.mrb[0].mxu0 %v1186
      %v1239 = vpop.f32.mrb[0].mxu0
      %v1240 = vadd.f32 0.0, %v1239
      %v1241 = vpop.f32.mrb[0].mxu0
      %v1242 = vpop.f32.mrb[0].mxu0
      %v1243 = vadd.f32 0.0, %v1242
      %v1244 = vpop.f32.mrb[0].mxu0
      %1245 = vmatprep.mubr.bf16.mxu0 0
      %1246 = vmatmul.mubr.bf16.gmra.mrb[0].mxu0 %v1189
      %v1247 = vpop.f32.mrb[0].mxu0
      %v1248 = vadd.f32 0.0, %v1247
      %v1249 = vpop.f32.mrb[0].mxu0
      %v1250 = vpop.f32.mrb[0].mxu0
      %v1251 = vadd.f32 0.0, %v1250
      %v1252 = vpop.f32.mrb[0].mxu0
      %1253 = vmatprep.mubr.bf16.mxu0 0
      %1254 = vmatmul.mubr.bf16.gmra.mrb[0].mxu0 %v1192
      %v1255 = vpop.f32.mrb[0].mxu0
      %v1256 = vadd.f32 0.0, %v1255
      %v1257 = vpop.f32.mrb[0].mxu0
      %v1258 = vpop.f32.mrb[0].mxu0
      %v1259 = vadd.f32 0.0, %v1258
      %v1260 = vpop.f32.mrb[0].mxu0
      %1261 = vdwg.mxu0
      %v1262 = vadd.f32 %v1120, %v1232
      %v1263 = vadd.f32 %v1121, %v1235
      %v1264 = vadd.f32 %v1122, %v1240
      %v1265 = vadd.f32 %v1123, %v1243
      %v1266 = vadd.f32 %v1124, %v1248
      %v1267 = vadd.f32 %v1125, %v1251
      %v1268 = vadd.f32 %v1126, %v1256
      %v1269 = vadd.f32 %v1127, %v1259
      %v1270 = vpack.c.bf16 %v583, %v581
      %v1271 = vpack.c.bf16 %v587, %v585
      %v1272 = vpack.c.bf16 %v591, %v589
      %v1273 = vpack.c.bf16 %v595, %v593
      %s1274 = scalar_lea.vmem %s5, 16
      %v1275 = vld [vmem:[%s1274] sm:$0xf]
      %v1277 = vsel %vm316, %v1270, 0
      %v1280 = vsel %vm316, %v1271, 0
      %v1283 = vsel %vm316, %v1272, 0
      %v1286 = vsel %vm316, %v1273, 0
      %v1289 = vsel %vm329, %v1275, 0
      %1291 = vmatprep.subr.bf16.mxu0 0
      %1292 = vmatpush1.bf16.msra.mxu0 %v1289
      %1293 = vmatprep.subr.bf16.mxu0 0
      %1294 = vmatpush1.bf16.msra.mxu0 0
      %1295 = vmatprep.subr.bf16.mxu0 0
      %1296 = vmatpush1.bf16.msra.mxu0 0
      %1297 = vmatprep.subr.bf16.mxu0 0
      %1298 = vmatpush1.bf16.msra.mxu0 0
      %1299 = vmatprep.subr.bf16.mxu0 0
      %1300 = vmatpush1.bf16.msra.mxu0 0
      %1301 = vmatprep.subr.bf16.mxu0 0
      %1302 = vmatpush1.bf16.msra.mxu0 0
      %1303 = vmatprep.subr.bf16.mxu0 0
      %1304 = vmatpush1.bf16.msra.mxu0 0
      %1305 = vmatprep.subr.bf16.mxu0 0
      %1306 = vmatpush1.bf16.msra.mxu0 0
      %1307 = vmatprep.subr.bf16.mxu0 0
      %1308 = vmatpush1.bf16.msra.mxu0 0
      %1309 = vmatprep.subr.bf16.mxu0 0
      %1310 = vmatpush1.bf16.msra.mxu0 0
      %1311 = vmatprep.subr.bf16.mxu0 0
      %1312 = vmatpush1.bf16.msra.mxu0 0
      %1313 = vmatprep.subr.bf16.mxu0 0
      %1314 = vmatpush1.bf16.msra.mxu0 0
      %1315 = vmatprep.subr.bf16.mxu0 0
      %1316 = vmatpush1.bf16.msra.mxu0 0
      %1317 = vmatprep.subr.bf16.mxu0 0
      %1318 = vmatpush1.bf16.msra.mxu0 0
      %1319 = vmatprep.subr.bf16.mxu0 0
      %1320 = vmatpush1.bf16.msra.mxu0 0
      %1321 = vmatprep.subr.bf16.mxu0 0
      %1322 = vmatpush1.bf16.msra.mxu0 0
      %1323 = vmatprep.mubr.bf16.mxu0 0
      %1324 = vmatmul.mubr.bf16.gmra.mrb[0].mxu0 %v1277
      %v1325 = vpop.f32.mrb[0].mxu0
      %v1326 = vadd.f32 0.0, %v1325
      %v1327 = vpop.f32.mrb[0].mxu0
      %v1328 = vpop.f32.mrb[0].mxu0
      %v1329 = vadd.f32 0.0, %v1328
      %v1330 = vpop.f32.mrb[0].mxu0
      %1331 = vmatprep.mubr.bf16.mxu0 0
      %1332 = vmatmul.mubr.bf16.gmra.mrb[0].mxu0 %v1280
      %v1333 = vpop.f32.mrb[0].mxu0
      %v1334 = vadd.f32 0.0, %v1333
      %v1335 = vpop.f32.mrb[0].mxu0
      %v1336 = vpop.f32.mrb[0].mxu0
      %v1337 = vadd.f32 0.0, %v1336
      %v1338 = vpop.f32.mrb[0].mxu0
      %1339 = vmatprep.mubr.bf16.mxu0 0
      %1340 = vmatmul.mubr.bf16.gmra.mrb[0].mxu0 %v1283
      %v1341 = vpop.f32.mrb[0].mxu0
      %v1342 = vadd.f32 0.0, %v1341
      %v1343 = vpop.f32.mrb[0].mxu0
      %v1344 = vpop.f32.mrb[0].mxu0
      %v1345 = vadd.f32 0.0, %v1344
      %v1346 = vpop.f32.mrb[0].mxu0
      %1347 = vmatprep.mubr.bf16.mxu0 0
      %1348 = vmatmul.mubr.bf16.gmra.mrb[0].mxu0 %v1286
      %v1349 = vpop.f32.mrb[0].mxu0
      %v1350 = vadd.f32 0.0, %v1349
      %v1351 = vpop.f32.mrb[0].mxu0
      %v1352 = vpop.f32.mrb[0].mxu0
      %v1353 = vadd.f32 0.0, %v1352
      %v1354 = vpop.f32.mrb[0].mxu0
      %1355 = vdwg.mxu0
      %v1356 = vadd.f32 %v1262, %v1326
      %v1357 = vadd.f32 %v1263, %v1329
      %v1358 = vadd.f32 %v1264, %v1334
      %v1359 = vadd.f32 %v1265, %v1337
      %v1360 = vadd.f32 %v1266, %v1342
      %v1361 = vadd.f32 %v1267, %v1345
      %v1362 = vadd.f32 %v1268, %v1350
      %v1363 = vadd.f32 %v1269, %v1353
      %v1364 = vpack.c.bf16 %v1169, %v1168
      %v1365 = vpack.c.bf16 %v1171, %v1170
      %v1366 = vpack.c.bf16 %v1173, %v1172
      %v1367 = vpack.c.bf16 %v1175, %v1174
      %s1368 = scalar_lea.vmem %s5, 20
      %v1369 = vld [vmem:[%s1368] sm:$0xf]
      %v1371 = vsel %vm316, %v1364, 0
      %v1374 = vsel %vm316, %v1365, 0
      %v1377 = vsel %vm316, %v1366, 0
      %v1380 = vsel %vm316, %v1367, 0
      %v1383 = vsel %vm329, %v1369, 0
      %1385 = vmatprep.subr.bf16.mxu0 0
      %1386 = vmatpush1.bf16.msra.mxu0 %v1383
      %1387 = vmatprep.subr.bf16.mxu0 0
      %1388 = vmatpush1.bf16.msra.mxu0 0
      %1389 = vmatprep.subr.bf16.mxu0 0
      %1390 = vmatpush1.bf16.msra.mxu0 0
      %1391 = vmatprep.subr.bf16.mxu0 0
      %1392 = vmatpush1.bf16.msra.mxu0 0
      %1393 = vmatprep.subr.bf16.mxu0 0
      %1394 = vmatpush1.bf16.msra.mxu0 0
      %1395 = vmatprep.subr.bf16.mxu0 0
      %1396 = vmatpush1.bf16.msra.mxu0 0
      %1397 = vmatprep.subr.bf16.mxu0 0
      %1398 = vmatpush1.bf16.msra.mxu0 0
      %1399 = vmatprep.subr.bf16.mxu0 0
      %1400 = vmatpush1.bf16.msra.mxu0 0
      %1401 = vmatprep.subr.bf16.mxu0 0
      %1402 = vmatpush1.bf16.msra.mxu0 0
      %1403 = vmatprep.subr.bf16.mxu0 0
      %1404 = vmatpush1.bf16.msra.mxu0 0
      %1405 = vmatprep.subr.bf16.mxu0 0
      %1406 = vmatpush1.bf16.msra.mxu0 0
      %1407 = vmatprep.subr.bf16.mxu0 0
      %1408 = vmatpush1.bf16.msra.mxu0 0
      %1409 = vmatprep.subr.bf16.mxu0 0
      %1410 = vmatpush1.bf16.msra.mxu0 0
      %1411 = vmatprep.subr.bf16.mxu0 0
      %1412 = vmatpush1.bf16.msra.mxu0 0
      %1413 = vmatprep.subr.bf16.mxu0 0
      %1414 = vmatpush1.bf16.msra.mxu0 0
      %1415 = vmatprep.subr.bf16.mxu0 0
      %1416 = vmatpush1.bf16.msra.mxu0 0
      %1417 = vmatprep.mubr.bf16.mxu0 0
      %1418 = vmatmul.mubr.bf16.gmra.mrb[0].mxu0 %v1371
      %v1419 = vpop.f32.mrb[0].mxu0
      %v1420 = vadd.f32 0.0, %v1419
      %v1421 = vpop.f32.mrb[0].mxu0
      %v1422 = vpop.f32.mrb[0].mxu0
      %v1423 = vadd.f32 0.0, %v1422
      %v1424 = vpop.f32.mrb[0].mxu0
      %1425 = vmatprep.mubr.bf16.mxu0 0
      %1426 = vmatmul.mubr.bf16.gmra.mrb[0].mxu0 %v1374
      %v1427 = vpop.f32.mrb[0].mxu0
      %v1428 = vadd.f32 0.0, %v1427
      %v1429 = vpop.f32.mrb[0].mxu0
      %v1430 = vpop.f32.mrb[0].mxu0
      %v1431 = vadd.f32 0.0, %v1430
      %v1432 = vpop.f32.mrb[0].mxu0
      %1433 = vmatprep.mubr.bf16.mxu0 0
      %1434 = vmatmul.mubr.bf16.gmra.mrb[0].mxu0 %v1377
      %v1435 = vpop.f32.mrb[0].mxu0
      %v1436 = vadd.f32 0.0, %v1435
      %v1437 = vpop.f32.mrb[0].mxu0
      %v1438 = vpop.f32.mrb[0].mxu0
      %v1439 = vadd.f32 0.0, %v1438
      %v1440 = vpop.f32.mrb[0].mxu0
      %1441 = vmatprep.mubr.bf16.mxu0 0
      %1442 = vmatmul.mubr.bf16.gmra.mrb[0].mxu0 %v1380
      %v1443 = vpop.f32.mrb[0].mxu0
      %v1444 = vadd.f32 0.0, %v1443
      %v1445 = vpop.f32.mrb[0].mxu0
      %v1446 = vpop.f32.mrb[0].mxu0
      %v1447 = vadd.f32 0.0, %v1446
      %v1448 = vpop.f32.mrb[0].mxu0
      %1449 = vdwg.mxu0
      %v1450 = vadd.f32 %v1356, %v1420
      %v1451 = vadd.f32 %v1357, %v1423
      %v1452 = vadd.f32 %v1358, %v1428
      %v1453 = vadd.f32 %v1359, %v1431
      %v1454 = vadd.f32 %v1360, %v1436
      %v1455 = vadd.f32 %v1361, %v1439
      %v1456 = vadd.f32 %v1362, %v1444
      %v1457 = vadd.f32 %v1363, %v1447
      %v1458 = vrot.slane %v773, 7
      %v1459 = vrot.slane %v774, 7
      %v1460 = vrot.slane %v775, 7
      %v1461 = vrot.slane %v776, 7
      %v1462 = vrot.slane %v777, 7
      %v1463 = vrot.slane %v778, 7
      %v1464 = vrot.slane %v779, 7
      %v1465 = vrot.slane %v780, 7
      %v1466 = vsel %vm789, %v1464, %v1465
      %v1467 = vsel %vm789, %v1463, %v1464
      %v1468 = vsel %vm789, %v1462, %v1463
      %v1469 = vsel %vm789, %v1461, %v1462
      %v1470 = vsel %vm789, %v1460, %v1461
      %v1471 = vsel %vm789, %v1459, %v1460
      %v1472 = vsel %vm789, %v1458, %v1459
      %v1473 = vsel %vm789, %v1465, %v1458
      %v1474 = vsel %vm806, 0.0, %v1473
      %v1475 = vsel %vm807, 0.0, %v1472
      %v1476 = vsel %vm808, 0.0, %v1471
      %v1477 = vsel %vm809, 0.0, %v1470
      %v1478 = vsel %vm810, 0.0, %v1469
      %v1479 = vsel %vm811, 0.0, %v1468
      %v1480 = vsel %vm812, 0.0, %v1467
      %v1481 = vsel %vm813, 0.0, %v1466
      %v1482 = vrot.slane %v773, 1
      %v1483 = vrot.slane %v774, 1
      %v1484 = vrot.slane %v775, 1
      %v1485 = vrot.slane %v776, 1
      %v1486 = vrot.slane %v777, 1
      %v1487 = vrot.slane %v778, 1
      %v1488 = vrot.slane %v779, 1
      %v1489 = vrot.slane %v780, 1
      %v1490 = vsel %vm830, %v1488, %v1489
      %v1491 = vsel %vm830, %v1487, %v1488
      %v1492 = vsel %vm830, %v1486, %v1487
      %v1493 = vsel %vm830, %v1485, %v1486
      %v1494 = vsel %vm830, %v1484, %v1485
      %v1495 = vsel %vm830, %v1483, %v1484
      %v1496 = vsel %vm830, %v1482, %v1483
      %v1497 = vsel %vm830, %v1489, %v1482
      %v1498 = vsel %vm847, 0.0, %v1496
      %v1499 = vsel %vm848, 0.0, %v1495
      %v1500 = vsel %vm849, 0.0, %v1494
      %v1501 = vsel %vm850, 0.0, %v1493
      %v1502 = vsel %vm851, 0.0, %v1492
      %v1503 = vsel %vm852, 0.0, %v1491
      %v1504 = vsel %vm853, 0.0, %v1490
      %v1505 = vsel %vm854, 0.0, %v1497
      %v1506 = vpack.c.bf16 %v1475, %v1474
      %v1507 = vpack.c.bf16 %v1477, %v1476
      %v1508 = vpack.c.bf16 %v1479, %v1478
      %v1509 = vpack.c.bf16 %v1481, %v1480
      %s1510 = scalar_lea.vmem %s5, 24
      %v1511 = vld [vmem:[%s1510] sm:$0xf]
      %v1513 = vsel %vm316, %v1506, 0
      %v1516 = vsel %vm316, %v1507, 0
      %v1519 = vsel %vm316, %v1508, 0
      %v1522 = vsel %vm316, %v1509, 0
      %v1525 = vsel %vm329, %v1511, 0
      %1527 = vmatprep.subr.bf16.mxu0 0
      %1528 = vmatpush1.bf16.msra.mxu0 %v1525
      %1529 = vmatprep.subr.bf16.mxu0 0
      %1530 = vmatpush1.bf16.msra.mxu0 0
      %1531 = vmatprep.subr.bf16.mxu0 0
      %1532 = vmatpush1.bf16.msra.mxu0 0
      %1533 = vmatprep.subr.bf16.mxu0 0
      %1534 = vmatpush1.bf16.msra.mxu0 0
      %1535 = vmatprep.subr.bf16.mxu0 0
      %1536 = vmatpush1.bf16.msra.mxu0 0
      %1537 = vmatprep.subr.bf16.mxu0 0
      %1538 = vmatpush1.bf16.msra.mxu0 0
      %1539 = vmatprep.subr.bf16.mxu0 0
      %1540 = vmatpush1.bf16.msra.mxu0 0
      %1541 = vmatprep.subr.bf16.mxu0 0
      %1542 = vmatpush1.bf16.msra.mxu0 0
      %1543 = vmatprep.subr.bf16.mxu0 0
      %1544 = vmatpush1.bf16.msra.mxu0 0
      %1545 = vmatprep.subr.bf16.mxu0 0
      %1546 = vmatpush1.bf16.msra.mxu0 0
      %1547 = vmatprep.subr.bf16.mxu0 0
      %1548 = vmatpush1.bf16.msra.mxu0 0
      %1549 = vmatprep.subr.bf16.mxu0 0
      %1550 = vmatpush1.bf16.msra.mxu0 0
      %1551 = vmatprep.subr.bf16.mxu0 0
      %1552 = vmatpush1.bf16.msra.mxu0 0
      %1553 = vmatprep.subr.bf16.mxu0 0
      %1554 = vmatpush1.bf16.msra.mxu0 0
      %1555 = vmatprep.subr.bf16.mxu0 0
      %1556 = vmatpush1.bf16.msra.mxu0 0
      %1557 = vmatprep.subr.bf16.mxu0 0
      %1558 = vmatpush1.bf16.msra.mxu0 0
      %1559 = vmatprep.mubr.bf16.mxu0 0
      %1560 = vmatmul.mubr.bf16.gmra.mrb[0].mxu0 %v1513
      %v1561 = vpop.f32.mrb[0].mxu0
      %v1562 = vadd.f32 0.0, %v1561
      %v1563 = vpop.f32.mrb[0].mxu0
      %v1564 = vpop.f32.mrb[0].mxu0
      %v1565 = vadd.f32 0.0, %v1564
      %v1566 = vpop.f32.mrb[0].mxu0
      %1567 = vmatprep.mubr.bf16.mxu0 0
      %1568 = vmatmul.mubr.bf16.gmra.mrb[0].mxu0 %v1516
      %v1569 = vpop.f32.mrb[0].mxu0
      %v1570 = vadd.f32 0.0, %v1569
      %v1571 = vpop.f32.mrb[0].mxu0
      %v1572 = vpop.f32.mrb[0].mxu0
      %v1573 = vadd.f32 0.0, %v1572
      %v1574 = vpop.f32.mrb[0].mxu0
      %1575 = vmatprep.mubr.bf16.mxu0 0
      %1576 = vmatmul.mubr.bf16.gmra.mrb[0].mxu0 %v1519
      %v1577 = vpop.f32.mrb[0].mxu0
      %v1578 = vadd.f32 0.0, %v1577
      %v1579 = vpop.f32.mrb[0].mxu0
      %v1580 = vpop.f32.mrb[0].mxu0
      %v1581 = vadd.f32 0.0, %v1580
      %v1582 = vpop.f32.mrb[0].mxu0
      %1583 = vmatprep.mubr.bf16.mxu0 0
      %1584 = vmatmul.mubr.bf16.gmra.mrb[0].mxu0 %v1522
      %v1585 = vpop.f32.mrb[0].mxu0
      %v1586 = vadd.f32 0.0, %v1585
      %v1587 = vpop.f32.mrb[0].mxu0
      %v1588 = vpop.f32.mrb[0].mxu0
      %v1589 = vadd.f32 0.0, %v1588
      %v1590 = vpop.f32.mrb[0].mxu0
      %1591 = vdwg.mxu0
      %v1592 = vadd.f32 %v1450, %v1562
      %v1593 = vadd.f32 %v1451, %v1565
      %v1594 = vadd.f32 %v1452, %v1570
      %v1595 = vadd.f32 %v1453, %v1573
      %v1596 = vadd.f32 %v1454, %v1578
      %v1597 = vadd.f32 %v1455, %v1581
      %v1598 = vadd.f32 %v1456, %v1586
      %v1599 = vadd.f32 %v1457, %v1589
      %v1600 = vpack.c.bf16 %v774, %v773
      %v1601 = vpack.c.bf16 %v776, %v775
      %v1602 = vpack.c.bf16 %v778, %v777
      %v1603 = vpack.c.bf16 %v780, %v779
      %s1604 = scalar_lea.vmem %s5, 28
      %v1605 = vld [vmem:[%s1604] sm:$0xf]
      %v1607 = vsel %vm316, %v1600, 0
      %v1610 = vsel %vm316, %v1601, 0
      %v1613 = vsel %vm316, %v1602, 0
      %v1616 = vsel %vm316, %v1603, 0
      %v1619 = vsel %vm329, %v1605, 0
      %1621 = vmatprep.subr.bf16.mxu0 0
      %1622 = vmatpush1.bf16.msra.mxu0 %v1619
      %1623 = vmatprep.subr.bf16.mxu0 0
      %1624 = vmatpush1.bf16.msra.mxu0 0
      %1625 = vmatprep.subr.bf16.mxu0 0
      %1626 = vmatpush1.bf16.msra.mxu0 0
      %1627 = vmatprep.subr.bf16.mxu0 0
      %1628 = vmatpush1.bf16.msra.mxu0 0
      %1629 = vmatprep.subr.bf16.mxu0 0
      %1630 = vmatpush1.bf16.msra.mxu0 0
      %1631 = vmatprep.subr.bf16.mxu0 0
      %1632 = vmatpush1.bf16.msra.mxu0 0
      %1633 = vmatprep.subr.bf16.mxu0 0
      %1634 = vmatpush1.bf16.msra.mxu0 0
      %1635 = vmatprep.subr.bf16.mxu0 0
      %1636 = vmatpush1.bf16.msra.mxu0 0
      %1637 = vmatprep.subr.bf16.mxu0 0
      %1638 = vmatpush1.bf16.msra.mxu0 0
      %1639 = vmatprep.subr.bf16.mxu0 0
      %1640 = vmatpush1.bf16.msra.mxu0 0
      %1641 = vmatprep.subr.bf16.mxu0 0
      %1642 = vmatpush1.bf16.msra.mxu0 0
      %1643 = vmatprep.subr.bf16.mxu0 0
      %1644 = vmatpush1.bf16.msra.mxu0 0
      %1645 = vmatprep.subr.bf16.mxu0 0
      %1646 = vmatpush1.bf16.msra.mxu0 0
      %1647 = vmatprep.subr.bf16.mxu0 0
      %1648 = vmatpush1.bf16.msra.mxu0 0
      %1649 = vmatprep.subr.bf16.mxu0 0
      %1650 = vmatpush1.bf16.msra.mxu0 0
      %1651 = vmatprep.subr.bf16.mxu0 0
      %1652 = vmatpush1.bf16.msra.mxu0 0
      %1653 = vmatprep.mubr.bf16.mxu0 0
      %1654 = vmatmul.mubr.bf16.gmra.mrb[0].mxu0 %v1607
      %v1655 = vpop.f32.mrb[0].mxu0
      %v1656 = vadd.f32 0.0, %v1655
      %v1657 = vpop.f32.mrb[0].mxu0
      %v1658 = vpop.f32.mrb[0].mxu0
      %v1659 = vadd.f32 0.0, %v1658
      %v1660 = vpop.f32.mrb[0].mxu0
      %1661 = vmatprep.mubr.bf16.mxu0 0
      %1662 = vmatmul.mubr.bf16.gmra.mrb[0].mxu0 %v1610
      %v1663 = vpop.f32.mrb[0].mxu0
      %v1664 = vadd.f32 0.0, %v1663
      %v1665 = vpop.f32.mrb[0].mxu0
      %v1666 = vpop.f32.mrb[0].mxu0
      %v1667 = vadd.f32 0.0, %v1666
      %v1668 = vpop.f32.mrb[0].mxu0
      %1669 = vmatprep.mubr.bf16.mxu0 0
      %1670 = vmatmul.mubr.bf16.gmra.mrb[0].mxu0 %v1613
      %v1671 = vpop.f32.mrb[0].mxu0
      %v1672 = vadd.f32 0.0, %v1671
      %v1673 = vpop.f32.mrb[0].mxu0
      %v1674 = vpop.f32.mrb[0].mxu0
      %v1675 = vadd.f32 0.0, %v1674
      %v1676 = vpop.f32.mrb[0].mxu0
      %1677 = vmatprep.mubr.bf16.mxu0 0
      %1678 = vmatmul.mubr.bf16.gmra.mrb[0].mxu0 %v1616
      %v1679 = vpop.f32.mrb[0].mxu0
      %v1680 = vadd.f32 0.0, %v1679
      %v1681 = vpop.f32.mrb[0].mxu0
      %v1682 = vpop.f32.mrb[0].mxu0
      %v1683 = vadd.f32 0.0, %v1682
      %v1684 = vpop.f32.mrb[0].mxu0
      %1685 = vdwg.mxu0
      %v1686 = vadd.f32 %v1592, %v1656
      %v1687 = vadd.f32 %v1593, %v1659
      %v1688 = vadd.f32 %v1594, %v1664
      %v1689 = vadd.f32 %v1595, %v1667
      %v1690 = vadd.f32 %v1596, %v1672
      %v1691 = vadd.f32 %v1597, %v1675
      %v1692 = vadd.f32 %v1598, %v1680
      %v1693 = vadd.f32 %v1599, %v1683
      %v1694 = vpack.c.bf16 %v1499, %v1498
      %v1695 = vpack.c.bf16 %v1501, %v1500
      %v1696 = vpack.c.bf16 %v1503, %v1502
      %v1697 = vpack.c.bf16 %v1505, %v1504
      %s1698 = scalar_lea.vmem %s5, 32
      %v1699 = vld [vmem:[%s1698] sm:$0xf]
      %v1701 = vsel %vm316, %v1694, 0
      %v1704 = vsel %vm316, %v1695, 0
      %v1707 = vsel %vm316, %v1696, 0
      %v1710 = vsel %vm316, %v1697, 0
      %v1713 = vsel %vm329, %v1699, 0
      %1715 = vmatprep.subr.bf16.mxu0 0
      %1716 = vmatpush1.bf16.msra.mxu0 %v1713
      %1717 = vmatprep.subr.bf16.mxu0 0
      %1718 = vmatpush1.bf16.msra.mxu0 0
      %1719 = vmatprep.subr.bf16.mxu0 0
      %1720 = vmatpush1.bf16.msra.mxu0 0
      %1721 = vmatprep.subr.bf16.mxu0 0
      %1722 = vmatpush1.bf16.msra.mxu0 0
      %1723 = vmatprep.subr.bf16.mxu0 0
      %1724 = vmatpush1.bf16.msra.mxu0 0
      %1725 = vmatprep.subr.bf16.mxu0 0
      %1726 = vmatpush1.bf16.msra.mxu0 0
      %1727 = vmatprep.subr.bf16.mxu0 0
      %1728 = vmatpush1.bf16.msra.mxu0 0
      %1729 = vmatprep.subr.bf16.mxu0 0
      %1730 = vmatpush1.bf16.msra.mxu0 0
      %1731 = vmatprep.subr.bf16.mxu0 0
      %1732 = vmatpush1.bf16.msra.mxu0 0
      %1733 = vmatprep.subr.bf16.mxu0 0
      %1734 = vmatpush1.bf16.msra.mxu0 0
      %1735 = vmatprep.subr.bf16.mxu0 0
      %1736 = vmatpush1.bf16.msra.mxu0 0
      %1737 = vmatprep.subr.bf16.mxu0 0
      %1738 = vmatpush1.bf16.msra.mxu0 0
      %1739 = vmatprep.subr.bf16.mxu0 0
      %1740 = vmatpush1.bf16.msra.mxu0 0
      %1741 = vmatprep.subr.bf16.mxu0 0
      %1742 = vmatpush1.bf16.msra.mxu0 0
      %1743 = vmatprep.subr.bf16.mxu0 0
      %1744 = vmatpush1.bf16.msra.mxu0 0
      %1745 = vmatprep.subr.bf16.mxu0 0
      %1746 = vmatpush1.bf16.msra.mxu0 0
      %1747 = vmatprep.mubr.bf16.mxu0 0
      %1748 = vmatmul.mubr.bf16.gmra.mrb[0].mxu0 %v1701
      %v1749 = vpop.f32.mrb[0].mxu0
      %v1750 = vadd.f32 0.0, %v1749
      %v1751 = vpop.f32.mrb[0].mxu0
      %v1752 = vpop.f32.mrb[0].mxu0
      %v1753 = vadd.f32 0.0, %v1752
      %v1754 = vpop.f32.mrb[0].mxu0
      %1755 = vmatprep.mubr.bf16.mxu0 0
      %1756 = vmatmul.mubr.bf16.gmra.mrb[0].mxu0 %v1704
      %v1757 = vpop.f32.mrb[0].mxu0
      %v1758 = vadd.f32 0.0, %v1757
      %v1759 = vpop.f32.mrb[0].mxu0
      %v1760 = vpop.f32.mrb[0].mxu0
      %v1761 = vadd.f32 0.0, %v1760
      %v1762 = vpop.f32.mrb[0].mxu0
      %1763 = vmatprep.mubr.bf16.mxu0 0
      %1764 = vmatmul.mubr.bf16.gmra.mrb[0].mxu0 %v1707
      %v1765 = vpop.f32.mrb[0].mxu0
      %v1766 = vadd.f32 0.0, %v1765
      %v1767 = vpop.f32.mrb[0].mxu0
      %v1768 = vpop.f32.mrb[0].mxu0
      %v1769 = vadd.f32 0.0, %v1768
      %v1770 = vpop.f32.mrb[0].mxu0
      %1771 = vmatprep.mubr.bf16.mxu0 0
      %1772 = vmatmul.mubr.bf16.gmra.mrb[0].mxu0 %v1710
      %v1773 = vpop.f32.mrb[0].mxu0
      %v1774 = vadd.f32 0.0, %v1773
      %v1775 = vpop.f32.mrb[0].mxu0
      %v1776 = vpop.f32.mrb[0].mxu0
      %v1777 = vadd.f32 0.0, %v1776
      %v1778 = vpop.f32.mrb[0].mxu0
      %1779 = vdwg.mxu0
      %v1780 = vadd.f32 %v1686, %v1750
      %v1781 = vadd.f32 %v1687, %v1753
      %v1782 = vadd.f32 %v1688, %v1758
      %v1783 = vadd.f32 %v1689, %v1761
      %v1784 = vadd.f32 %v1690, %v1766
      %v1785 = vadd.f32 %v1691, %v1769
      %v1786 = vadd.f32 %v1692, %v1774
      %v1787 = vadd.f32 %v1693, %v1777
      %v1788 = vld [vmem:[%s6] sm:$0x1]
      %v1790 = vlaneseq
      %v1791 = vshrl.u32 %v1790, 7
      %v1792 = vsub.s32 0, %v1791
      %v1793 = vrot.slane %v1788, %v1792
      %v1795 = vadd.f32 %v1780, %v1793
      %v1796 = vadd.f32 %v1781, %v1793
      %v1797 = vadd.f32 %v1782, %v1793
      %v1798 = vadd.f32 %v1783, %v1793
      %v1799 = vadd.f32 %v1784, %v1793
      %v1800 = vadd.f32 %v1785, %v1793
      %v1801 = vadd.f32 %v1786, %v1793
      %v1802 = vadd.f32 %v1787, %v1793
      %v1803 = vxor.u32 %v1795, 2147483648
      %v1804 = vxor.u32 %v1796, 2147483648
      %v1805 = vxor.u32 %v1797, 2147483648
      %v1806 = vxor.u32 %v1798, 2147483648
      %v1807 = vxor.u32 %v1799, 2147483648
      %v1808 = vxor.u32 %v1800, 2147483648
      %v1809 = vxor.u32 %v1801, 2147483648
      %v1810 = vxor.u32 %v1802, 2147483648
      %v1811 = vmul.f32 %v1803, 1.442695
      %v1812 = vpow.pop %v1811
      %v1813 = vmul.f32 %v1804, 1.442695
      %v1814 = vpow.pop %v1813
      %v1815 = vmul.f32 %v1805, 1.442695
      %v1816 = vpow.pop %v1815
      %v1817 = vmul.f32 %v1806, 1.442695
      %v1818 = vpow.pop %v1817
      %v1819 = vmul.f32 %v1807, 1.442695
      %v1820 = vpow.pop %v1819
      %v1821 = vmul.f32 %v1808, 1.442695
      %v1822 = vpow.pop %v1821
      %v1823 = vmul.f32 %v1809, 1.442695
      %v1824 = vpow.pop %v1823
      %v1825 = vmul.f32 %v1810, 1.442695
      %v1826 = vpow.pop %v1825
      %v1827 = vadd.f32 %v1812, 1.0
      %v1828 = vadd.f32 %v1814, 1.0
      %v1829 = vadd.f32 %v1816, 1.0
      %v1830 = vadd.f32 %v1818, 1.0
      %v1831 = vadd.f32 %v1820, 1.0
      %v1832 = vadd.f32 %v1822, 1.0
      %v1833 = vadd.f32 %v1824, 1.0
      %v1834 = vadd.f32 %v1826, 1.0
      %v1835 = vrcp.pop %v1827
      %v1836 = vmul.f32 1.0, %v1835
      %v1837 = vrcp.pop %v1828
      %v1838 = vmul.f32 1.0, %v1837
      %v1839 = vrcp.pop %v1829
      %v1840 = vmul.f32 1.0, %v1839
      %v1841 = vrcp.pop %v1830
      %v1842 = vmul.f32 1.0, %v1841
      %v1843 = vrcp.pop %v1831
      %v1844 = vmul.f32 1.0, %v1843
      %v1845 = vrcp.pop %v1832
      %v1846 = vmul.f32 1.0, %v1845
      %v1847 = vrcp.pop %v1833
      %v1848 = vmul.f32 1.0, %v1847
      %v1849 = vrcp.pop %v1834
      %v1850 = vmul.f32 1.0, %v1849
      %v1851 = vmul.f32 %v1795, %v1836
      %v1852 = vmul.f32 %v1796, %v1838
      %v1853 = vmul.f32 %v1797, %v1840
      %v1854 = vmul.f32 %v1798, %v1842
      %v1855 = vmul.f32 %v1799, %v1844
      %v1856 = vmul.f32 %v1800, %v1846
      %v1857 = vmul.f32 %v1801, %v1848
      %v1858 = vmul.f32 %v1802, %v1850
      %v1859 = vrot.slane %v1851, 7
      %v1860 = vrot.slane %v1852, 7
      %v1861 = vrot.slane %v1853, 7
      %v1862 = vrot.slane %v1854, 7
      %v1863 = vrot.slane %v1855, 7
      %v1864 = vrot.slane %v1856, 7
      %v1865 = vrot.slane %v1857, 7
      %v1866 = vrot.slane %v1858, 7
      %v1867 = vsel %vm789, %v1865, %v1866
      %v1868 = vsel %vm789, %v1864, %v1865
      %v1869 = vsel %vm789, %v1863, %v1864
      %v1870 = vsel %vm789, %v1862, %v1863
      %v1871 = vsel %vm789, %v1861, %v1862
      %v1872 = vsel %vm789, %v1860, %v1861
      %v1873 = vsel %vm789, %v1859, %v1860
      %v1874 = vsel %vm789, %v1866, %v1859
      %v1875 = vrot.slane %v1851, 1
      %v1876 = vrot.slane %v1852, 1
      %v1877 = vrot.slane %v1853, 1
      %v1878 = vrot.slane %v1854, 1
      %v1879 = vrot.slane %v1855, 1
      %v1880 = vrot.slane %v1856, 1
      %v1881 = vrot.slane %v1857, 1
      %v1882 = vrot.slane %v1858, 1
      %v1883 = vsel %vm830, %v1881, %v1882
      %v1884 = vsel %vm830, %v1880, %v1881
      %v1885 = vsel %vm830, %v1879, %v1880
      %v1886 = vsel %vm830, %v1878, %v1879
      %v1887 = vsel %vm830, %v1877, %v1878
      %v1888 = vsel %vm830, %v1876, %v1877
      %v1889 = vsel %vm830, %v1875, %v1876
      %v1890 = vsel %vm830, %v1882, %v1875
      %v1891 = vmul.f32 %v1851, 0.75
      %v1892 = vmul.f32 %v1852, 0.75
      %v1893 = vmul.f32 %v1853, 0.75
      %v1894 = vmul.f32 %v1854, 0.75
      %v1895 = vmul.f32 %v1855, 0.75
      %v1896 = vmul.f32 %v1856, 0.75
      %v1897 = vmul.f32 %v1857, 0.75
      %v1898 = vmul.f32 %v1858, 0.75
      %v1899 = vsel %vm806, %v1851, %v1874
      %v1900 = vsel %vm807, %v1852, %v1873
      %v1901 = vsel %vm808, %v1853, %v1872
      %v1902 = vsel %vm809, %v1854, %v1871
      %v1903 = vsel %vm810, %v1855, %v1870
      %v1904 = vsel %vm811, %v1856, %v1869
      %v1905 = vsel %vm812, %v1857, %v1868
      %v1906 = vsel %vm813, %v1858, %v1867
      %v1907 = vmul.f32 %v1899, 0.25
      %v1908 = vmul.f32 %v1900, 0.25
      %v1909 = vmul.f32 %v1901, 0.25
      %v1910 = vmul.f32 %v1902, 0.25
      %v1911 = vmul.f32 %v1903, 0.25
      %v1912 = vmul.f32 %v1904, 0.25
      %v1913 = vmul.f32 %v1905, 0.25
      %v1914 = vmul.f32 %v1906, 0.25
      %v1915 = vadd.f32 %v1891, %v1907
      %v1916 = vadd.f32 %v1892, %v1908
      %v1917 = vadd.f32 %v1893, %v1909
      %v1918 = vadd.f32 %v1894, %v1910
      %v1919 = vadd.f32 %v1895, %v1911
      %v1920 = vadd.f32 %v1896, %v1912
      %v1921 = vadd.f32 %v1897, %v1913
      %v1922 = vadd.f32 %v1898, %v1914
      %v1923 = vsel %vm847, %v1851, %v1889
      %v1924 = vsel %vm848, %v1852, %v1888
      %v1925 = vsel %vm849, %v1853, %v1887
      %v1926 = vsel %vm850, %v1854, %v1886
      %v1927 = vsel %vm851, %v1855, %v1885
      %v1928 = vsel %vm852, %v1856, %v1884
      %v1929 = vsel %vm853, %v1857, %v1883
      %v1930 = vsel %vm854, %v1858, %v1890
      %v1931 = vmul.f32 %v1923, 0.25
      %v1932 = vmul.f32 %v1924, 0.25
      %v1933 = vmul.f32 %v1925, 0.25
      %v1934 = vmul.f32 %v1926, 0.25
      %v1935 = vmul.f32 %v1927, 0.25
      %v1936 = vmul.f32 %v1928, 0.25
      %v1937 = vmul.f32 %v1929, 0.25
      %v1938 = vmul.f32 %v1930, 0.25
      %v1939 = vadd.f32 %v1891, %v1931
      %v1940 = vadd.f32 %v1892, %v1932
      %v1941 = vadd.f32 %v1893, %v1933
      %v1942 = vadd.f32 %v1894, %v1934
      %v1943 = vadd.f32 %v1895, %v1935
      %v1944 = vadd.f32 %v1896, %v1936
      %v1945 = vadd.f32 %v1897, %v1937
      %v1946 = vadd.f32 %v1898, %v1938
      %v1947 = vsel %vm741, %v1915, %v1922
      %v1948 = vsel %vm742, %v1916, %v1915
      %v1949 = vsel %vm743, %v1917, %v1916
      %v1950 = vsel %vm744, %v1918, %v1917
      %v1951 = vsel %vm745, %v1919, %v1918
      %v1952 = vsel %vm746, %v1920, %v1919
      %v1953 = vsel %vm747, %v1921, %v1920
      %v1954 = vsel %vm748, %v1922, %v1921
      %v1955 = vsel %vm741, %v1939, %v1946
      %v1956 = vsel %vm742, %v1940, %v1939
      %v1957 = vsel %vm743, %v1941, %v1940
      %v1958 = vsel %vm744, %v1942, %v1941
      %v1959 = vsel %vm745, %v1943, %v1942
      %v1960 = vsel %vm746, %v1944, %v1943
      %v1961 = vsel %vm747, %v1945, %v1944
      %v1962 = vsel %vm748, %v1946, %v1945
      %v1963 = vsel %vm765, %v1915, %v1916
      %v1964 = vsel %vm766, %v1916, %v1917
      %v1965 = vsel %vm767, %v1917, %v1918
      %v1966 = vsel %vm768, %v1918, %v1919
      %v1967 = vsel %vm769, %v1919, %v1920
      %v1968 = vsel %vm770, %v1920, %v1921
      %v1969 = vsel %vm771, %v1921, %v1922
      %v1970 = vsel %vm772, %v1922, %v1915
      %v1971 = vsel %vm765, %v1939, %v1940
      %v1972 = vsel %vm766, %v1940, %v1941
      %v1973 = vsel %vm767, %v1941, %v1942
      %v1974 = vsel %vm768, %v1942, %v1943
      %v1975 = vsel %vm769, %v1943, %v1944
      %v1976 = vsel %vm770, %v1944, %v1945
      %v1977 = vsel %vm771, %v1945, %v1946
      %v1978 = vsel %vm772, %v1946, %v1939
      %v1979 = vmul.f32 %v1915, 0.75
      %v1980 = vmul.f32 %v1916, 0.75
      %v1981 = vmul.f32 %v1917, 0.75
      %v1982 = vmul.f32 %v1918, 0.75
      %v1983 = vmul.f32 %v1919, 0.75
      %v1984 = vmul.f32 %v1920, 0.75
      %v1985 = vmul.f32 %v1921, 0.75
      %v1986 = vmul.f32 %v1922, 0.75
      %v1987 = vmul.f32 %v1947, 0.25
      %v1988 = vmul.f32 %v1948, 0.25
      %v1989 = vmul.f32 %v1949, 0.25
      %v1990 = vmul.f32 %v1950, 0.25
      %v1991 = vmul.f32 %v1951, 0.25
      %v1992 = vmul.f32 %v1952, 0.25
      %v1993 = vmul.f32 %v1953, 0.25
      %v1994 = vmul.f32 %v1954, 0.25
      %v1995 = vadd.f32 %v1979, %v1987
      %v1996 = vadd.f32 %v1980, %v1988
      %v1997 = vadd.f32 %v1981, %v1989
      %v1998 = vadd.f32 %v1982, %v1990
      %v1999 = vadd.f32 %v1983, %v1991
      %v2000 = vadd.f32 %v1984, %v1992
      %v2001 = vadd.f32 %v1985, %v1993
      %v2002 = vadd.f32 %v1986, %v1994
      %v2003 = vpack.c.bf16 %v1996, %v1995
      %v2004 = vpack.c.bf16 %v1998, %v1997
      %v2005 = vpack.c.bf16 %v2000, %v1999
      %v2006 = vpack.c.bf16 %v2002, %v2001
      %v2011 = vunpack.c.l.b16 %v2003
      %v2012 = vunpack.c.h.b16 %v2003
      %v2013 = vunpack.c.l.b16 %v2004
      %v2014 = vunpack.c.h.b16 %v2004
      %v2015 = vunpack.c.l.b16 %v2005
      %v2016 = vunpack.c.h.b16 %v2005
      %v2017 = vunpack.c.l.b16 %v2006
      %v2018 = vunpack.c.h.b16 %v2006
      %v2019 = vpack.c.b16 %v2011, %v2011
      %v2020 = vpack.c.b16 %v2012, %v2012
      %v2021 = vpack.c.b16 %v2013, %v2013
      %v2022 = vpack.c.b16 %v2014, %v2014
      %v2023 = vpack.c.b16 %v2015, %v2015
      %v2024 = vpack.c.b16 %v2016, %v2016
      %v2025 = vpack.c.b16 %v2017, %v2017
      %v2026 = vpack.c.b16 %v2018, %v2018
      %vm2035 = vcmask 27648
      %2036 = vst.msk [vmem:[%s278] sm:$0xf] %vm2035, %v2019
      %2037 = vst.msk [vmem:[%s278 + $0x4] sm:$0xf] %vm2035, %v2020
      %2038 = vst.msk [vmem:[%s278 + $0x8] sm:$0xf] %vm2035, %v2021
      %2039 = vst.msk [vmem:[%s278 + $0xc] sm:$0xf] %vm2035, %v2022
      %2040 = vst.msk [vmem:[%s278 + $0x10] sm:$0xf] %vm2035, %v2023
      %2041 = vst.msk [vmem:[%s278 + $0x14] sm:$0xf] %vm2035, %v2024
      %2042 = vst.msk [vmem:[%s278 + $0x18] sm:$0xf] %vm2035, %v2025
      %2043 = vst.msk [vmem:[%s278 + $0x1c] sm:$0xf] %vm2035, %v2026
      %v2044 = vmul.f32 %v1939, 0.75
      %v2045 = vmul.f32 %v1940, 0.75
      %v2046 = vmul.f32 %v1941, 0.75
      %v2047 = vmul.f32 %v1942, 0.75
      %v2048 = vmul.f32 %v1943, 0.75
      %v2049 = vmul.f32 %v1944, 0.75
      %v2050 = vmul.f32 %v1945, 0.75
      %v2051 = vmul.f32 %v1946, 0.75
      %v2052 = vmul.f32 %v1955, 0.25
      %v2053 = vmul.f32 %v1956, 0.25
      %v2054 = vmul.f32 %v1957, 0.25
      %v2055 = vmul.f32 %v1958, 0.25
      %v2056 = vmul.f32 %v1959, 0.25
      %v2057 = vmul.f32 %v1960, 0.25
      %v2058 = vmul.f32 %v1961, 0.25
      %v2059 = vmul.f32 %v1962, 0.25
      %v2060 = vadd.f32 %v2044, %v2052
      %v2061 = vadd.f32 %v2045, %v2053
      %v2062 = vadd.f32 %v2046, %v2054
      %v2063 = vadd.f32 %v2047, %v2055
      %v2064 = vadd.f32 %v2048, %v2056
      %v2065 = vadd.f32 %v2049, %v2057
      %v2066 = vadd.f32 %v2050, %v2058
      %v2067 = vadd.f32 %v2051, %v2059
      %v2068 = vpack.c.bf16 %v2061, %v2060
      %v2069 = vpack.c.bf16 %v2063, %v2062
      %v2070 = vpack.c.bf16 %v2065, %v2064
      %v2071 = vpack.c.bf16 %v2067, %v2066
      %v2076 = vunpack.c.l.b16 %v2068
      %v2077 = vunpack.c.h.b16 %v2068
      %v2078 = vunpack.c.l.b16 %v2069
      %v2079 = vunpack.c.h.b16 %v2069
      %v2080 = vunpack.c.l.b16 %v2070
      %v2081 = vunpack.c.h.b16 %v2070
      %v2082 = vunpack.c.l.b16 %v2071
      %v2083 = vunpack.c.h.b16 %v2071
      %v2084 = vpack.c.b16 %v2076, %v2076
      %v2085 = vpack.c.b16 %v2077, %v2077
      %v2086 = vpack.c.b16 %v2078, %v2078
      %v2087 = vpack.c.b16 %v2079, %v2079
      %v2088 = vpack.c.b16 %v2080, %v2080
      %v2089 = vpack.c.b16 %v2081, %v2081
      %v2090 = vpack.c.b16 %v2082, %v2082
      %v2091 = vpack.c.b16 %v2083, %v2083
      %2092 = vrot.lane.b32.xlu0 %v2084, 4
      %v2093 = vpop.permute.xlu0 %2092
      %2094 = vrot.lane.b32.xlu0 %v2085, 4
      %v2095 = vpop.permute.xlu0 %2094
      %2096 = vrot.lane.b32.xlu0 %v2086, 4
      %v2097 = vpop.permute.xlu0 %2096
      %2098 = vrot.lane.b32.xlu0 %v2087, 4
      %v2099 = vpop.permute.xlu0 %2098
      %2100 = vrot.lane.b32.xlu0 %v2088, 4
      %v2101 = vpop.permute.xlu0 %2100
      %2102 = vrot.lane.b32.xlu0 %v2089, 4
      %v2103 = vpop.permute.xlu0 %2102
      %2104 = vrot.lane.b32.xlu0 %v2090, 4
      %v2105 = vpop.permute.xlu0 %2104
      %2106 = vrot.lane.b32.xlu0 %v2091, 4
      %v2107 = vpop.permute.xlu0 %2106
      %vm2116 = vcmask 60448
      %2117 = vst.msk [vmem:[%s278] sm:$0xf] %vm2116, %v2093
      %2118 = vst.msk [vmem:[%s278 + $0x4] sm:$0xf] %vm2116, %v2095
      %2119 = vst.msk [vmem:[%s278 + $0x8] sm:$0xf] %vm2116, %v2097
      %2120 = vst.msk [vmem:[%s278 + $0xc] sm:$0xf] %vm2116, %v2099
      %2121 = vst.msk [vmem:[%s278 + $0x10] sm:$0xf] %vm2116, %v2101
      %2122 = vst.msk [vmem:[%s278 + $0x14] sm:$0xf] %vm2116, %v2103
      %2123 = vst.msk [vmem:[%s278 + $0x18] sm:$0xf] %vm2116, %v2105
      %2124 = vst.msk [vmem:[%s278 + $0x1c] sm:$0xf] %vm2116, %v2107
      %v2125 = vmul.f32 %v1963, 0.25
      %v2126 = vmul.f32 %v1964, 0.25
      %v2127 = vmul.f32 %v1965, 0.25
      %v2128 = vmul.f32 %v1966, 0.25
      %v2129 = vmul.f32 %v1967, 0.25
      %v2130 = vmul.f32 %v1968, 0.25
      %v2131 = vmul.f32 %v1969, 0.25
      %v2132 = vmul.f32 %v1970, 0.25
      %v2133 = vadd.f32 %v1979, %v2125
      %v2134 = vadd.f32 %v1980, %v2126
      %v2135 = vadd.f32 %v1981, %v2127
      %v2136 = vadd.f32 %v1982, %v2128
      %v2137 = vadd.f32 %v1983, %v2129
      %v2138 = vadd.f32 %v1984, %v2130
      %v2139 = vadd.f32 %v1985, %v2131
      %v2140 = vadd.f32 %v1986, %v2132
      %v2141 = vpack.c.bf16 %v2134, %v2133
      %v2142 = vpack.c.bf16 %v2136, %v2135
      %v2143 = vpack.c.bf16 %v2138, %v2137
      %v2144 = vpack.c.bf16 %v2140, %v2139
      %v2149 = vunpack.c.l.b16 %v2141
      %v2150 = vunpack.c.h.b16 %v2141
      %v2151 = vunpack.c.l.b16 %v2142
      %v2152 = vunpack.c.h.b16 %v2142
      %v2153 = vunpack.c.l.b16 %v2143
      %v2154 = vunpack.c.h.b16 %v2143
      %v2155 = vunpack.c.l.b16 %v2144
      %v2156 = vunpack.c.h.b16 %v2144
      %v2157 = vpack.c.b16 %v2149, %v2149
      %v2158 = vpack.c.b16 %v2150, %v2150
      %v2159 = vpack.c.b16 %v2151, %v2151
      %v2160 = vpack.c.b16 %v2152, %v2152
      %v2161 = vpack.c.b16 %v2153, %v2153
      %v2162 = vpack.c.b16 %v2154, %v2154
      %v2163 = vpack.c.b16 %v2155, %v2155
      %v2164 = vpack.c.b16 %v2156, %v2156
      %2165 = vrot.lane.b32.xlu0 %v2157, 8
      %v2166 = vpop.permute.xlu0 %2165
      %2167 = vrot.lane.b32.xlu0 %v2158, 8
      %v2168 = vpop.permute.xlu0 %2167
      %2169 = vrot.lane.b32.xlu0 %v2159, 8
      %v2170 = vpop.permute.xlu0 %2169
      %2171 = vrot.lane.b32.xlu0 %v2160, 8
      %v2172 = vpop.permute.xlu0 %2171
      %2173 = vrot.lane.b32.xlu0 %v2161, 8
      %v2174 = vpop.permute.xlu0 %2173
      %2175 = vrot.lane.b32.xlu0 %v2162, 8
      %v2176 = vpop.permute.xlu0 %2175
      %2177 = vrot.lane.b32.xlu0 %v2163, 8
      %v2178 = vpop.permute.xlu0 %2177
      %2179 = vrot.lane.b32.xlu0 %v2164, 8
      %v2180 = vpop.permute.xlu0 %2179
      %vm2189 = vcmask 93248
      %2190 = vst.msk [vmem:[%s278] sm:$0xf] %vm2189, %v2166
      %2191 = vst.msk [vmem:[%s278 + $0x4] sm:$0xf] %vm2189, %v2168
      %2192 = vst.msk [vmem:[%s278 + $0x8] sm:$0xf] %vm2189, %v2170
      %2193 = vst.msk [vmem:[%s278 + $0xc] sm:$0xf] %vm2189, %v2172
      %2194 = vst.msk [vmem:[%s278 + $0x10] sm:$0xf] %vm2189, %v2174
      %2195 = vst.msk [vmem:[%s278 + $0x14] sm:$0xf] %vm2189, %v2176
      %2196 = vst.msk [vmem:[%s278 + $0x18] sm:$0xf] %vm2189, %v2178
      %2197 = vst.msk [vmem:[%s278 + $0x1c] sm:$0xf] %vm2189, %v2180
      %v2198 = vmul.f32 %v1971, 0.25
      %v2199 = vmul.f32 %v1972, 0.25
      %v2200 = vmul.f32 %v1973, 0.25
      %v2201 = vmul.f32 %v1974, 0.25
      %v2202 = vmul.f32 %v1975, 0.25
      %v2203 = vmul.f32 %v1976, 0.25
      %v2204 = vmul.f32 %v1977, 0.25
      %v2205 = vmul.f32 %v1978, 0.25
      %v2206 = vadd.f32 %v2044, %v2198
      %v2207 = vadd.f32 %v2045, %v2199
      %v2208 = vadd.f32 %v2046, %v2200
      %v2209 = vadd.f32 %v2047, %v2201
      %v2210 = vadd.f32 %v2048, %v2202
      %v2211 = vadd.f32 %v2049, %v2203
      %v2212 = vadd.f32 %v2050, %v2204
      %v2213 = vadd.f32 %v2051, %v2205
      %v2214 = vpack.c.bf16 %v2207, %v2206
      %v2215 = vpack.c.bf16 %v2209, %v2208
      %v2216 = vpack.c.bf16 %v2211, %v2210
      %v2217 = vpack.c.bf16 %v2213, %v2212
      %v2222 = vunpack.c.l.b16 %v2214
      %v2223 = vunpack.c.h.b16 %v2214
      %v2224 = vunpack.c.l.b16 %v2215
      %v2225 = vunpack.c.h.b16 %v2215
      %v2226 = vunpack.c.l.b16 %v2216
      %v2227 = vunpack.c.h.b16 %v2216
      %v2228 = vunpack.c.l.b16 %v2217
      %v2229 = vunpack.c.h.b16 %v2217
      %v2230 = vpack.c.b16 %v2222, %v2222
      %v2231 = vpack.c.b16 %v2223, %v2223
      %v2232 = vpack.c.b16 %v2224, %v2224
      %v2233 = vpack.c.b16 %v2225, %v2225
      %v2234 = vpack.c.b16 %v2226, %v2226
      %v2235 = vpack.c.b16 %v2227, %v2227
      %v2236 = vpack.c.b16 %v2228, %v2228
      %v2237 = vpack.c.b16 %v2229, %v2229
      %2238 = vrot.lane.b32.xlu0 %v2230, 12
      %v2239 = vpop.permute.xlu0 %2238
      %2240 = vrot.lane.b32.xlu0 %v2231, 12
      %v2241 = vpop.permute.xlu0 %2240
      %2242 = vrot.lane.b32.xlu0 %v2232, 12
      %v2243 = vpop.permute.xlu0 %2242
      %2244 = vrot.lane.b32.xlu0 %v2233, 12
      %v2245 = vpop.permute.xlu0 %2244
      %2246 = vrot.lane.b32.xlu0 %v2234, 12
      %v2247 = vpop.permute.xlu0 %2246
      %2248 = vrot.lane.b32.xlu0 %v2235, 12
      %v2249 = vpop.permute.xlu0 %2248
      %2250 = vrot.lane.b32.xlu0 %v2236, 12
      %v2251 = vpop.permute.xlu0 %2250
      %2252 = vrot.lane.b32.xlu0 %v2237, 12
      %v2253 = vpop.permute.xlu0 %2252
      %vm2262 = vcmask 126048
      %2263 = vst.msk [vmem:[%s278] sm:$0xf] %vm2262, %v2239
      %2264 = vst.msk [vmem:[%s278 + $0x4] sm:$0xf] %vm2262, %v2241
      %2265 = vst.msk [vmem:[%s278 + $0x8] sm:$0xf] %vm2262, %v2243
      %2266 = vst.msk [vmem:[%s278 + $0xc] sm:$0xf] %vm2262, %v2245
      %2267 = vst.msk [vmem:[%s278 + $0x10] sm:$0xf] %vm2262, %v2247
      %2268 = vst.msk [vmem:[%s278 + $0x14] sm:$0xf] %vm2262, %v2249
      %2269 = vst.msk [vmem:[%s278 + $0x18] sm:$0xf] %vm2262, %v2251
      %2270 = vst.msk [vmem:[%s278 + $0x1c] sm:$0xf] %vm2262, %v2253
      %p2271 = scmp.lt.s32.totalorder %s18, 1
      %s2272 = scalar_select %p2271, %s18, 1
      %s2273 = smul.addr %s2272, 8
      %s2274 = smul.addr %s2273, 4
      %s2275 = scalar_lea.vmem %s7, %s2274
      // Predicated region
      $region49: #{rfb_forward.2} parent=47 // pred_check
        %p2276 = pneg %p188
      $region50: #{rfb_forward.2} parent=47 // pred_check_branch
        %2278 = sbr.rel (%p2276) target = $region52
      $region51: #{rfb_forward.2} parent=47 // pred_region
        _
      $region52: #{rfb_forward.2} parent=47 // pred_fallthru
        _
    $region48: #{rfb_forward.2} parent=5 // pred_fallthru
      _
    %p2279 = scmp.le.s32.totalorder 2, %s13
    // Predicated region
    $region53: #{rfb_forward.2} parent=5 // pred_check
      %p2280 = pneg %p2279
    $region54: #{rfb_forward.2} parent=5 // pred_check_branch
      %2282 = sbr.rel (%p2280) target = $region56
    $region55: #{rfb_forward.2} parent=5 // pred_region
      %s2283 = ssub.s32 %s13, 2
      // Predicated region
      $region57: #{rfb_forward.2} parent=55 // pred_check
        %p2284 = pneg %p194
      $region58: #{rfb_forward.2} parent=55 // pred_check_branch
        %2286 = sbr.rel (%p2284) target = $region60
      $region59: #{rfb_forward.2} parent=55 // pred_region
        %p2287 = scmp.lt.s32.totalorder %s19, 1
        %s2288 = scalar_select %p2287, %s19, 1
        %s2289 = smul.addr %s2288, 8
        %s2290 = smul.addr %s2289, 4
        %s2291 = scalar_lea.vmem %s7, %s2290
      $region60: #{rfb_forward.2} parent=55 // pred_fallthru
        _
    $region56: #{rfb_forward.2} parent=5 // pred_fallthru
      _
  $region6: #{rfb_forward.2} parent=0 // loop_footer
    %s17 = sadd.s32 1, %s13
  $region7: #{rfb_forward.2} parent=0 // loop_footer_branch
    %12 = sbr.rel target = $region3
  $region8: #{rfb_forward.2} parent=0 // loop_exit
    _

// kernel: rfb_forward.3
$region0: #{rfb_forward.3}
  #allocation0 [shape = 'u32[]', space=smem, size = 0x4, offset = 0x4, fixed_abs, tag = 'smem constant byte address 0x4 - core index']
  #allocation1 [shape = 'u32[144,128]{1,0:T(1,128)}', space=vmem, size = 0x12000, scoped, tag = 'internal scratch']
  %s0 = inlined_call_operand.vmem [shape: bf16[512,4], index: 0, kind: input, shape index: {}]
  %s1 = inlined_call_operand.vmem [shape: bf16[512,4], index: 1, kind: input, shape index: {}]
  %s2 = inlined_call_operand.vmem [shape: bf16[4,4], index: 2, kind: input, shape index: {}]
  %s3 = inlined_call_operand.vmem [shape: bf16[4,4], index: 3, kind: input, shape index: {}]
  %s4 = inlined_call_operand.vmem [shape: f32[1,4], index: 4, kind: input, shape index: {}]
  %s5 = inlined_call_operand.vmem [shape: f32[512,4], index: 5, kind: output, shape index: {}]
  %s6 = sld [smem:[#allocation0]]
  $region30: #{rfb_forward.3} parent=0
    _
  %s8 = ssub.s32 1, %s6
  %s9 = scalar_select 0, %s8, %s6
  // Predicated region
  $region2: #{rfb_forward.3} parent=0 // pred_check
    _
  $region3: #{rfb_forward.3} parent=0 // pred_check_branch
    %11 = sbr.rel (0) target = $region5
  $region4: #{rfb_forward.3} parent=0 // pred_region
    _
  $region5: #{rfb_forward.3} parent=0 // pred_fallthru
    _
  // Predicated region
  $region6: #{rfb_forward.3} parent=0 // pred_check
    _
  $region7: #{rfb_forward.3} parent=0 // pred_check_branch
    %13 = sbr.rel (0) target = $region9
  $region8: #{rfb_forward.3} parent=0 // pred_region
    _
  $region9: #{rfb_forward.3} parent=0 // pred_fallthru
    _
  // Predicated region
  $region10: #{rfb_forward.3} parent=0 // pred_check
    _
  $region11: #{rfb_forward.3} parent=0 // pred_check_branch
    %15 = sbr.rel (0) target = $region13
  $region12: #{rfb_forward.3} parent=0 // pred_region
    _
  $region13: #{rfb_forward.3} parent=0 // pred_fallthru
    _
  // Predicated region
  $region14: #{rfb_forward.3} parent=0 // pred_check
    _
  $region15: #{rfb_forward.3} parent=0 // pred_check_branch
    %17 = sbr.rel (0) target = $region17
  $region16: #{rfb_forward.3} parent=0 // pred_region
    _
  $region17: #{rfb_forward.3} parent=0 // pred_fallthru
    _
  // Predicated region
  $region18: #{rfb_forward.3} parent=0 // pred_check
    _
  $region19: #{rfb_forward.3} parent=0 // pred_check_branch
    %19 = sbr.rel (0) target = $region21
  $region20: #{rfb_forward.3} parent=0 // pred_region
    _
  $region21: #{rfb_forward.3} parent=0 // pred_fallthru
    _
  %v21 = vld [vmem:[%s0] sm:$0xf]
  %v22 = vld [vmem:[%s0 + $0x4] sm:$0xf]
  %v23 = vld [vmem:[%s0 + $0x8] sm:$0xf]
  %v24 = vld [vmem:[%s0 + $0xc] sm:$0xf]
  %v25 = vld [vmem:[%s0 + $0x10] sm:$0xf]
  %v26 = vld [vmem:[%s0 + $0x14] sm:$0xf]
  %v27 = vld [vmem:[%s0 + $0x18] sm:$0xf]
  %v28 = vld [vmem:[%s0 + $0x1c] sm:$0xf]
  %v29 = vld [vmem:[%s0 + $0x20] sm:$0xf]
  %v30 = vld [vmem:[%s0 + $0x24] sm:$0xf]
  %v31 = vld [vmem:[%s0 + $0x28] sm:$0xf]
  %v32 = vld [vmem:[%s0 + $0x2c] sm:$0xf]
  %v33 = vld [vmem:[%s0 + $0x30] sm:$0xf]
  %v34 = vld [vmem:[%s0 + $0x34] sm:$0xf]
  %v35 = vld [vmem:[%s0 + $0x38] sm:$0xf]
  %v36 = vld [vmem:[%s0 + $0x3c] sm:$0xf]
  %v37 = vld [vmem:[%s0 + $0x40] sm:$0xf]
  %v38 = vld [vmem:[%s0 + $0x44] sm:$0xf]
  %v39 = vld [vmem:[%s0 + $0x48] sm:$0xf]
  %v40 = vld [vmem:[%s0 + $0x4c] sm:$0xf]
  %v41 = vld [vmem:[%s0 + $0x50] sm:$0xf]
  %v42 = vld [vmem:[%s0 + $0x54] sm:$0xf]
  %v43 = vld [vmem:[%s0 + $0x58] sm:$0xf]
  %v44 = vld [vmem:[%s0 + $0x5c] sm:$0xf]
  %v45 = vld [vmem:[%s0 + $0x60] sm:$0xf]
  %v46 = vld [vmem:[%s0 + $0x64] sm:$0xf]
  %v47 = vld [vmem:[%s0 + $0x68] sm:$0xf]
  %v48 = vld [vmem:[%s0 + $0x6c] sm:$0xf]
  %v49 = vld [vmem:[%s0 + $0x70] sm:$0xf]
  %v50 = vld [vmem:[%s0 + $0x74] sm:$0xf]
  %v51 = vld [vmem:[%s0 + $0x78] sm:$0xf]
  %v52 = vld [vmem:[%s0 + $0x7c] sm:$0xf]
  %v53 = vld [vmem:[%s0 + $0x80] sm:$0xf]
  %v54 = vld [vmem:[%s0 + $0x84] sm:$0xf]
  %v55 = vld [vmem:[%s0 + $0x88] sm:$0xf]
  %v56 = vld [vmem:[%s0 + $0x8c] sm:$0xf]
  %v57 = vld [vmem:[%s0 + $0x90] sm:$0xf]
  %v58 = vld [vmem:[%s0 + $0x94] sm:$0xf]
  %v59 = vld [vmem:[%s0 + $0x98] sm:$0xf]
  %v60 = vld [vmem:[%s0 + $0x9c] sm:$0xf]
  %v61 = vld [vmem:[%s0 + $0xa0] sm:$0xf]
  %v62 = vld [vmem:[%s0 + $0xa4] sm:$0xf]
  %v63 = vld [vmem:[%s0 + $0xa8] sm:$0xf]
  %v64 = vld [vmem:[%s0 + $0xac] sm:$0xf]
  %v65 = vld [vmem:[%s0 + $0xb0] sm:$0xf]
  %v66 = vld [vmem:[%s0 + $0xb4] sm:$0xf]
  %v67 = vld [vmem:[%s0 + $0xb8] sm:$0xf]
  %v68 = vld [vmem:[%s0 + $0xbc] sm:$0xf]
  %v69 = vld [vmem:[%s0 + $0xc0] sm:$0xf]
  %v70 = vld [vmem:[%s0 + $0xc4] sm:$0xf]
  %v71 = vld [vmem:[%s0 + $0xc8] sm:$0xf]
  %v72 = vld [vmem:[%s0 + $0xcc] sm:$0xf]
  %v73 = vld [vmem:[%s0 + $0xd0] sm:$0xf]
  %v74 = vld [vmem:[%s0 + $0xd4] sm:$0xf]
  %v75 = vld [vmem:[%s0 + $0xd8] sm:$0xf]
  %v76 = vld [vmem:[%s0 + $0xdc] sm:$0xf]
  %v77 = vld [vmem:[%s0 + $0xe0] sm:$0xf]
  %v78 = vld [vmem:[%s0 + $0xe4] sm:$0xf]
  %v79 = vld [vmem:[%s0 + $0xe8] sm:$0xf]
  %v80 = vld [vmem:[%s0 + $0xec] sm:$0xf]
  %v81 = vld [vmem:[%s0 + $0xf0] sm:$0xf]
  %v82 = vld [vmem:[%s0 + $0xf4] sm:$0xf]
  %v83 = vld [vmem:[%s0 + $0xf8] sm:$0xf]
  %v84 = vld [vmem:[%s0 + $0xfc] sm:$0xf]
  %v85 = vld [vmem:[%s2] sm:$0x3]
  %v86 = vld [vmem:[%s1] sm:$0xf]
  %v87 = vld [vmem:[%s1 + $0x4] sm:$0xf]
  %v88 = vld [vmem:[%s1 + $0x8] sm:$0xf]
  %v89 = vld [vmem:[%s1 + $0xc] sm:$0xf]
  %v90 = vld [vmem:[%s1 + $0x10] sm:$0xf]
  %v91 = vld [vmem:[%s1 + $0x14] sm:$0xf]
  %v92 = vld [vmem:[%s1 + $0x18] sm:$0xf]
  %v93 = vld [vmem:[%s1 + $0x1c] sm:$0xf]
  %v94 = vld [vmem:[%s1 + $0x20] sm:$0xf]
  %v95 = vld [vmem:[%s1 + $0x24] sm:$0xf]
  %v96 = vld [vmem:[%s1 + $0x28] sm:$0xf]
  %v97 = vld [vmem:[%s1 + $0x2c] sm:$0xf]
  %v98 = vld [vmem:[%s1 + $0x30] sm:$0xf]
  %v99 = vld [vmem:[%s1 + $0x34] sm:$0xf]
  %v100 = vld [vmem:[%s1 + $0x38] sm:$0xf]
  %v101 = vld [vmem:[%s1 + $0x3c] sm:$0xf]
  %v102 = vld [vmem:[%s1 + $0x40] sm:$0xf]
  %v103 = vld [vmem:[%s1 + $0x44] sm:$0xf]
  %v104 = vld [vmem:[%s1 + $0x48] sm:$0xf]
  %v105 = vld [vmem:[%s1 + $0x4c] sm:$0xf]
  %v106 = vld [vmem:[%s1 + $0x50] sm:$0xf]
  %v107 = vld [vmem:[%s1 + $0x54] sm:$0xf]
  %v108 = vld [vmem:[%s1 + $0x58] sm:$0xf]
  %v109 = vld [vmem:[%s1 + $0x5c] sm:$0xf]
  %v110 = vld [vmem:[%s1 + $0x60] sm:$0xf]
  %v111 = vld [vmem:[%s1 + $0x64] sm:$0xf]
  %v112 = vld [vmem:[%s1 + $0x68] sm:$0xf]
  %v113 = vld [vmem:[%s1 + $0x6c] sm:$0xf]
  %v114 = vld [vmem:[%s1 + $0x70] sm:$0xf]
  %v115 = vld [vmem:[%s1 + $0x74] sm:$0xf]
  %v116 = vld [vmem:[%s1 + $0x78] sm:$0xf]
  %v117 = vld [vmem:[%s1 + $0x7c] sm:$0xf]
  %v118 = vld [vmem:[%s1 + $0x80] sm:$0xf]
  %v119 = vld [vmem:[%s1 + $0x84] sm:$0xf]
  %v120 = vld [vmem:[%s1 + $0x88] sm:$0xf]
  %v121 = vld [vmem:[%s1 + $0x8c] sm:$0xf]
  %v122 = vld [vmem:[%s1 + $0x90] sm:$0xf]
  %v123 = vld [vmem:[%s1 + $0x94] sm:$0xf]
  %v124 = vld [vmem:[%s1 + $0x98] sm:$0xf]
  %v125 = vld [vmem:[%s1 + $0x9c] sm:$0xf]
  %v126 = vld [vmem:[%s1 + $0xa0] sm:$0xf]
  %v127 = vld [vmem:[%s1 + $0xa4] sm:$0xf]
  %v128 = vld [vmem:[%s1 + $0xa8] sm:$0xf]
  %v129 = vld [vmem:[%s1 + $0xac] sm:$0xf]
  %v130 = vld [vmem:[%s1 + $0xb0] sm:$0xf]
  %v131 = vld [vmem:[%s1 + $0xb4] sm:$0xf]
  %v132 = vld [vmem:[%s1 + $0xb8] sm:$0xf]
  %v133 = vld [vmem:[%s1 + $0xbc] sm:$0xf]
  %v134 = vld [vmem:[%s1 + $0xc0] sm:$0xf]
  %v135 = vld [vmem:[%s1 + $0xc4] sm:$0xf]
  %v136 = vld [vmem:[%s1 + $0xc8] sm:$0xf]
  %v137 = vld [vmem:[%s1 + $0xcc] sm:$0xf]
  %v138 = vld [vmem:[%s1 + $0xd0] sm:$0xf]
  %v139 = vld [vmem:[%s1 + $0xd4] sm:$0xf]
  %v140 = vld [vmem:[%s1 + $0xd8] sm:$0xf]
  %v141 = vld [vmem:[%s1 + $0xdc] sm:$0xf]
  %v142 = vld [vmem:[%s1 + $0xe0] sm:$0xf]
  %v143 = vld [vmem:[%s1 + $0xe4] sm:$0xf]
  %v144 = vld [vmem:[%s1 + $0xe8] sm:$0xf]
  %v145 = vld [vmem:[%s1 + $0xec] sm:$0xf]
  %v146 = vld [vmem:[%s1 + $0xf0] sm:$0xf]
  %v147 = vld [vmem:[%s1 + $0xf4] sm:$0xf]
  %v148 = vld [vmem:[%s1 + $0xf8] sm:$0xf]
  %v149 = vld [vmem:[%s1 + $0xfc] sm:$0xf]
  %v150 = vld [vmem:[%s3] sm:$0x3]
  %v215 = vunpack.c.l.b16 %v86
  %v216 = vunpack.c.l.b16 %v87
  %v217 = vunpack.c.l.b16 %v88
  %v218 = vunpack.c.l.b16 %v89
  %v219 = vunpack.c.l.b16 %v90
  %v220 = vunpack.c.l.b16 %v91
  %v221 = vunpack.c.l.b16 %v92
  %v222 = vunpack.c.l.b16 %v93
  %v223 = vunpack.c.l.b16 %v94
  %v224 = vunpack.c.l.b16 %v95
  %v225 = vunpack.c.l.b16 %v96
  %v226 = vunpack.c.l.b16 %v97
  %v227 = vunpack.c.l.b16 %v98
  %v228 = vunpack.c.l.b16 %v99
  %v229 = vunpack.c.l.b16 %v100
  %v230 = vunpack.c.l.b16 %v101
  %v231 = vunpack.c.l.b16 %v102
  %v232 = vunpack.c.l.b16 %v103
  %v233 = vunpack.c.l.b16 %v104
  %v234 = vunpack.c.l.b16 %v105
  %v235 = vunpack.c.l.b16 %v106
  %v236 = vunpack.c.l.b16 %v107
  %v237 = vunpack.c.l.b16 %v108
  %v238 = vunpack.c.l.b16 %v109
  %v239 = vunpack.c.l.b16 %v110
  %v240 = vunpack.c.l.b16 %v111
  %v241 = vunpack.c.l.b16 %v112
  %v242 = vunpack.c.l.b16 %v113
  %v243 = vunpack.c.l.b16 %v114
  %v244 = vunpack.c.l.b16 %v115
  %v245 = vunpack.c.l.b16 %v116
  %v246 = vunpack.c.l.b16 %v117
  %v247 = vunpack.c.l.b16 %v118
  %v248 = vunpack.c.l.b16 %v119
  %v249 = vunpack.c.l.b16 %v120
  %v250 = vunpack.c.l.b16 %v121
  %v251 = vunpack.c.l.b16 %v122
  %v252 = vunpack.c.l.b16 %v123
  %v253 = vunpack.c.l.b16 %v124
  %v254 = vunpack.c.l.b16 %v125
  %v255 = vunpack.c.l.b16 %v126
  %v256 = vunpack.c.l.b16 %v127
  %v257 = vunpack.c.l.b16 %v128
  %v258 = vunpack.c.l.b16 %v129
  %v259 = vunpack.c.l.b16 %v130
  %v260 = vunpack.c.l.b16 %v131
  %v261 = vunpack.c.l.b16 %v132
  %v262 = vunpack.c.l.b16 %v133
  %v263 = vunpack.c.l.b16 %v134
  %v264 = vunpack.c.l.b16 %v135
  %v265 = vunpack.c.l.b16 %v136
  %v266 = vunpack.c.l.b16 %v137
  %v267 = vunpack.c.l.b16 %v138
  %v268 = vunpack.c.l.b16 %v139
  %v269 = vunpack.c.l.b16 %v140
  %v270 = vunpack.c.l.b16 %v141
  %v271 = vunpack.c.l.b16 %v142
  %v272 = vunpack.c.l.b16 %v143
  %v273 = vunpack.c.l.b16 %v144
  %v274 = vunpack.c.l.b16 %v145
  %v275 = vunpack.c.l.b16 %v146
  %v276 = vunpack.c.l.b16 %v147
  %v277 = vunpack.c.l.b16 %v148
  %v278 = vunpack.c.l.b16 %v149
  %v279 = vpack.c.b16 %v216, %v215
  %v280 = vpack.c.b16 %v218, %v217
  %v281 = vpack.c.b16 %v220, %v219
  %v282 = vpack.c.b16 %v222, %v221
  %v283 = vpack.c.b16 %v224, %v223
  %v284 = vpack.c.b16 %v226, %v225
  %v285 = vpack.c.b16 %v228, %v227
  %v286 = vpack.c.b16 %v230, %v229
  %v287 = vpack.c.b16 %v232, %v231
  %v288 = vpack.c.b16 %v234, %v233
  %v289 = vpack.c.b16 %v236, %v235
  %v290 = vpack.c.b16 %v238, %v237
  %v291 = vpack.c.b16 %v240, %v239
  %v292 = vpack.c.b16 %v242, %v241
  %v293 = vpack.c.b16 %v244, %v243
  %v294 = vpack.c.b16 %v246, %v245
  %v295 = vpack.c.b16 %v248, %v247
  %v296 = vpack.c.b16 %v250, %v249
  %v297 = vpack.c.b16 %v252, %v251
  %v298 = vpack.c.b16 %v254, %v253
  %v299 = vpack.c.b16 %v256, %v255
  %v300 = vpack.c.b16 %v258, %v257
  %v301 = vpack.c.b16 %v260, %v259
  %v302 = vpack.c.b16 %v262, %v261
  %v303 = vpack.c.b16 %v264, %v263
  %v304 = vpack.c.b16 %v266, %v265
  %v305 = vpack.c.b16 %v268, %v267
  %v306 = vpack.c.b16 %v270, %v269
  %v307 = vpack.c.b16 %v272, %v271
  %v308 = vpack.c.b16 %v274, %v273
  %v309 = vpack.c.b16 %v276, %v275
  %v310 = vpack.c.b16 %v278, %v277
  %vm311 = vcmask 31744
  %v313 = vsel %vm311, %v279, 0
  %v316 = vsel %vm311, %v280, 0
  %v319 = vsel %vm311, %v281, 0
  %v322 = vsel %vm311, %v282, 0
  %v325 = vsel %vm311, %v283, 0
  %v328 = vsel %vm311, %v284, 0
  %v331 = vsel %vm311, %v285, 0
  %v334 = vsel %vm311, %v286, 0
  %v337 = vsel %vm311, %v287, 0
  %v340 = vsel %vm311, %v288, 0
  %v343 = vsel %vm311, %v289, 0
  %v346 = vsel %vm311, %v290, 0
  %v349 = vsel %vm311, %v291, 0
  %v352 = vsel %vm311, %v292, 0
  %v355 = vsel %vm311, %v293, 0
  %v358 = vsel %vm311, %v294, 0
  %v361 = vsel %vm311, %v295, 0
  %v364 = vsel %vm311, %v296, 0
  %v367 = vsel %vm311, %v297, 0
  %v370 = vsel %vm311, %v298, 0
  %v373 = vsel %vm311, %v299, 0
  %v376 = vsel %vm311, %v300, 0
  %v379 = vsel %vm311, %v301, 0
  %v382 = vsel %vm311, %v302, 0
  %v385 = vsel %vm311, %v303, 0
  %v388 = vsel %vm311, %v304, 0
  %v391 = vsel %vm311, %v305, 0
  %v394 = vsel %vm311, %v306, 0
  %v397 = vsel %vm311, %v307, 0
  %v400 = vsel %vm311, %v308, 0
  %v403 = vsel %vm311, %v309, 0
  %v406 = vsel %vm311, %v310, 0
  %vm408 = vcmask 1041408
  %v410 = vsel %vm408, %v150, 0
  %412 = vmatprep.subr.bf16.mxu0 0
  %413 = vmatpush1.bf16.msra.mxu0 %v410
  %414 = vmatprep.subr.bf16.mxu0 0
  %415 = vmatpush1.bf16.msra.mxu0 0
  %416 = vmatprep.subr.bf16.mxu0 0
  %417 = vmatpush1.bf16.msra.mxu0 0
  %418 = vmatprep.subr.bf16.mxu0 0
  %419 = vmatpush1.bf16.msra.mxu0 0
  %420 = vmatprep.subr.bf16.mxu0 0
  %421 = vmatpush1.bf16.msra.mxu0 0
  %422 = vmatprep.subr.bf16.mxu0 0
  %423 = vmatpush1.bf16.msra.mxu0 0
  %424 = vmatprep.subr.bf16.mxu0 0
  %425 = vmatpush1.bf16.msra.mxu0 0
  %426 = vmatprep.subr.bf16.mxu0 0
  %427 = vmatpush1.bf16.msra.mxu0 0
  %428 = vmatprep.subr.bf16.mxu0 0
  %429 = vmatpush1.bf16.msra.mxu0 0
  %430 = vmatprep.subr.bf16.mxu0 0
  %431 = vmatpush1.bf16.msra.mxu0 0
  %432 = vmatprep.subr.bf16.mxu0 0
  %433 = vmatpush1.bf16.msra.mxu0 0
  %434 = vmatprep.subr.bf16.mxu0 0
  %435 = vmatpush1.bf16.msra.mxu0 0
  %436 = vmatprep.subr.bf16.mxu0 0
  %437 = vmatpush1.bf16.msra.mxu0 0
  %438 = vmatprep.subr.bf16.mxu0 0
  %439 = vmatpush1.bf16.msra.mxu0 0
  %440 = vmatprep.subr.bf16.mxu0 0
  %441 = vmatpush1.bf16.msra.mxu0 0
  %442 = vmatprep.subr.bf16.mxu0 0
  %443 = vmatpush1.bf16.msra.mxu0 0
  %444 = vmatprep.mubr.bf16.mxu0 0
  %445 = vmatmul.mubr.bf16.gmra.mrb[0].mxu0 %v313
  %v446 = vpop.f32.mrb[0].mxu0
  %v447 = vadd.f32 0.0, %v446
  %v448 = vpop.f32.mrb[0].mxu0
  %v449 = vpop.f32.mrb[0].mxu0
  %v450 = vadd.f32 0.0, %v449
  %v451 = vpop.f32.mrb[0].mxu0
  %452 = vmatprep.mubr.bf16.mxu0 0
  %453 = vmatmul.mubr.bf16.gmra.mrb[0].mxu0 %v316
  %v454 = vpop.f32.mrb[0].mxu0
  %v455 = vadd.f32 0.0, %v454
  %v456 = vpop.f32.mrb[0].mxu0
  %v457 = vpop.f32.mrb[0].mxu0
  %v458 = vadd.f32 0.0, %v457
  %v459 = vpop.f32.mrb[0].mxu0
  %460 = vmatprep.mubr.bf16.mxu0 0
  %461 = vmatmul.mubr.bf16.gmra.mrb[0].mxu0 %v319
  %v462 = vpop.f32.mrb[0].mxu0
  %v463 = vadd.f32 0.0, %v462
  %v464 = vpop.f32.mrb[0].mxu0
  %v465 = vpop.f32.mrb[0].mxu0
  %v466 = vadd.f32 0.0, %v465
  %v467 = vpop.f32.mrb[0].mxu0
  %468 = vmatprep.mubr.bf16.mxu0 0
  %469 = vmatmul.mubr.bf16.gmra.mrb[0].mxu0 %v322
  %v470 = vpop.f32.mrb[0].mxu0
  %v471 = vadd.f32 0.0, %v470
  %v472 = vpop.f32.mrb[0].mxu0
  %v473 = vpop.f32.mrb[0].mxu0
  %v474 = vadd.f32 0.0, %v473
  %v475 = vpop.f32.mrb[0].mxu0
  %476 = vmatprep.mubr.bf16.mxu0 0
  %477 = vmatmul.mubr.bf16.gmra.mrb[0].mxu0 %v325
  %v478 = vpop.f32.mrb[0].mxu0
  %v479 = vadd.f32 0.0, %v478
  %v480 = vpop.f32.mrb[0].mxu0
  %v481 = vpop.f32.mrb[0].mxu0
  %v482 = vadd.f32 0.0, %v481
  %v483 = vpop.f32.mrb[0].mxu0
  %484 = vmatprep.mubr.bf16.mxu0 0
  %485 = vmatmul.mubr.bf16.gmra.mrb[0].mxu0 %v328
  %v486 = vpop.f32.mrb[0].mxu0
  %v487 = vadd.f32 0.0, %v486
  %v488 = vpop.f32.mrb[0].mxu0
  %v489 = vpop.f32.mrb[0].mxu0
  %v490 = vadd.f32 0.0, %v489
  %v491 = vpop.f32.mrb[0].mxu0
  %492 = vmatprep.mubr.bf16.mxu0 0
  %493 = vmatmul.mubr.bf16.gmra.mrb[0].mxu0 %v331
  %v494 = vpop.f32.mrb[0].mxu0
  %v495 = vadd.f32 0.0, %v494
  %v496 = vpop.f32.mrb[0].mxu0
  %v497 = vpop.f32.mrb[0].mxu0
  %v498 = vadd.f32 0.0, %v497
  %v499 = vpop.f32.mrb[0].mxu0
  %500 = vmatprep.mubr.bf16.mxu0 0
  %501 = vmatmul.mubr.bf16.gmra.mrb[0].mxu0 %v334
  %v502 = vpop.f32.mrb[0].mxu0
  %v503 = vadd.f32 0.0, %v502
  %v504 = vpop.f32.mrb[0].mxu0
  %v505 = vpop.f32.mrb[0].mxu0
  %v506 = vadd.f32 0.0, %v505
  %v507 = vpop.f32.mrb[0].mxu0
  %508 = vmatprep.mubr.bf16.mxu0 0
  %509 = vmatmul.mubr.bf16.gmra.mrb[0].mxu0 %v337
  %v510 = vpop.f32.mrb[0].mxu0
  %v511 = vadd.f32 0.0, %v510
  %v512 = vpop.f32.mrb[0].mxu0
  %v513 = vpop.f32.mrb[0].mxu0
  %v514 = vadd.f32 0.0, %v513
  %v515 = vpop.f32.mrb[0].mxu0
  %516 = vmatprep.mubr.bf16.mxu0 0
  %517 = vmatmul.mubr.bf16.gmra.mrb[0].mxu0 %v340
  %v518 = vpop.f32.mrb[0].mxu0
  %v519 = vadd.f32 0.0, %v518
  %v520 = vpop.f32.mrb[0].mxu0
  %v521 = vpop.f32.mrb[0].mxu0
  %v522 = vadd.f32 0.0, %v521
  %v523 = vpop.f32.mrb[0].mxu0
  %524 = vmatprep.mubr.bf16.mxu0 0
  %525 = vmatmul.mubr.bf16.gmra.mrb[0].mxu0 %v343
  %v526 = vpop.f32.mrb[0].mxu0
  %v527 = vadd.f32 0.0, %v526
  %v528 = vpop.f32.mrb[0].mxu0
  %v529 = vpop.f32.mrb[0].mxu0
  %v530 = vadd.f32 0.0, %v529
  %v531 = vpop.f32.mrb[0].mxu0
  %532 = vmatprep.mubr.bf16.mxu0 0
  %533 = vmatmul.mubr.bf16.gmra.mrb[0].mxu0 %v346
  %v534 = vpop.f32.mrb[0].mxu0
  %v535 = vadd.f32 0.0, %v534
  %v536 = vpop.f32.mrb[0].mxu0
  %v537 = vpop.f32.mrb[0].mxu0
  %v538 = vadd.f32 0.0, %v537
  %v539 = vpop.f32.mrb[0].mxu0
  %540 = vmatprep.mubr.bf16.mxu0 0
  %541 = vmatmul.mubr.bf16.gmra.mrb[0].mxu0 %v349
  %v542 = vpop.f32.mrb[0].mxu0
  %v543 = vadd.f32 0.0, %v542
  %v544 = vpop.f32.mrb[0].mxu0
  %v545 = vpop.f32.mrb[0].mxu0
  %v546 = vadd.f32 0.0, %v545
  %v547 = vpop.f32.mrb[0].mxu0
  %548 = vmatprep.mubr.bf16.mxu0 0
  %549 = vmatmul.mubr.bf16.gmra.mrb[0].mxu0 %v352
  %v550 = vpop.f32.mrb[0].mxu0
  %v551 = vadd.f32 0.0, %v550
  %v552 = vpop.f32.mrb[0].mxu0
  %v553 = vpop.f32.mrb[0].mxu0
  %v554 = vadd.f32 0.0, %v553
  %v555 = vpop.f32.mrb[0].mxu0
  %556 = vmatprep.mubr.bf16.mxu0 0
  %557 = vmatmul.mubr.bf16.gmra.mrb[0].mxu0 %v355
  %v558 = vpop.f32.mrb[0].mxu0
  %v559 = vadd.f32 0.0, %v558
  %v560 = vpop.f32.mrb[0].mxu0
  %v561 = vpop.f32.mrb[0].mxu0
  %v562 = vadd.f32 0.0, %v561
  %v563 = vpop.f32.mrb[0].mxu0
  %564 = vmatprep.mubr.bf16.mxu0 0
  %565 = vmatmul.mubr.bf16.gmra.mrb[0].mxu0 %v358
  %v566 = vpop.f32.mrb[0].mxu0
  %v567 = vadd.f32 0.0, %v566
  %v568 = vpop.f32.mrb[0].mxu0
  %v569 = vpop.f32.mrb[0].mxu0
  %v570 = vadd.f32 0.0, %v569
  %v571 = vpop.f32.mrb[0].mxu0
  %572 = vmatprep.mubr.bf16.mxu0 0
  %573 = vmatmul.mubr.bf16.gmra.mrb[0].mxu0 %v361
  %v574 = vpop.f32.mrb[0].mxu0
  %v575 = vadd.f32 0.0, %v574
  %v576 = vpop.f32.mrb[0].mxu0
  %v577 = vpop.f32.mrb[0].mxu0
  %v578 = vadd.f32 0.0, %v577
  %v579 = vpop.f32.mrb[0].mxu0
  %580 = vmatprep.mubr.bf16.mxu0 0
  %581 = vmatmul.mubr.bf16.gmra.mrb[0].mxu0 %v364
  %v582 = vpop.f32.mrb[0].mxu0
  %v583 = vadd.f32 0.0, %v582
  %v584 = vpop.f32.mrb[0].mxu0
  %v585 = vpop.f32.mrb[0].mxu0
  %v586 = vadd.f32 0.0, %v585
  %v587 = vpop.f32.mrb[0].mxu0
  %588 = vmatprep.mubr.bf16.mxu0 0
  %589 = vmatmul.mubr.bf16.gmra.mrb[0].mxu0 %v367
  %v590 = vpop.f32.mrb[0].mxu0
  %v591 = vadd.f32 0.0, %v590
  %v592 = vpop.f32.mrb[0].mxu0
  %v593 = vpop.f32.mrb[0].mxu0
  %v594 = vadd.f32 0.0, %v593
  %v595 = vpop.f32.mrb[0].mxu0
  %596 = vmatprep.mubr.bf16.mxu0 0
  %597 = vmatmul.mubr.bf16.gmra.mrb[0].mxu0 %v370
  %v598 = vpop.f32.mrb[0].mxu0
  %v599 = vadd.f32 0.0, %v598
  %v600 = vpop.f32.mrb[0].mxu0
  %v601 = vpop.f32.mrb[0].mxu0
  %v602 = vadd.f32 0.0, %v601
  %v603 = vpop.f32.mrb[0].mxu0
  %604 = vmatprep.mubr.bf16.mxu0 0
  %605 = vmatmul.mubr.bf16.gmra.mrb[0].mxu0 %v373
  %v606 = vpop.f32.mrb[0].mxu0
  %v607 = vadd.f32 0.0, %v606
  %v608 = vpop.f32.mrb[0].mxu0
  %v609 = vpop.f32.mrb[0].mxu0
  %v610 = vadd.f32 0.0, %v609
  %v611 = vpop.f32.mrb[0].mxu0
  %612 = vmatprep.mubr.bf16.mxu0 0
  %613 = vmatmul.mubr.bf16.gmra.mrb[0].mxu0 %v376
  %v614 = vpop.f32.mrb[0].mxu0
  %v615 = vadd.f32 0.0, %v614
  %v616 = vpop.f32.mrb[0].mxu0
  %v617 = vpop.f32.mrb[0].mxu0
  %v618 = vadd.f32 0.0, %v617
  %v619 = vpop.f32.mrb[0].mxu0
  %620 = vmatprep.mubr.bf16.mxu0 0
  %621 = vmatmul.mubr.bf16.gmra.mrb[0].mxu0 %v379
  %v622 = vpop.f32.mrb[0].mxu0
  %v623 = vadd.f32 0.0, %v622
  %v624 = vpop.f32.mrb[0].mxu0
  %v625 = vpop.f32.mrb[0].mxu0
  %v626 = vadd.f32 0.0, %v625
  %v627 = vpop.f32.mrb[0].mxu0
  %628 = vmatprep.mubr.bf16.mxu0 0
  %629 = vmatmul.mubr.bf16.gmra.mrb[0].mxu0 %v382
  %v630 = vpop.f32.mrb[0].mxu0
  %v631 = vadd.f32 0.0, %v630
  %v632 = vpop.f32.mrb[0].mxu0
  %v633 = vpop.f32.mrb[0].mxu0
  %v634 = vadd.f32 0.0, %v633
  %v635 = vpop.f32.mrb[0].mxu0
  %636 = vmatprep.mubr.bf16.mxu0 0
  %637 = vmatmul.mubr.bf16.gmra.mrb[0].mxu0 %v385
  %v638 = vpop.f32.mrb[0].mxu0
  %v639 = vadd.f32 0.0, %v638
  %v640 = vpop.f32.mrb[0].mxu0
  %v641 = vpop.f32.mrb[0].mxu0
  %v642 = vadd.f32 0.0, %v641
  %v643 = vpop.f32.mrb[0].mxu0
  %644 = vmatprep.mubr.bf16.mxu0 0
  %645 = vmatmul.mubr.bf16.gmra.mrb[0].mxu0 %v388
  %v646 = vpop.f32.mrb[0].mxu0
  %v647 = vadd.f32 0.0, %v646
  %v648 = vpop.f32.mrb[0].mxu0
  %v649 = vpop.f32.mrb[0].mxu0
  %v650 = vadd.f32 0.0, %v649
  %v651 = vpop.f32.mrb[0].mxu0
  %652 = vmatprep.mubr.bf16.mxu0 0
  %653 = vmatmul.mubr.bf16.gmra.mrb[0].mxu0 %v391
  %v654 = vpop.f32.mrb[0].mxu0
  %v655 = vadd.f32 0.0, %v654
  %v656 = vpop.f32.mrb[0].mxu0
  %v657 = vpop.f32.mrb[0].mxu0
  %v658 = vadd.f32 0.0, %v657
  %v659 = vpop.f32.mrb[0].mxu0
  %660 = vmatprep.mubr.bf16.mxu0 0
  %661 = vmatmul.mubr.bf16.gmra.mrb[0].mxu0 %v394
  %v662 = vpop.f32.mrb[0].mxu0
  %v663 = vadd.f32 0.0, %v662
  %v664 = vpop.f32.mrb[0].mxu0
  %v665 = vpop.f32.mrb[0].mxu0
  %v666 = vadd.f32 0.0, %v665
  %v667 = vpop.f32.mrb[0].mxu0
  %668 = vmatprep.mubr.bf16.mxu0 0
  %669 = vmatmul.mubr.bf16.gmra.mrb[0].mxu0 %v397
  %v670 = vpop.f32.mrb[0].mxu0
  %v671 = vadd.f32 0.0, %v670
  %v672 = vpop.f32.mrb[0].mxu0
  %v673 = vpop.f32.mrb[0].mxu0
  %v674 = vadd.f32 0.0, %v673
  %v675 = vpop.f32.mrb[0].mxu0
  %676 = vmatprep.mubr.bf16.mxu0 0
  %677 = vmatmul.mubr.bf16.gmra.mrb[0].mxu0 %v400
  %v678 = vpop.f32.mrb[0].mxu0
  %v679 = vadd.f32 0.0, %v678
  %v680 = vpop.f32.mrb[0].mxu0
  %v681 = vpop.f32.mrb[0].mxu0
  %v682 = vadd.f32 0.0, %v681
  %v683 = vpop.f32.mrb[0].mxu0
  %684 = vmatprep.mubr.bf16.mxu0 0
  %685 = vmatmul.mubr.bf16.gmra.mrb[0].mxu0 %v403
  %v686 = vpop.f32.mrb[0].mxu0
  %v687 = vadd.f32 0.0, %v686
  %v688 = vpop.f32.mrb[0].mxu0
  %v689 = vpop.f32.mrb[0].mxu0
  %v690 = vadd.f32 0.0, %v689
  %v691 = vpop.f32.mrb[0].mxu0
  %692 = vmatprep.mubr.bf16.mxu0 0
  %693 = vmatmul.mubr.bf16.gmra.mrb[0].mxu0 %v406
  %v694 = vpop.f32.mrb[0].mxu0
  %v695 = vadd.f32 0.0, %v694
  %v696 = vpop.f32.mrb[0].mxu0
  %v697 = vpop.f32.mrb[0].mxu0
  %v698 = vadd.f32 0.0, %v697
  %v699 = vpop.f32.mrb[0].mxu0
  %700 = vdwg.mxu0
  %v765 = vunpack.c.l.b16 %v21
  %v766 = vunpack.c.l.b16 %v22
  %v767 = vunpack.c.l.b16 %v23
  %v768 = vunpack.c.l.b16 %v24
  %v769 = vunpack.c.l.b16 %v25
  %v770 = vunpack.c.l.b16 %v26
  %v771 = vunpack.c.l.b16 %v27
  %v772 = vunpack.c.l.b16 %v28
  %v773 = vunpack.c.l.b16 %v29
  %v774 = vunpack.c.l.b16 %v30
  %v775 = vunpack.c.l.b16 %v31
  %v776 = vunpack.c.l.b16 %v32
  %v777 = vunpack.c.l.b16 %v33
  %v778 = vunpack.c.l.b16 %v34
  %v779 = vunpack.c.l.b16 %v35
  %v780 = vunpack.c.l.b16 %v36
  %v781 = vunpack.c.l.b16 %v37
  %v782 = vunpack.c.l.b16 %v38
  %v783 = vunpack.c.l.b16 %v39
  %v784 = vunpack.c.l.b16 %v40
  %v785 = vunpack.c.l.b16 %v41
  %v786 = vunpack.c.l.b16 %v42
  %v787 = vunpack.c.l.b16 %v43
  %v788 = vunpack.c.l.b16 %v44
  %v789 = vunpack.c.l.b16 %v45
  %v790 = vunpack.c.l.b16 %v46
  %v791 = vunpack.c.l.b16 %v47
  %v792 = vunpack.c.l.b16 %v48
  %v793 = vunpack.c.l.b16 %v49
  %v794 = vunpack.c.l.b16 %v50
  %v795 = vunpack.c.l.b16 %v51
  %v796 = vunpack.c.l.b16 %v52
  %v797 = vunpack.c.l.b16 %v53
  %v798 = vunpack.c.l.b16 %v54
  %v799 = vunpack.c.l.b16 %v55
  %v800 = vunpack.c.l.b16 %v56
  %v801 = vunpack.c.l.b16 %v57
  %v802 = vunpack.c.l.b16 %v58
  %v803 = vunpack.c.l.b16 %v59
  %v804 = vunpack.c.l.b16 %v60
  %v805 = vunpack.c.l.b16 %v61
  %v806 = vunpack.c.l.b16 %v62
  %v807 = vunpack.c.l.b16 %v63
  %v808 = vunpack.c.l.b16 %v64
  %v809 = vunpack.c.l.b16 %v65
  %v810 = vunpack.c.l.b16 %v66
  %v811 = vunpack.c.l.b16 %v67
  %v812 = vunpack.c.l.b16 %v68
  %v813 = vunpack.c.l.b16 %v69
  %v814 = vunpack.c.l.b16 %v70
  %v815 = vunpack.c.l.b16 %v71
  %v816 = vunpack.c.l.b16 %v72
  %v817 = vunpack.c.l.b16 %v73
  %v818 = vunpack.c.l.b16 %v74
  %v819 = vunpack.c.l.b16 %v75
  %v820 = vunpack.c.l.b16 %v76
  %v821 = vunpack.c.l.b16 %v77
  %v822 = vunpack.c.l.b16 %v78
  %v823 = vunpack.c.l.b16 %v79
  %v824 = vunpack.c.l.b16 %v80
  %v825 = vunpack.c.l.b16 %v81
  %v826 = vunpack.c.l.b16 %v82
  %v827 = vunpack.c.l.b16 %v83
  %v828 = vunpack.c.l.b16 %v84
  %v829 = vpack.c.b16 %v766, %v765
  %v830 = vpack.c.b16 %v768, %v767
  %v831 = vpack.c.b16 %v770, %v769
  %v832 = vpack.c.b16 %v772, %v771
  %v833 = vpack.c.b16 %v774, %v773
  %v834 = vpack.c.b16 %v776, %v775
  %v835 = vpack.c.b16 %v778, %v777
  %v836 = vpack.c.b16 %v780, %v779
  %v837 = vpack.c.b16 %v782, %v781
  %v838 = vpack.c.b16 %v784, %v783
  %v839 = vpack.c.b16 %v786, %v785
  %v840 = vpack.c.b16 %v788, %v787
  %v841 = vpack.c.b16 %v790, %v789
  %v842 = vpack.c.b16 %v792, %v791
  %v843 = vpack.c.b16 %v794, %v793
  %v844 = vpack.c.b16 %v796, %v795
  %v845 = vpack.c.b16 %v798, %v797
  %v846 = vpack.c.b16 %v800, %v799
  %v847 = vpack.c.b16 %v802, %v801
  %v848 = vpack.c.b16 %v804, %v803
  %v849 = vpack.c.b16 %v806, %v805
  %v850 = vpack.c.b16 %v808, %v807
  %v851 = vpack.c.b16 %v810, %v809
  %v852 = vpack.c.b16 %v812, %v811
  %v853 = vpack.c.b16 %v814, %v813
  %v854 = vpack.c.b16 %v816, %v815
  %v855 = vpack.c.b16 %v818, %v817
  %v856 = vpack.c.b16 %v820, %v819
  %v857 = vpack.c.b16 %v822, %v821
  %v858 = vpack.c.b16 %v824, %v823
  %v859 = vpack.c.b16 %v826, %v825
  %v860 = vpack.c.b16 %v828, %v827
  %v862 = vsel %vm311, %v829, 0
  %v865 = vsel %vm311, %v830, 0
  %v868 = vsel %vm311, %v831, 0
  %v871 = vsel %vm311, %v832, 0
  %v874 = vsel %vm311, %v833, 0
  %v877 = vsel %vm311, %v834, 0
  %v880 = vsel %vm311, %v835, 0
  %v883 = vsel %vm311, %v836, 0
  %v886 = vsel %vm311, %v837, 0
  %v889 = vsel %vm311, %v838, 0
  %v892 = vsel %vm311, %v839, 0
  %v895 = vsel %vm311, %v840, 0
  %v898 = vsel %vm311, %v841, 0
  %v901 = vsel %vm311, %v842, 0
  %v904 = vsel %vm311, %v843, 0
  %v907 = vsel %vm311, %v844, 0
  %v910 = vsel %vm311, %v845, 0
  %v913 = vsel %vm311, %v846, 0
  %v916 = vsel %vm311, %v847, 0
  %v919 = vsel %vm311, %v848, 0
  %v922 = vsel %vm311, %v849, 0
  %v925 = vsel %vm311, %v850, 0
  %v928 = vsel %vm311, %v851, 0
  %v931 = vsel %vm311, %v852, 0
  %v934 = vsel %vm311, %v853, 0
  %v937 = vsel %vm311, %v854, 0
  %v940 = vsel %vm311, %v855, 0
  %v943 = vsel %vm311, %v856, 0
  %v946 = vsel %vm311, %v857, 0
  %v949 = vsel %vm311, %v858, 0
  %v952 = vsel %vm311, %v859, 0
  %v955 = vsel %vm311, %v860, 0
  %v958 = vsel %vm408, %v85, 0
  %960 = vmatprep.subr.bf16.mxu0 0
  %961 = vmatpush1.bf16.msra.mxu0 %v958
  %962 = vmatprep.subr.bf16.mxu0 0
  %963 = vmatpush1.bf16.msra.mxu0 0
  %964 = vmatprep.subr.bf16.mxu0 0
  %965 = vmatpush1.bf16.msra.mxu0 0
  %966 = vmatprep.subr.bf16.mxu0 0
  %967 = vmatpush1.bf16.msra.mxu0 0
  %968 = vmatprep.subr.bf16.mxu0 0
  %969 = vmatpush1.bf16.msra.mxu0 0
  %970 = vmatprep.subr.bf16.mxu0 0
  %971 = vmatpush1.bf16.msra.mxu0 0
  %972 = vmatprep.subr.bf16.mxu0 0
  %973 = vmatpush1.bf16.msra.mxu0 0
  %974 = vmatprep.subr.bf16.mxu0 0
  %975 = vmatpush1.bf16.msra.mxu0 0
  %976 = vmatprep.subr.bf16.mxu0 0
  %977 = vmatpush1.bf16.msra.mxu0 0
  %978 = vmatprep.subr.bf16.mxu0 0
  %979 = vmatpush1.bf16.msra.mxu0 0
  %980 = vmatprep.subr.bf16.mxu0 0
  %981 = vmatpush1.bf16.msra.mxu0 0
  %982 = vmatprep.subr.bf16.mxu0 0
  %983 = vmatpush1.bf16.msra.mxu0 0
  %984 = vmatprep.subr.bf16.mxu0 0
  %985 = vmatpush1.bf16.msra.mxu0 0
  %986 = vmatprep.subr.bf16.mxu0 0
  %987 = vmatpush1.bf16.msra.mxu0 0
  %988 = vmatprep.subr.bf16.mxu0 0
  %989 = vmatpush1.bf16.msra.mxu0 0
  %990 = vmatprep.subr.bf16.mxu0 0
  %991 = vmatpush1.bf16.msra.mxu0 0
  %992 = vmatprep.mubr.bf16.mxu0 0
  %993 = vmatmul.mubr.bf16.gmra.mrb[0].mxu0 %v862
  %v994 = vpop.f32.mrb[0].mxu0
  %v995 = vadd.f32 %v447, %v994
  %v996 = vpop.f32.mrb[0].mxu0
  %v997 = vpop.f32.mrb[0].mxu0
  %v998 = vadd.f32 %v450, %v997
  %v999 = vpop.f32.mrb[0].mxu0
  %1000 = vmatprep.mubr.bf16.mxu0 0
  %1001 = vmatmul.mubr.bf16.gmra.mrb[0].mxu0 %v865
  %v1002 = vpop.f32.mrb[0].mxu0
  %v1003 = vadd.f32 %v455, %v1002
  %v1004 = vpop.f32.mrb[0].mxu0
  %v1005 = vpop.f32.mrb[0].mxu0
  %v1006 = vadd.f32 %v458, %v1005
  %v1007 = vpop.f32.mrb[0].mxu0
  %1008 = vmatprep.mubr.bf16.mxu0 0
  %1009 = vmatmul.mubr.bf16.gmra.mrb[0].mxu0 %v868
  %v1010 = vpop.f32.mrb[0].mxu0
  %v1011 = vadd.f32 %v463, %v1010
  %v1012 = vpop.f32.mrb[0].mxu0
  %v1013 = vpop.f32.mrb[0].mxu0
  %v1014 = vadd.f32 %v466, %v1013
  %v1015 = vpop.f32.mrb[0].mxu0
  %1016 = vmatprep.mubr.bf16.mxu0 0
  %1017 = vmatmul.mubr.bf16.gmra.mrb[0].mxu0 %v871
  %v1018 = vpop.f32.mrb[0].mxu0
  %v1019 = vadd.f32 %v471, %v1018
  %v1020 = vpop.f32.mrb[0].mxu0
  %v1021 = vpop.f32.mrb[0].mxu0
  %v1022 = vadd.f32 %v474, %v1021
  %v1023 = vpop.f32.mrb[0].mxu0
  %1024 = vmatprep.mubr.bf16.mxu0 0
  %1025 = vmatmul.mubr.bf16.gmra.mrb[0].mxu0 %v874
  %v1026 = vpop.f32.mrb[0].mxu0
  %v1027 = vadd.f32 %v479, %v1026
  %v1028 = vpop.f32.mrb[0].mxu0
  %v1029 = vpop.f32.mrb[0].mxu0
  %v1030 = vadd.f32 %v482, %v1029
  %v1031 = vpop.f32.mrb[0].mxu0
  %1032 = vmatprep.mubr.bf16.mxu0 0
  %1033 = vmatmul.mubr.bf16.gmra.mrb[0].mxu0 %v877
  %v1034 = vpop.f32.mrb[0].mxu0
  %v1035 = vadd.f32 %v487, %v1034
  %v1036 = vpop.f32.mrb[0].mxu0
  %v1037 = vpop.f32.mrb[0].mxu0
  %v1038 = vadd.f32 %v490, %v1037
  %v1039 = vpop.f32.mrb[0].mxu0
  %1040 = vmatprep.mubr.bf16.mxu0 0
  %1041 = vmatmul.mubr.bf16.gmra.mrb[0].mxu0 %v880
  %v1042 = vpop.f32.mrb[0].mxu0
  %v1043 = vadd.f32 %v495, %v1042
  %v1044 = vpop.f32.mrb[0].mxu0
  %v1045 = vpop.f32.mrb[0].mxu0
  %v1046 = vadd.f32 %v498, %v1045
  %v1047 = vpop.f32.mrb[0].mxu0
  %1048 = vmatprep.mubr.bf16.mxu0 0
  %1049 = vmatmul.mubr.bf16.gmra.mrb[0].mxu0 %v883
  %v1050 = vpop.f32.mrb[0].mxu0
  %v1051 = vadd.f32 %v503, %v1050
  %v1052 = vpop.f32.mrb[0].mxu0
  %v1053 = vpop.f32.mrb[0].mxu0
  %v1054 = vadd.f32 %v506, %v1053
  %v1055 = vpop.f32.mrb[0].mxu0
  %1056 = vmatprep.mubr.bf16.mxu0 0
  %1057 = vmatmul.mubr.bf16.gmra.mrb[0].mxu0 %v886
  %v1058 = vpop.f32.mrb[0].mxu0
  %v1059 = vadd.f32 %v511, %v1058
  %v1060 = vpop.f32.mrb[0].mxu0
  %v1061 = vpop.f32.mrb[0].mxu0
  %v1062 = vadd.f32 %v514, %v1061
  %v1063 = vpop.f32.mrb[0].mxu0
  %1064 = vmatprep.mubr.bf16.mxu0 0
  %1065 = vmatmul.mubr.bf16.gmra.mrb[0].mxu0 %v889
  %v1066 = vpop.f32.mrb[0].mxu0
  %v1067 = vadd.f32 %v519, %v1066
  %v1068 = vpop.f32.mrb[0].mxu0
  %v1069 = vpop.f32.mrb[0].mxu0
  %v1070 = vadd.f32 %v522, %v1069
  %v1071 = vpop.f32.mrb[0].mxu0
  %1072 = vmatprep.mubr.bf16.mxu0 0
  %1073 = vmatmul.mubr.bf16.gmra.mrb[0].mxu0 %v892
  %v1074 = vpop.f32.mrb[0].mxu0
  %v1075 = vadd.f32 %v527, %v1074
  %v1076 = vpop.f32.mrb[0].mxu0
  %v1077 = vpop.f32.mrb[0].mxu0
  %v1078 = vadd.f32 %v530, %v1077
  %v1079 = vpop.f32.mrb[0].mxu0
  %1080 = vmatprep.mubr.bf16.mxu0 0
  %1081 = vmatmul.mubr.bf16.gmra.mrb[0].mxu0 %v895
  %v1082 = vpop.f32.mrb[0].mxu0
  %v1083 = vadd.f32 %v535, %v1082
  %v1084 = vpop.f32.mrb[0].mxu0
  %v1085 = vpop.f32.mrb[0].mxu0
  %v1086 = vadd.f32 %v538, %v1085
  %v1087 = vpop.f32.mrb[0].mxu0
  %1088 = vmatprep.mubr.bf16.mxu0 0
  %1089 = vmatmul.mubr.bf16.gmra.mrb[0].mxu0 %v898
  %v1090 = vpop.f32.mrb[0].mxu0
  %v1091 = vadd.f32 %v543, %v1090
  %v1092 = vpop.f32.mrb[0].mxu0
  %v1093 = vpop.f32.mrb[0].mxu0
  %v1094 = vadd.f32 %v546, %v1093
  %v1095 = vpop.f32.mrb[0].mxu0
  %1096 = vmatprep.mubr.bf16.mxu0 0
  %1097 = vmatmul.mubr.bf16.gmra.mrb[0].mxu0 %v901
  %v1098 = vpop.f32.mrb[0].mxu0
  %v1099 = vadd.f32 %v551, %v1098
  %v1100 = vpop.f32.mrb[0].mxu0
  %v1101 = vpop.f32.mrb[0].mxu0
  %v1102 = vadd.f32 %v554, %v1101
  %v1103 = vpop.f32.mrb[0].mxu0
  %1104 = vmatprep.mubr.bf16.mxu0 0
  %1105 = vmatmul.mubr.bf16.gmra.mrb[0].mxu0 %v904
  %v1106 = vpop.f32.mrb[0].mxu0
  %v1107 = vadd.f32 %v559, %v1106
  %v1108 = vpop.f32.mrb[0].mxu0
  %v1109 = vpop.f32.mrb[0].mxu0
  %v1110 = vadd.f32 %v562, %v1109
  %v1111 = vpop.f32.mrb[0].mxu0
  %1112 = vmatprep.mubr.bf16.mxu0 0
  %1113 = vmatmul.mubr.bf16.gmra.mrb[0].mxu0 %v907
  %v1114 = vpop.f32.mrb[0].mxu0
  %v1115 = vadd.f32 %v567, %v1114
  %v1116 = vpop.f32.mrb[0].mxu0
  %v1117 = vpop.f32.mrb[0].mxu0
  %v1118 = vadd.f32 %v570, %v1117
  %v1119 = vpop.f32.mrb[0].mxu0
  %1120 = vmatprep.mubr.bf16.mxu0 0
  %1121 = vmatmul.mubr.bf16.gmra.mrb[0].mxu0 %v910
  %v1122 = vpop.f32.mrb[0].mxu0
  %v1123 = vadd.f32 %v575, %v1122
  %v1124 = vpop.f32.mrb[0].mxu0
  %v1125 = vpop.f32.mrb[0].mxu0
  %v1126 = vadd.f32 %v578, %v1125
  %v1127 = vpop.f32.mrb[0].mxu0
  %1128 = vmatprep.mubr.bf16.mxu0 0
  %1129 = vmatmul.mubr.bf16.gmra.mrb[0].mxu0 %v913
  %v1130 = vpop.f32.mrb[0].mxu0
  %v1131 = vadd.f32 %v583, %v1130
  %v1132 = vpop.f32.mrb[0].mxu0
  %v1133 = vpop.f32.mrb[0].mxu0
  %v1134 = vadd.f32 %v586, %v1133
  %v1135 = vpop.f32.mrb[0].mxu0
  %1136 = vmatprep.mubr.bf16.mxu0 0
  %1137 = vmatmul.mubr.bf16.gmra.mrb[0].mxu0 %v916
  %v1138 = vpop.f32.mrb[0].mxu0
  %v1139 = vadd.f32 %v591, %v1138
  %v1140 = vpop.f32.mrb[0].mxu0
  %v1141 = vpop.f32.mrb[0].mxu0
  %v1142 = vadd.f32 %v594, %v1141
  %v1143 = vpop.f32.mrb[0].mxu0
  %1144 = vmatprep.mubr.bf16.mxu0 0
  %1145 = vmatmul.mubr.bf16.gmra.mrb[0].mxu0 %v919
  %v1146 = vpop.f32.mrb[0].mxu0
  %v1147 = vadd.f32 %v599, %v1146
  %v1148 = vpop.f32.mrb[0].mxu0
  %v1149 = vpop.f32.mrb[0].mxu0
  %v1150 = vadd.f32 %v602, %v1149
  %v1151 = vpop.f32.mrb[0].mxu0
  %1152 = vmatprep.mubr.bf16.mxu0 0
  %1153 = vmatmul.mubr.bf16.gmra.mrb[0].mxu0 %v922
  %v1154 = vpop.f32.mrb[0].mxu0
  %v1155 = vadd.f32 %v607, %v1154
  %v1156 = vpop.f32.mrb[0].mxu0
  %v1157 = vpop.f32.mrb[0].mxu0
  %v1158 = vadd.f32 %v610, %v1157
  %v1159 = vpop.f32.mrb[0].mxu0
  %1160 = vmatprep.mubr.bf16.mxu0 0
  %1161 = vmatmul.mubr.bf16.gmra.mrb[0].mxu0 %v925
  %v1162 = vpop.f32.mrb[0].mxu0
  %v1163 = vadd.f32 %v615, %v1162
  %v1164 = vpop.f32.mrb[0].mxu0
  %v1165 = vpop.f32.mrb[0].mxu0
  %v1166 = vadd.f32 %v618, %v1165
  %v1167 = vpop.f32.mrb[0].mxu0
  %1168 = vmatprep.mubr.bf16.mxu0 0
  %1169 = vmatmul.mubr.bf16.gmra.mrb[0].mxu0 %v928
  %v1170 = vpop.f32.mrb[0].mxu0
  %v1171 = vadd.f32 %v623, %v1170
  %v1172 = vpop.f32.mrb[0].mxu0
  %v1173 = vpop.f32.mrb[0].mxu0
  %v1174 = vadd.f32 %v626, %v1173
  %v1175 = vpop.f32.mrb[0].mxu0
  %1176 = vmatprep.mubr.bf16.mxu0 0
  %1177 = vmatmul.mubr.bf16.gmra.mrb[0].mxu0 %v931
  %v1178 = vpop.f32.mrb[0].mxu0
  %v1179 = vadd.f32 %v631, %v1178
  %v1180 = vpop.f32.mrb[0].mxu0
  %v1181 = vpop.f32.mrb[0].mxu0
  %v1182 = vadd.f32 %v634, %v1181
  %v1183 = vpop.f32.mrb[0].mxu0
  %1184 = vmatprep.mubr.bf16.mxu0 0
  %1185 = vmatmul.mubr.bf16.gmra.mrb[0].mxu0 %v934
  %v1186 = vpop.f32.mrb[0].mxu0
  %v1187 = vadd.f32 %v639, %v1186
  %v1188 = vpop.f32.mrb[0].mxu0
  %v1189 = vpop.f32.mrb[0].mxu0
  %v1190 = vadd.f32 %v642, %v1189
  %v1191 = vpop.f32.mrb[0].mxu0
  %1192 = vmatprep.mubr.bf16.mxu0 0
  %1193 = vmatmul.mubr.bf16.gmra.mrb[0].mxu0 %v937
  %v1194 = vpop.f32.mrb[0].mxu0
  %v1195 = vadd.f32 %v647, %v1194
  %v1196 = vpop.f32.mrb[0].mxu0
  %v1197 = vpop.f32.mrb[0].mxu0
  %v1198 = vadd.f32 %v650, %v1197
  %v1199 = vpop.f32.mrb[0].mxu0
  %1200 = vmatprep.mubr.bf16.mxu0 0
  %1201 = vmatmul.mubr.bf16.gmra.mrb[0].mxu0 %v940
  %v1202 = vpop.f32.mrb[0].mxu0
  %v1203 = vadd.f32 %v655, %v1202
  %v1204 = vpop.f32.mrb[0].mxu0
  %v1205 = vpop.f32.mrb[0].mxu0
  %v1206 = vadd.f32 %v658, %v1205
  %v1207 = vpop.f32.mrb[0].mxu0
  %1208 = vmatprep.mubr.bf16.mxu0 0
  %1209 = vmatmul.mubr.bf16.gmra.mrb[0].mxu0 %v943
  %v1210 = vpop.f32.mrb[0].mxu0
  %v1211 = vadd.f32 %v663, %v1210
  %v1212 = vpop.f32.mrb[0].mxu0
  %v1213 = vpop.f32.mrb[0].mxu0
  %v1214 = vadd.f32 %v666, %v1213
  %v1215 = vpop.f32.mrb[0].mxu0
  %1216 = vmatprep.mubr.bf16.mxu0 0
  %1217 = vmatmul.mubr.bf16.gmra.mrb[0].mxu0 %v946
  %v1218 = vpop.f32.mrb[0].mxu0
  %v1219 = vadd.f32 %v671, %v1218
  %v1220 = vpop.f32.mrb[0].mxu0
  %v1221 = vpop.f32.mrb[0].mxu0
  %v1222 = vadd.f32 %v674, %v1221
  %v1223 = vpop.f32.mrb[0].mxu0
  %1224 = vmatprep.mubr.bf16.mxu0 0
  %1225 = vmatmul.mubr.bf16.gmra.mrb[0].mxu0 %v949
  %v1226 = vpop.f32.mrb[0].mxu0
  %v1227 = vadd.f32 %v679, %v1226
  %v1228 = vpop.f32.mrb[0].mxu0
  %v1229 = vpop.f32.mrb[0].mxu0
  %v1230 = vadd.f32 %v682, %v1229
  %v1231 = vpop.f32.mrb[0].mxu0
  %1232 = vmatprep.mubr.bf16.mxu0 0
  %1233 = vmatmul.mubr.bf16.gmra.mrb[0].mxu0 %v952
  %v1234 = vpop.f32.mrb[0].mxu0
  %v1235 = vadd.f32 %v687, %v1234
  %v1236 = vpop.f32.mrb[0].mxu0
  %v1237 = vpop.f32.mrb[0].mxu0
  %v1238 = vadd.f32 %v690, %v1237
  %v1239 = vpop.f32.mrb[0].mxu0
  %1240 = vmatprep.mubr.bf16.mxu0 0
  %1241 = vmatmul.mubr.bf16.gmra.mrb[0].mxu0 %v955
  %v1242 = vpop.f32.mrb[0].mxu0
  %v1243 = vadd.f32 %v695, %v1242
  %v1244 = vpop.f32.mrb[0].mxu0
  %v1245 = vpop.f32.mrb[0].mxu0
  %v1246 = vadd.f32 %v698, %v1245
  %v1247 = vpop.f32.mrb[0].mxu0
  %1248 = vdwg.mxu0
  %v1249 = vld [vmem:[%s4] sm:$0x1]
  %v1251 = vlaneseq
  %v1252 = vshrl.u32 %v1251, 7
  %v1253 = vsub.s32 0, %v1252
  %v1254 = vrot.slane %v1249, %v1253
  %v1256 = vadd.f32 %v995, %v1254
  %v1257 = vadd.f32 %v998, %v1254
  %v1258 = vadd.f32 %v1003, %v1254
  %v1259 = vadd.f32 %v1006, %v1254
  %v1260 = vadd.f32 %v1011, %v1254
  %v1261 = vadd.f32 %v1014, %v1254
  %v1262 = vadd.f32 %v1019, %v1254
  %v1263 = vadd.f32 %v1022, %v1254
  %v1264 = vadd.f32 %v1027, %v1254
  %v1265 = vadd.f32 %v1030, %v1254
  %v1266 = vadd.f32 %v1035, %v1254
  %v1267 = vadd.f32 %v1038, %v1254
  %v1268 = vadd.f32 %v1043, %v1254
  %v1269 = vadd.f32 %v1046, %v1254
  %v1270 = vadd.f32 %v1051, %v1254
  %v1271 = vadd.f32 %v1054, %v1254
  %v1272 = vadd.f32 %v1059, %v1254
  %v1273 = vadd.f32 %v1062, %v1254
  %v1274 = vadd.f32 %v1067, %v1254
  %v1275 = vadd.f32 %v1070, %v1254
  %v1276 = vadd.f32 %v1075, %v1254
  %v1277 = vadd.f32 %v1078, %v1254
  %v1278 = vadd.f32 %v1083, %v1254
  %v1279 = vadd.f32 %v1086, %v1254
  %v1280 = vadd.f32 %v1091, %v1254
  %v1281 = vadd.f32 %v1094, %v1254
  %v1282 = vadd.f32 %v1099, %v1254
  %v1283 = vadd.f32 %v1102, %v1254
  %v1284 = vadd.f32 %v1107, %v1254
  %v1285 = vadd.f32 %v1110, %v1254
  %v1286 = vadd.f32 %v1115, %v1254
  %v1287 = vadd.f32 %v1118, %v1254
  %v1288 = vadd.f32 %v1123, %v1254
  %v1289 = vadd.f32 %v1126, %v1254
  %v1290 = vadd.f32 %v1131, %v1254
  %v1291 = vadd.f32 %v1134, %v1254
  %v1292 = vadd.f32 %v1139, %v1254
  %v1293 = vadd.f32 %v1142, %v1254
  %v1294 = vadd.f32 %v1147, %v1254
  %v1295 = vadd.f32 %v1150, %v1254
  %v1296 = vadd.f32 %v1155, %v1254
  %v1297 = vadd.f32 %v1158, %v1254
  %v1298 = vadd.f32 %v1163, %v1254
  %v1299 = vadd.f32 %v1166, %v1254
  %v1300 = vadd.f32 %v1171, %v1254
  %v1301 = vadd.f32 %v1174, %v1254
  %v1302 = vadd.f32 %v1179, %v1254
  %v1303 = vadd.f32 %v1182, %v1254
  %v1304 = vadd.f32 %v1187, %v1254
  %v1305 = vadd.f32 %v1190, %v1254
  %v1306 = vadd.f32 %v1195, %v1254
  %v1307 = vadd.f32 %v1198, %v1254
  %v1308 = vadd.f32 %v1203, %v1254
  %v1309 = vadd.f32 %v1206, %v1254
  %v1310 = vadd.f32 %v1211, %v1254
  %v1311 = vadd.f32 %v1214, %v1254
  %v1312 = vadd.f32 %v1219, %v1254
  %v1313 = vadd.f32 %v1222, %v1254
  %v1314 = vadd.f32 %v1227, %v1254
  %v1315 = vadd.f32 %v1230, %v1254
  %v1316 = vadd.f32 %v1235, %v1254
  %v1317 = vadd.f32 %v1238, %v1254
  %v1318 = vadd.f32 %v1243, %v1254
  %v1319 = vadd.f32 %v1246, %v1254
  %v1320 = vxor.u32 %v1256, 2147483648
  %v1321 = vxor.u32 %v1257, 2147483648
  %v1322 = vxor.u32 %v1258, 2147483648
  %v1323 = vxor.u32 %v1259, 2147483648
  %v1324 = vxor.u32 %v1260, 2147483648
  %v1325 = vxor.u32 %v1261, 2147483648
  %v1326 = vxor.u32 %v1262, 2147483648
  %v1327 = vxor.u32 %v1263, 2147483648
  %v1328 = vxor.u32 %v1264, 2147483648
  %v1329 = vxor.u32 %v1265, 2147483648
  %v1330 = vxor.u32 %v1266, 2147483648
  %v1331 = vxor.u32 %v1267, 2147483648
  %v1332 = vxor.u32 %v1268, 2147483648
  %v1333 = vxor.u32 %v1269, 2147483648
  %v1334 = vxor.u32 %v1270, 2147483648
  %v1335 = vxor.u32 %v1271, 2147483648
  %v1336 = vxor.u32 %v1272, 2147483648
  %v1337 = vxor.u32 %v1273, 2147483648
  %v1338 = vxor.u32 %v1274, 2147483648
  %v1339 = vxor.u32 %v1275, 2147483648
  %v1340 = vxor.u32 %v1276, 2147483648
  %v1341 = vxor.u32 %v1277, 2147483648
  %v1342 = vxor.u32 %v1278, 2147483648
  %v1343 = vxor.u32 %v1279, 2147483648
  %v1344 = vxor.u32 %v1280, 2147483648
  %v1345 = vxor.u32 %v1281, 2147483648
  %v1346 = vxor.u32 %v1282, 2147483648
  %v1347 = vxor.u32 %v1283, 2147483648
  %v1348 = vxor.u32 %v1284, 2147483648
  %v1349 = vxor.u32 %v1285, 2147483648
  %v1350 = vxor.u32 %v1286, 2147483648
  %v1351 = vxor.u32 %v1287, 2147483648
  %v1352 = vxor.u32 %v1288, 2147483648
  %v1353 = vxor.u32 %v1289, 2147483648
  %v1354 = vxor.u32 %v1290, 2147483648
  %v1355 = vxor.u32 %v1291, 2147483648
  %v1356 = vxor.u32 %v1292, 2147483648
  %v1357 = vxor.u32 %v1293, 2147483648
  %v1358 = vxor.u32 %v1294, 2147483648
  %v1359 = vxor.u32 %v1295, 2147483648
  %v1360 = vxor.u32 %v1296, 2147483648
  %v1361 = vxor.u32 %v1297, 2147483648
  %v1362 = vxor.u32 %v1298, 2147483648
  %v1363 = vxor.u32 %v1299, 2147483648
  %v1364 = vxor.u32 %v1300, 2147483648
  %v1365 = vxor.u32 %v1301, 2147483648
  %v1366 = vxor.u32 %v1302, 2147483648
  %v1367 = vxor.u32 %v1303, 2147483648
  %v1368 = vxor.u32 %v1304, 2147483648
  %v1369 = vxor.u32 %v1305, 2147483648
  %v1370 = vxor.u32 %v1306, 2147483648
  %v1371 = vxor.u32 %v1307, 2147483648
  %v1372 = vxor.u32 %v1308, 2147483648
  %v1373 = vxor.u32 %v1309, 2147483648
  %v1374 = vxor.u32 %v1310, 2147483648
  %v1375 = vxor.u32 %v1311, 2147483648
  %v1376 = vxor.u32 %v1312, 2147483648
  %v1377 = vxor.u32 %v1313, 2147483648
  %v1378 = vxor.u32 %v1314, 2147483648
  %v1379 = vxor.u32 %v1315, 2147483648
  %v1380 = vxor.u32 %v1316, 2147483648
  %v1381 = vxor.u32 %v1317, 2147483648
  %v1382 = vxor.u32 %v1318, 2147483648
  %v1383 = vxor.u32 %v1319, 2147483648
  %v1384 = vmul.f32 %v1320, 1.442695
  %v1385 = vpow.pop %v1384
  %v1386 = vmul.f32 %v1321, 1.442695
  %v1387 = vpow.pop %v1386
  %v1388 = vmul.f32 %v1322, 1.442695
  %v1389 = vpow.pop %v1388
  %v1390 = vmul.f32 %v1323, 1.442695
  %v1391 = vpow.pop %v1390
  %v1392 = vmul.f32 %v1324, 1.442695
  %v1393 = vpow.pop %v1392
  %v1394 = vmul.f32 %v1325, 1.442695
  %v1395 = vpow.pop %v1394
  %v1396 = vmul.f32 %v1326, 1.442695
  %v1397 = vpow.pop %v1396
  %v1398 = vmul.f32 %v1327, 1.442695
  %v1399 = vpow.pop %v1398
  %v1400 = vmul.f32 %v1328, 1.442695
  %v1401 = vpow.pop %v1400
  %v1402 = vmul.f32 %v1329, 1.442695
  %v1403 = vpow.pop %v1402
  %v1404 = vmul.f32 %v1330, 1.442695
  %v1405 = vpow.pop %v1404
  %v1406 = vmul.f32 %v1331, 1.442695
  %v1407 = vpow.pop %v1406
  %v1408 = vmul.f32 %v1332, 1.442695
  %v1409 = vpow.pop %v1408
  %v1410 = vmul.f32 %v1333, 1.442695
  %v1411 = vpow.pop %v1410
  %v1412 = vmul.f32 %v1334, 1.442695
  %v1413 = vpow.pop %v1412
  %v1414 = vmul.f32 %v1335, 1.442695
  %v1415 = vpow.pop %v1414
  %v1416 = vmul.f32 %v1336, 1.442695
  %v1417 = vpow.pop %v1416
  %v1418 = vmul.f32 %v1337, 1.442695
  %v1419 = vpow.pop %v1418
  %v1420 = vmul.f32 %v1338, 1.442695
  %v1421 = vpow.pop %v1420
  %v1422 = vmul.f32 %v1339, 1.442695
  %v1423 = vpow.pop %v1422
  %v1424 = vmul.f32 %v1340, 1.442695
  %v1425 = vpow.pop %v1424
  %v1426 = vmul.f32 %v1341, 1.442695
  %v1427 = vpow.pop %v1426
  %v1428 = vmul.f32 %v1342, 1.442695
  %v1429 = vpow.pop %v1428
  %v1430 = vmul.f32 %v1343, 1.442695
  %v1431 = vpow.pop %v1430
  %v1432 = vmul.f32 %v1344, 1.442695
  %v1433 = vpow.pop %v1432
  %v1434 = vmul.f32 %v1345, 1.442695
  %v1435 = vpow.pop %v1434
  %v1436 = vmul.f32 %v1346, 1.442695
  %v1437 = vpow.pop %v1436
  %v1438 = vmul.f32 %v1347, 1.442695
  %v1439 = vpow.pop %v1438
  %v1440 = vmul.f32 %v1348, 1.442695
  %v1441 = vpow.pop %v1440
  %v1442 = vmul.f32 %v1349, 1.442695
  %v1443 = vpow.pop %v1442
  %v1444 = vmul.f32 %v1350, 1.442695
  %v1445 = vpow.pop %v1444
  %v1446 = vmul.f32 %v1351, 1.442695
  %v1447 = vpow.pop %v1446
  %v1448 = vmul.f32 %v1352, 1.442695
  %v1449 = vpow.pop %v1448
  %v1450 = vmul.f32 %v1353, 1.442695
  %v1451 = vpow.pop %v1450
  %v1452 = vmul.f32 %v1354, 1.442695
  %v1453 = vpow.pop %v1452
  %v1454 = vmul.f32 %v1355, 1.442695
  %v1455 = vpow.pop %v1454
  %v1456 = vmul.f32 %v1356, 1.442695
  %v1457 = vpow.pop %v1456
  %v1458 = vmul.f32 %v1357, 1.442695
  %v1459 = vpow.pop %v1458
  %v1460 = vmul.f32 %v1358, 1.442695
  %v1461 = vpow.pop %v1460
  %v1462 = vmul.f32 %v1359, 1.442695
  %v1463 = vpow.pop %v1462
  %v1464 = vmul.f32 %v1360, 1.442695
  %v1465 = vpow.pop %v1464
  %v1466 = vmul.f32 %v1361, 1.442695
  %v1467 = vpow.pop %v1466
  %v1468 = vmul.f32 %v1362, 1.442695
  %v1469 = vpow.pop %v1468
  %v1470 = vmul.f32 %v1363, 1.442695
  %v1471 = vpow.pop %v1470
  %v1472 = vmul.f32 %v1364, 1.442695
  %v1473 = vpow.pop %v1472
  %v1474 = vmul.f32 %v1365, 1.442695
  %v1475 = vpow.pop %v1474
  %v1476 = vmul.f32 %v1366, 1.442695
  %v1477 = vpow.pop %v1476
  %v1478 = vmul.f32 %v1367, 1.442695
  %v1479 = vpow.pop %v1478
  %v1480 = vmul.f32 %v1368, 1.442695
  %v1481 = vpow.pop %v1480
  %v1482 = vmul.f32 %v1369, 1.442695
  %v1483 = vpow.pop %v1482
  %v1484 = vmul.f32 %v1370, 1.442695
  %v1485 = vpow.pop %v1484
  %v1486 = vmul.f32 %v1371, 1.442695
  %v1487 = vpow.pop %v1486
  %v1488 = vmul.f32 %v1372, 1.442695
  %v1489 = vpow.pop %v1488
  %v1490 = vmul.f32 %v1373, 1.442695
  %v1491 = vpow.pop %v1490
  %v1492 = vmul.f32 %v1374, 1.442695
  %v1493 = vpow.pop %v1492
  %v1494 = vmul.f32 %v1375, 1.442695
  %v1495 = vpow.pop %v1494
  %v1496 = vmul.f32 %v1376, 1.442695
  %v1497 = vpow.pop %v1496
  %v1498 = vmul.f32 %v1377, 1.442695
  %v1499 = vpow.pop %v1498
  %v1500 = vmul.f32 %v1378, 1.442695
  %v1501 = vpow.pop %v1500
  %v1502 = vmul.f32 %v1379, 1.442695
  %v1503 = vpow.pop %v1502
  %v1504 = vmul.f32 %v1380, 1.442695
  %v1505 = vpow.pop %v1504
  %v1506 = vmul.f32 %v1381, 1.442695
  %v1507 = vpow.pop %v1506
  %v1508 = vmul.f32 %v1382, 1.442695
  %v1509 = vpow.pop %v1508
  %v1510 = vmul.f32 %v1383, 1.442695
  %v1511 = vpow.pop %v1510
  %v1512 = vadd.f32 %v1385, 1.0
  %v1513 = vadd.f32 %v1387, 1.0
  %v1514 = vadd.f32 %v1389, 1.0
  %v1515 = vadd.f32 %v1391, 1.0
  %v1516 = vadd.f32 %v1393, 1.0
  %v1517 = vadd.f32 %v1395, 1.0
  %v1518 = vadd.f32 %v1397, 1.0
  %v1519 = vadd.f32 %v1399, 1.0
  %v1520 = vadd.f32 %v1401, 1.0
  %v1521 = vadd.f32 %v1403, 1.0
  %v1522 = vadd.f32 %v1405, 1.0
  %v1523 = vadd.f32 %v1407, 1.0
  %v1524 = vadd.f32 %v1409, 1.0
  %v1525 = vadd.f32 %v1411, 1.0
  %v1526 = vadd.f32 %v1413, 1.0
  %v1527 = vadd.f32 %v1415, 1.0
  %v1528 = vadd.f32 %v1417, 1.0
  %v1529 = vadd.f32 %v1419, 1.0
  %v1530 = vadd.f32 %v1421, 1.0
  %v1531 = vadd.f32 %v1423, 1.0
  %v1532 = vadd.f32 %v1425, 1.0
  %v1533 = vadd.f32 %v1427, 1.0
  %v1534 = vadd.f32 %v1429, 1.0
  %v1535 = vadd.f32 %v1431, 1.0
  %v1536 = vadd.f32 %v1433, 1.0
  %v1537 = vadd.f32 %v1435, 1.0
  %v1538 = vadd.f32 %v1437, 1.0
  %v1539 = vadd.f32 %v1439, 1.0
  %v1540 = vadd.f32 %v1441, 1.0
  %v1541 = vadd.f32 %v1443, 1.0
  %v1542 = vadd.f32 %v1445, 1.0
  %v1543 = vadd.f32 %v1447, 1.0
  %v1544 = vadd.f32 %v1449, 1.0
  %v1545 = vadd.f32 %v1451, 1.0
  %v1546 = vadd.f32 %v1453, 1.0
  %v1547 = vadd.f32 %v1455, 1.0
  %v1548 = vadd.f32 %v1457, 1.0
  %v1549 = vadd.f32 %v1459, 1.0
  %v1550 = vadd.f32 %v1461, 1.0
  %v1551 = vadd.f32 %v1463, 1.0
  %v1552 = vadd.f32 %v1465, 1.0
  %v1553 = vadd.f32 %v1467, 1.0
  %v1554 = vadd.f32 %v1469, 1.0
  %v1555 = vadd.f32 %v1471, 1.0
  %v1556 = vadd.f32 %v1473, 1.0
  %v1557 = vadd.f32 %v1475, 1.0
  %v1558 = vadd.f32 %v1477, 1.0
  %v1559 = vadd.f32 %v1479, 1.0
  %v1560 = vadd.f32 %v1481, 1.0
  %v1561 = vadd.f32 %v1483, 1.0
  %v1562 = vadd.f32 %v1485, 1.0
  %v1563 = vadd.f32 %v1487, 1.0
  %v1564 = vadd.f32 %v1489, 1.0
  %v1565 = vadd.f32 %v1491, 1.0
  %v1566 = vadd.f32 %v1493, 1.0
  %v1567 = vadd.f32 %v1495, 1.0
  %v1568 = vadd.f32 %v1497, 1.0
  %v1569 = vadd.f32 %v1499, 1.0
  %v1570 = vadd.f32 %v1501, 1.0
  %v1571 = vadd.f32 %v1503, 1.0
  %v1572 = vadd.f32 %v1505, 1.0
  %v1573 = vadd.f32 %v1507, 1.0
  %v1574 = vadd.f32 %v1509, 1.0
  %v1575 = vadd.f32 %v1511, 1.0
  %v1576 = vrcp.pop %v1512
  %v1577 = vmul.f32 1.0, %v1576
  %v1578 = vrcp.pop %v1513
  %v1579 = vmul.f32 1.0, %v1578
  %v1580 = vrcp.pop %v1514
  %v1581 = vmul.f32 1.0, %v1580
  %v1582 = vrcp.pop %v1515
  %v1583 = vmul.f32 1.0, %v1582
  %v1584 = vrcp.pop %v1516
  %v1585 = vmul.f32 1.0, %v1584
  %v1586 = vrcp.pop %v1517
  %v1587 = vmul.f32 1.0, %v1586
  %v1588 = vrcp.pop %v1518
  %v1589 = vmul.f32 1.0, %v1588
  %v1590 = vrcp.pop %v1519
  %v1591 = vmul.f32 1.0, %v1590
  %v1592 = vrcp.pop %v1520
  %v1593 = vmul.f32 1.0, %v1592
  %v1594 = vrcp.pop %v1521
  %v1595 = vmul.f32 1.0, %v1594
  %v1596 = vrcp.pop %v1522
  %v1597 = vmul.f32 1.0, %v1596
  %v1598 = vrcp.pop %v1523
  %v1599 = vmul.f32 1.0, %v1598
  %v1600 = vrcp.pop %v1524
  %v1601 = vmul.f32 1.0, %v1600
  %v1602 = vrcp.pop %v1525
  %v1603 = vmul.f32 1.0, %v1602
  %v1604 = vrcp.pop %v1526
  %v1605 = vmul.f32 1.0, %v1604
  %v1606 = vrcp.pop %v1527
  %v1607 = vmul.f32 1.0, %v1606
  %v1608 = vrcp.pop %v1528
  %v1609 = vmul.f32 1.0, %v1608
  %v1610 = vrcp.pop %v1529
  %v1611 = vmul.f32 1.0, %v1610
  %v1612 = vrcp.pop %v1530
  %v1613 = vmul.f32 1.0, %v1612
  %v1614 = vrcp.pop %v1531
  %v1615 = vmul.f32 1.0, %v1614
  %v1616 = vrcp.pop %v1532
  %v1617 = vmul.f32 1.0, %v1616
  %v1618 = vrcp.pop %v1533
  %v1619 = vmul.f32 1.0, %v1618
  %v1620 = vrcp.pop %v1534
  %v1621 = vmul.f32 1.0, %v1620
  %v1622 = vrcp.pop %v1535
  %v1623 = vmul.f32 1.0, %v1622
  %v1624 = vrcp.pop %v1536
  %v1625 = vmul.f32 1.0, %v1624
  %v1626 = vrcp.pop %v1537
  %v1627 = vmul.f32 1.0, %v1626
  %v1628 = vrcp.pop %v1538
  %v1629 = vmul.f32 1.0, %v1628
  %v1630 = vrcp.pop %v1539
  %v1631 = vmul.f32 1.0, %v1630
  %v1632 = vrcp.pop %v1540
  %v1633 = vmul.f32 1.0, %v1632
  %v1634 = vrcp.pop %v1541
  %v1635 = vmul.f32 1.0, %v1634
  %v1636 = vrcp.pop %v1542
  %v1637 = vmul.f32 1.0, %v1636
  %v1638 = vrcp.pop %v1543
  %v1639 = vmul.f32 1.0, %v1638
  %v1640 = vrcp.pop %v1544
  %v1641 = vmul.f32 1.0, %v1640
  %v1642 = vrcp.pop %v1545
  %v1643 = vmul.f32 1.0, %v1642
  %v1644 = vrcp.pop %v1546
  %v1645 = vmul.f32 1.0, %v1644
  %v1646 = vrcp.pop %v1547
  %v1647 = vmul.f32 1.0, %v1646
  %v1648 = vrcp.pop %v1548
  %v1649 = vmul.f32 1.0, %v1648
  %v1650 = vrcp.pop %v1549
  %v1651 = vmul.f32 1.0, %v1650
  %v1652 = vrcp.pop %v1550
  %v1653 = vmul.f32 1.0, %v1652
  %v1654 = vrcp.pop %v1551
  %v1655 = vmul.f32 1.0, %v1654
  %v1656 = vrcp.pop %v1552
  %v1657 = vmul.f32 1.0, %v1656
  %v1658 = vrcp.pop %v1553
  %v1659 = vmul.f32 1.0, %v1658
  %v1660 = vrcp.pop %v1554
  %v1661 = vmul.f32 1.0, %v1660
  %v1662 = vrcp.pop %v1555
  %v1663 = vmul.f32 1.0, %v1662
  %v1664 = vrcp.pop %v1556
  %v1665 = vmul.f32 1.0, %v1664
  %v1666 = vrcp.pop %v1557
  %v1667 = vmul.f32 1.0, %v1666
  %v1668 = vrcp.pop %v1558
  %v1669 = vmul.f32 1.0, %v1668
  %v1670 = vrcp.pop %v1559
  %v1671 = vmul.f32 1.0, %v1670
  %v1672 = vrcp.pop %v1560
  %v1673 = vmul.f32 1.0, %v1672
  %v1674 = vrcp.pop %v1561
  %v1675 = vmul.f32 1.0, %v1674
  %v1676 = vrcp.pop %v1562
  %v1677 = vmul.f32 1.0, %v1676
  %v1678 = vrcp.pop %v1563
  %v1679 = vmul.f32 1.0, %v1678
  %v1680 = vrcp.pop %v1564
  %v1681 = vmul.f32 1.0, %v1680
  %v1682 = vrcp.pop %v1565
  %v1683 = vmul.f32 1.0, %v1682
  %v1684 = vrcp.pop %v1566
  %v1685 = vmul.f32 1.0, %v1684
  %v1686 = vrcp.pop %v1567
  %v1687 = vmul.f32 1.0, %v1686
  %v1688 = vrcp.pop %v1568
  %v1689 = vmul.f32 1.0, %v1688
  %v1690 = vrcp.pop %v1569
  %v1691 = vmul.f32 1.0, %v1690
  %v1692 = vrcp.pop %v1570
  %v1693 = vmul.f32 1.0, %v1692
  %v1694 = vrcp.pop %v1571
  %v1695 = vmul.f32 1.0, %v1694
  %v1696 = vrcp.pop %v1572
  %v1697 = vmul.f32 1.0, %v1696
  %v1698 = vrcp.pop %v1573
  %v1699 = vmul.f32 1.0, %v1698
  %v1700 = vrcp.pop %v1574
  %v1701 = vmul.f32 1.0, %v1700
  %v1702 = vrcp.pop %v1575
  %v1703 = vmul.f32 1.0, %v1702
  %v1704 = vmul.f32 %v1256, %v1577
  %v1705 = vmul.f32 %v1257, %v1579
  %v1706 = vmul.f32 %v1258, %v1581
  %v1707 = vmul.f32 %v1259, %v1583
  %v1708 = vmul.f32 %v1260, %v1585
  %v1709 = vmul.f32 %v1261, %v1587
  %v1710 = vmul.f32 %v1262, %v1589
  %v1711 = vmul.f32 %v1263, %v1591
  %v1712 = vmul.f32 %v1264, %v1593
  %v1713 = vmul.f32 %v1265, %v1595
  %v1714 = vmul.f32 %v1266, %v1597
  %v1715 = vmul.f32 %v1267, %v1599
  %v1716 = vmul.f32 %v1268, %v1601
  %v1717 = vmul.f32 %v1269, %v1603
  %v1718 = vmul.f32 %v1270, %v1605
  %v1719 = vmul.f32 %v1271, %v1607
  %v1720 = vmul.f32 %v1272, %v1609
  %v1721 = vmul.f32 %v1273, %v1611
  %v1722 = vmul.f32 %v1274, %v1613
  %v1723 = vmul.f32 %v1275, %v1615
  %v1724 = vmul.f32 %v1276, %v1617
  %v1725 = vmul.f32 %v1277, %v1619
  %v1726 = vmul.f32 %v1278, %v1621
  %v1727 = vmul.f32 %v1279, %v1623
  %v1728 = vmul.f32 %v1280, %v1625
  %v1729 = vmul.f32 %v1281, %v1627
  %v1730 = vmul.f32 %v1282, %v1629
  %v1731 = vmul.f32 %v1283, %v1631
  %v1732 = vmul.f32 %v1284, %v1633
  %v1733 = vmul.f32 %v1285, %v1635
  %v1734 = vmul.f32 %v1286, %v1637
  %v1735 = vmul.f32 %v1287, %v1639
  %v1736 = vmul.f32 %v1288, %v1641
  %v1737 = vmul.f32 %v1289, %v1643
  %v1738 = vmul.f32 %v1290, %v1645
  %v1739 = vmul.f32 %v1291, %v1647
  %v1740 = vmul.f32 %v1292, %v1649
  %v1741 = vmul.f32 %v1293, %v1651
  %v1742 = vmul.f32 %v1294, %v1653
  %v1743 = vmul.f32 %v1295, %v1655
  %v1744 = vmul.f32 %v1296, %v1657
  %v1745 = vmul.f32 %v1297, %v1659
  %v1746 = vmul.f32 %v1298, %v1661
  %v1747 = vmul.f32 %v1299, %v1663
  %v1748 = vmul.f32 %v1300, %v1665
  %v1749 = vmul.f32 %v1301, %v1667
  %v1750 = vmul.f32 %v1302, %v1669
  %v1751 = vmul.f32 %v1303, %v1671
  %v1752 = vmul.f32 %v1304, %v1673
  %v1753 = vmul.f32 %v1305, %v1675
  %v1754 = vmul.f32 %v1306, %v1677
  %v1755 = vmul.f32 %v1307, %v1679
  %v1756 = vmul.f32 %v1308, %v1681
  %v1757 = vmul.f32 %v1309, %v1683
  %v1758 = vmul.f32 %v1310, %v1685
  %v1759 = vmul.f32 %v1311, %v1687
  %v1760 = vmul.f32 %v1312, %v1689
  %v1761 = vmul.f32 %v1313, %v1691
  %v1762 = vmul.f32 %v1314, %v1693
  %v1763 = vmul.f32 %v1315, %v1695
  %v1764 = vmul.f32 %v1316, %v1697
  %v1765 = vmul.f32 %v1317, %v1699
  %v1766 = vmul.f32 %v1318, %v1701
  %v1767 = vmul.f32 %v1319, %v1703
  %1768 = vst.msk [vmem:[%s5] sm:$0xff] %vm311, %v1704
  %1769 = vst.msk [vmem:[%s5 + $0x8] sm:$0xff] %vm311, %v1705
  %1770 = vst.msk [vmem:[%s5 + $0x10] sm:$0xff] %vm311, %v1706
  %1771 = vst.msk [vmem:[%s5 + $0x18] sm:$0xff] %vm311, %v1707
  %1772 = vst.msk [vmem:[%s5 + $0x20] sm:$0xff] %vm311, %v1708
  %1773 = vst.msk [vmem:[%s5 + $0x28] sm:$0xff] %vm311, %v1709
  %1774 = vst.msk [vmem:[%s5 + $0x30] sm:$0xff] %vm311, %v1710
  %1775 = vst.msk [vmem:[%s5 + $0x38] sm:$0xff] %vm311, %v1711
  %1776 = vst.msk [vmem:[%s5 + $0x40] sm:$0xff] %vm311, %v1712
  %1777 = vst.msk [vmem:[%s5 + $0x48] sm:$0xff] %vm311, %v1713
  %1778 = vst.msk [vmem:[%s5 + $0x50] sm:$0xff] %vm311, %v1714
  %1779 = vst.msk [vmem:[%s5 + $0x58] sm:$0xff] %vm311, %v1715
  %1780 = vst.msk [vmem:[%s5 + $0x60] sm:$0xff] %vm311, %v1716
  %1781 = vst.msk [vmem:[%s5 + $0x68] sm:$0xff] %vm311, %v1717
  %1782 = vst.msk [vmem:[%s5 + $0x70] sm:$0xff] %vm311, %v1718
  %1783 = vst.msk [vmem:[%s5 + $0x78] sm:$0xff] %vm311, %v1719
  %1784 = vst.msk [vmem:[%s5 + $0x80] sm:$0xff] %vm311, %v1720
  %1785 = vst.msk [vmem:[%s5 + $0x88] sm:$0xff] %vm311, %v1721
  %1786 = vst.msk [vmem:[%s5 + $0x90] sm:$0xff] %vm311, %v1722
  %1787 = vst.msk [vmem:[%s5 + $0x98] sm:$0xff] %vm311, %v1723
  %1788 = vst.msk [vmem:[%s5 + $0xa0] sm:$0xff] %vm311, %v1724
  %1789 = vst.msk [vmem:[%s5 + $0xa8] sm:$0xff] %vm311, %v1725
  %1790 = vst.msk [vmem:[%s5 + $0xb0] sm:$0xff] %vm311, %v1726
  %1791 = vst.msk [vmem:[%s5 + $0xb8] sm:$0xff] %vm311, %v1727
  %1792 = vst.msk [vmem:[%s5 + $0xc0] sm:$0xff] %vm311, %v1728
  %1793 = vst.msk [vmem:[%s5 + $0xc8] sm:$0xff] %vm311, %v1729
  %1794 = vst.msk [vmem:[%s5 + $0xd0] sm:$0xff] %vm311, %v1730
  %1795 = vst.msk [vmem:[%s5 + $0xd8] sm:$0xff] %vm311, %v1731
  %1796 = vst.msk [vmem:[%s5 + $0xe0] sm:$0xff] %vm311, %v1732
  %1797 = vst.msk [vmem:[%s5 + $0xe8] sm:$0xff] %vm311, %v1733
  %1798 = vst.msk [vmem:[%s5 + $0xf0] sm:$0xff] %vm311, %v1734
  %1799 = vst.msk [vmem:[%s5 + $0xf8] sm:$0xff] %vm311, %v1735
  %1800 = vst.msk [vmem:[%s5 + $0x100] sm:$0xff] %vm311, %v1736
  %1801 = vst.msk [vmem:[%s5 + $0x108] sm:$0xff] %vm311, %v1737
  %1802 = vst.msk [vmem:[%s5 + $0x110] sm:$0xff] %vm311, %v1738
  %1803 = vst.msk [vmem:[%s5 + $0x118] sm:$0xff] %vm311, %v1739
  %1804 = vst.msk [vmem:[%s5 + $0x120] sm:$0xff] %vm311, %v1740
  %1805 = vst.msk [vmem:[%s5 + $0x128] sm:$0xff] %vm311, %v1741
  %1806 = vst.msk [vmem:[%s5 + $0x130] sm:$0xff] %vm311, %v1742
  %1807 = vst.msk [vmem:[%s5 + $0x138] sm:$0xff] %vm311, %v1743
  %1808 = vst.msk [vmem:[%s5 + $0x140] sm:$0xff] %vm311, %v1744
  %1809 = vst.msk [vmem:[%s5 + $0x148] sm:$0xff] %vm311, %v1745
  %1810 = vst.msk [vmem:[%s5 + $0x150] sm:$0xff] %vm311, %v1746
  %1811 = vst.msk [vmem:[%s5 + $0x158] sm:$0xff] %vm311, %v1747
  %1812 = vst.msk [vmem:[%s5 + $0x160] sm:$0xff] %vm311, %v1748
  %1813 = vst.msk [vmem:[%s5 + $0x168] sm:$0xff] %vm311, %v1749
  %1814 = vst.msk [vmem:[%s5 + $0x170] sm:$0xff] %vm311, %v1750
  %1815 = vst.msk [vmem:[%s5 + $0x178] sm:$0xff] %vm311, %v1751
  %1816 = vst.msk [vmem:[%s5 + $0x180] sm:$0xff] %vm311, %v1752
  %1817 = vst.msk [vmem:[%s5 + $0x188] sm:$0xff] %vm311, %v1753
  %1818 = vst.msk [vmem:[%s5 + $0x190] sm:$0xff] %vm311, %v1754
  %1819 = vst.msk [vmem:[%s5 + $0x198] sm:$0xff] %vm311, %v1755
  %1820 = vst.msk [vmem:[%s5 + $0x1a0] sm:$0xff] %vm311, %v1756
  %1821 = vst.msk [vmem:[%s5 + $0x1a8] sm:$0xff] %vm311, %v1757
  %1822 = vst.msk [vmem:[%s5 + $0x1b0] sm:$0xff] %vm311, %v1758
  %1823 = vst.msk [vmem:[%s5 + $0x1b8] sm:$0xff] %vm311, %v1759
  %1824 = vst.msk [vmem:[%s5 + $0x1c0] sm:$0xff] %vm311, %v1760
  %1825 = vst.msk [vmem:[%s5 + $0x1c8] sm:$0xff] %vm311, %v1761
  %1826 = vst.msk [vmem:[%s5 + $0x1d0] sm:$0xff] %vm311, %v1762
  %1827 = vst.msk [vmem:[%s5 + $0x1d8] sm:$0xff] %vm311, %v1763
  %1828 = vst.msk [vmem:[%s5 + $0x1e0] sm:$0xff] %vm311, %v1764
  %1829 = vst.msk [vmem:[%s5 + $0x1e8] sm:$0xff] %vm311, %v1765
  %1830 = vst.msk [vmem:[%s5 + $0x1f0] sm:$0xff] %vm311, %v1766
  %1831 = vst.msk [vmem:[%s5 + $0x1f8] sm:$0xff] %vm311, %v1767
  // Predicated region
  $region22: #{rfb_forward.3} parent=0 // pred_check
    _
  $region23: #{rfb_forward.3} parent=0 // pred_check_branch
    %1833 = sbr.rel (0) target = $region25
  $region24: #{rfb_forward.3} parent=0 // pred_region
    _
  $region25: #{rfb_forward.3} parent=0 // pred_fallthru
    _
  // Predicated region
  $region26: #{rfb_forward.3} parent=0 // pred_check
    _
  $region27: #{rfb_forward.3} parent=0 // pred_check_branch
    %1835 = sbr.rel (0) target = $region29
  $region28: #{rfb_forward.3} parent=0 // pred_region
    _
  $region29: #{rfb_forward.3} parent=0 // pred_fallthru
    _

</llo_original>
